<compile_context>
chip_gen: v5e
topology: v5e:2x2
jax: 0.10.0
libtpu: 0.0.40
codegen_flags: <defaults>
</compile_context>

<pallas_src>
import functools

import jax
import jax.numpy as jnp
from jax import lax
from jax.experimental import pallas as pl
from jax.experimental.pallas import tpu as pltpu

# ----------------------------- configs (small, synthetic) -----------------------------
VISION_CONFIG = dict(image_size=16, patch_size=8, channels=4,
                     hidden_dim=32, num_heads=4, num_layers=2, mlp_dim=128)
TEXT_CONFIG = dict(vocab_size=64, seq_len=8,
                   hidden_dim=32, num_heads=4, num_layers=2, mlp_dim=128)
CLIP_CONFIG = dict(embed_dim=32, temperature=0.07)

MXU_DTYPE = jnp.bfloat16   # MXU operand dtype; accumulation + elementwise math stay f32


# ----------------------------- in-kernel helpers -----------------------------

def _layernorm(x, g, b):
    mu = jnp.mean(x, axis=-1, keepdims=True)
    xc = x - mu
    var = jnp.mean(xc * xc, axis=-1, keepdims=True)
    return xc * lax.rsqrt(var + 1e-5) * g + b


def _gelu(x):
    # TODO(synk): tanh-approx GELU kept from the reference toy model (PyTorch nn.GELU default
    # is exact erf; OpenAI/HF CLIP use QuickGELU).
    c = 0.7978845608028654  # sqrt(2/pi)
    return 0.5 * x * (1.0 + jnp.tanh(c * (x + 0.044715 * x * x * x)))


# ----------------------------- fused dual-tower kernel -----------------------------

def _dual_tower_kernel(
        patches_ref, vis_add_ref, txt_x_ref, patch_w_ref,
        ln1_g_ref, ln1_b_ref, qkv_w_ref, qkv_b_ref,
        proj_w_ref, proj_b_ref, ln2_g_ref, ln2_b_ref,
        fc1_w_ref, fc1_b_ref, fc2_w_ref, fc2_b_ref,
        lnf_g_ref, lnf_b_ref, head_w_ref, head_b_ref,
        out_ref, x_sc, pool_sc,
        *, num_layers, num_heads, batch, s_max, s_vis, s_txt):
    t = pl.program_id(0)                 # 0 = vision tower, 1 = text tower

    d = txt_x_ref.shape[-1]
    dh = d // num_heads
    rows = batch * s_max

    # ---- embedding: tower-specific work gated with pl.when (no blend, no wasted matmul) ----
    @pl.when(t == 0)
    def _():
        emb = jnp.dot(patches_ref[...].astype(MXU_DTYPE), patch_w_ref[...],
                      preferred_element_type=jnp.float32)                # (rows, d)
        # vis_add row0 = cls + pos0, rows 1..n_patch = conv bias + pos, pad rows = 0;
        # broadcast the (s_max, d) table over the batch without tiling it in HBM.
        emb = emb.reshape(batch, s_max, d) + vis_add_ref[...][None]
        x_sc[...] = emb.reshape(rows, d)

    @pl.when(t == 1)
    def _():
        x_sc[...] = txt_x_ref[...]

    x = x_sc[...]                                                        # (rows, d) f32

    # ---- additive attention mask, built once outside the layer loop ----
    row = lax.broadcasted_iota(jnp.int32, (s_max, s_max), 0)
    col = lax.broadcasted_iota(jnp.int32, (s_max, s_max), 1)
    valid_len = jnp.int32(s_vis) + jnp.int32(s_txt - s_vis) * t          # pad-key mask
    causal_lim = row + (1 - t) * jnp.int32(s_max)                        # causal only for text
    keep = (col < valid_len) & (col <= causal_lim)
    mask_add = jnp.where(keep, 0.0, -1e30).astype(jnp.float32)[None]     # (1, s, s)

    for l in range(num_layers):
        # -------- attention: heads stacked on the batch axis -> 2 matmuls + 1 softmax --------
        h = _layernorm(x, ln1_g_ref[0, l], ln1_b_ref[0, l])
        # Q columns/bias are pre-scaled by 1/sqrt(dh) at pack time.
        qkv = jnp.dot(h.astype(MXU_DTYPE), qkv_w_ref[0, l],
                      preferred_element_type=jnp.float32) + qkv_b_ref[0, l]   # (rows, 3d)

        def head(base, hh):
            return qkv[:, base + hh * dh: base + (hh + 1) * dh].reshape(batch, s_max, dh)

        q = jnp.concatenate([head(0, hh) for hh in range(num_heads)], axis=0)       # (h*b, s, dh)
        k = jnp.concatenate([head(d, hh) for hh in range(num_heads)], axis=0)
        v = jnp.concatenate([head(2 * d, hh) for hh in range(num_heads)], axis=0)

        s = jnp.einsum("bqd,bkd->bqk", q.astype(MXU_DTYPE), k.astype(MXU_DTYPE),
                       preferred_element_type=jnp.float32)                          # (h*b, s, s)
        s = s + mask_add                                                             # hoisted add
        s = s - jnp.max(s, axis=-1, keepdims=True)
        p = jnp.exp(s)
        p = p * pl.reciprocal(jnp.sum(p, axis=-1, keepdims=True), approx=True)
        o = jnp.einsum("bqk,bkd->bqd", p.astype(MXU_DTYPE), v.astype(MXU_DTYPE),
                       preferred_element_type=jnp.float32)                           # (h*b, s, dh)

        a = jnp.concatenate([o[hh * batch:(hh + 1) * batch].reshape(rows, dh)
                             for hh in range(num_heads)], axis=-1)                   # (rows, d)
        a = jnp.dot(a.astype(MXU_DTYPE), proj_w_ref[0, l],
                    preferred_element_type=jnp.float32) + proj_b_ref[0, l]
        x = x + a                                                                    # residual in vregs

        # -------- MLP (mlp_dim=128 keeps the lane axis full) --------
        h = _layernorm(x, ln2_g_ref[0, l], ln2_b_ref[0, l])
        h = jnp.dot(h.astype(MXU_DTYPE), fc1_w_ref[0, l],
                    preferred_element_type=jnp.float32) + fc1_b_ref[0, l]
        h = _gelu(h)
        h = jnp.dot(h.astype(MXU_DTYPE), fc2_w_ref[0, l],
                    preferred_element_type=jnp.float32) + fc2_b_ref[0, l]
        x = x + h

    # ---- pooling: CLS row (vision) / last token (text) via one strided row gather ----
    # TODO(synk): text pooling = last sequence position (matches the reference toy model);
    # HF/OpenAI CLIP pools the EOT (argmax token id) position instead.
    x_sc[...] = x

    @pl.when(t == 0)
    def _():
        pool_sc[...] = x_sc[pl.ds(0, batch, stride=s_max), :]            # CLS rows

    @pl.when(t == 1)
    def _():
        pool_sc[...] = x_sc[pl.ds(s_txt - 1, batch, stride=s_max), :]    # last-token rows

    pooled = _layernorm(pool_sc[...], lnf_g_ref[0], lnf_b_ref[0])
    feat = jnp.dot(pooled.astype(MXU_DTYPE), head_w_ref[0],
                   preferred_element_type=jnp.float32) + head_b_ref[0]
    # F.normalize(dim=-1), eps=1e-12  ==  x * rsqrt(max(sum(x^2), eps^2))
    feat = feat * lax.rsqrt(jnp.maximum(jnp.sum(feat * feat, axis=-1, keepdims=True), 1e-24))
    out_ref[...] = feat[None, :, :].astype(out_ref.dtype)


def pallas_dual_tower(patches, vis_add, txt_x, p, *, batch, s_vis, s_txt,
                      num_heads, num_layers):
    """Runs both towers in ONE pallas_call; grid axis 0 = tower id (parallel -> 2 TCs on v7x)."""
    s_max = s_txt
    rows = patches.shape[0]
    d = txt_x.shape[-1]
    assert rows == batch * s_max and txt_x.shape[0] == rows

    def shared(arr):      # same full-array block for both towers
        n = arr.ndim
        return pl.BlockSpec(arr.shape, lambda t, _n=n: (0,) * _n)

    def per_tower(arr):   # leading axis (size 2) indexed by the tower grid coordinate
        n = arr.ndim
        return pl.BlockSpec((1,) + arr.shape[1:], lambda t, _n=n: (t,) + (0,) * (_n - 1))

    kernel = functools.partial(
        _dual_tower_kernel, num_layers=num_layers, num_heads=num_heads,
        batch=batch, s_max=s_max, s_vis=s_vis, s_txt=s_txt)

    in_specs = [
        shared(patches), shared(vis_add), shared(txt_x), shared(p["patch_w"]),
        per_tower(p["ln1_g"]), per_tower(p["ln1_b"]),
        per_tower(p["qkv_w"]), per_tower(p["qkv_b"]),
        per_tower(p["proj_w"]), per_tower(p["proj_b"]),
        per_tower(p["ln2_g"]), per_tower(p["ln2_b"]),
        per_tower(p["fc1_w"]), per_tower(p["fc1_b"]),
        per_tower(p["fc2_w"]), per_tower(p["fc2_b"]),
        per_tower(p["lnf_g"]), per_tower(p["lnf_b"]),
        per_tower(p["head_w"]), per_tower(p["head_b"]),
    ]

    return pl.pallas_call(
        kernel,
        out_shape=jax.ShapeDtypeStruct((2, batch, d), jnp.float32),
        grid=(2,),
        in_specs=in_specs,
        out_specs=pl.BlockSpec((1, batch, d), lambda t: (t, 0, 0)),
        scratch_shapes=[pltpu.VMEM((batch * s_max, d), jnp.float32),   # residual stream
                        pltpu.VMEM((batch, d), jnp.float32)],          # pooled rows
        compiler_params=pltpu.CompilerParams(
            dimension_semantics=("parallel",),   # vision/text towers on separate TCs (v7x)
        ),
    )(patches, vis_add, txt_x, p["patch_w"],
      p["ln1_g"], p["ln1_b"], p["qkv_w"], p["qkv_b"],
      p["proj_w"], p["proj_b"], p["ln2_g"], p["ln2_b"],
      p["fc1_w"], p["fc1_b"], p["fc2_w"], p["fc2_b"],
      p["lnf_g"], p["lnf_b"], p["head_w"], p["head_b"])


# ----------------------------- parameter init (same as reference toy model) -----------------------------

def _init_linear(key, in_dim, out_dim, scale=0.02):
    w = scale * jax.random.normal(key, (in_dim, out_dim), jnp.float32)
    b = jnp.zeros((out_dim,), jnp.float32)
    return w, b


def _init_block(key, d, mlp_dim):
    ks = jax.random.split(key, 4)
    qkv_w, qkv_b = _init_linear(ks[0], d, 3 * d)
    proj_w, proj_b = _init_linear(ks[1], d, d)
    fc1_w, fc1_b = _init_linear(ks[2], d, mlp_dim)
    fc2_w, fc2_b = _init_linear(ks[3], mlp_dim, d)
    return dict(ln1_g=jnp.ones((d,), jnp.float32), ln1_b=jnp.zeros((d,), jnp.float32),
                ln2_g=jnp.ones((d,), jnp.float32), ln2_b=jnp.zeros((d,), jnp.float32),
                qkv_w=qkv_w, qkv_b=qkv_b, proj_w=proj_w, proj_b=proj_b,
                fc1_w=fc1_w, fc1_b=fc1_b, fc2_w=fc2_w, fc2_b=fc2_b)


def init_clip_params(key):
    vc, tc, cc = VISION_CONFIG, TEXT_CONFIG, CLIP_CONFIG
    keys = jax.random.split(key, 16)
    P, C, D = vc["patch_size"], vc["channels"], vc["hidden_dim"]
    n_patches = (vc["image_size"] // P) ** 2

    vision = dict(
        patch_w=0.02 * jax.random.normal(keys[0], (C * P * P, D), jnp.float32),
        patch_b=jnp.zeros((D,), jnp.float32),
        cls=0.02 * jax.random.normal(keys[1], (1, D), jnp.float32),
        pos=0.02 * jax.random.normal(keys[2], (n_patches + 1, D), jnp.float32),
        blocks=[_init_block(k, D, vc["mlp_dim"])
                for k in jax.random.split(keys[3], vc["num_layers"])],
        ln_g=jnp.ones((D,), jnp.float32), ln_b=jnp.zeros((D,), jnp.float32),
    )
    Dt = tc["hidden_dim"]
    text = dict(
        tok_emb=0.02 * jax.random.normal(keys[4], (tc["vocab_size"], Dt), jnp.float32),
        pos=0.02 * jax.random.normal(keys[5], (tc["seq_len"], Dt), jnp.float32),
        blocks=[_init_block(k, Dt, tc["mlp_dim"])
                for k in jax.random.split(keys[6], tc["num_layers"])],
        ln_g=jnp.ones((Dt,), jnp.float32), ln_b=jnp.zeros((Dt,), jnp.float32),
    )
    ip_w, ip_b = _init_linear(keys[7], cc["embed_dim"], cc["embed_dim"])
    tp_w, tp_b = _init_linear(keys[8], cc["embed_dim"], cc["embed_dim"])
    return dict(vision=vision, text=text,
                img_proj_w=ip_w, img_proj_b=ip_b,
                txt_proj_w=tp_w, txt_proj_b=tp_b,
                temperature=jnp.float32(cc["temperature"]))


# ----------------------------- param packing (glue, done once) -----------------------------

def pack_clip_params(params):
    vc, tc = VISION_CONFIG, TEXT_CONFIG
    assert (vc["hidden_dim"], vc["num_heads"], vc["num_layers"], vc["mlp_dim"]) == \
           (tc["hidden_dim"], tc["num_heads"], tc["num_layers"], tc["mlp_dim"])
    D, L, M = vc["hidden_dim"], vc["num_layers"], vc["mlp_dim"]
    n_patch = (vc["image_size"] // vc["patch_size"]) ** 2
    s_max = tc["seq_len"]
    assert n_patch + 1 <= s_max

    towers = (params["vision"], params["text"])

    def stack_blocks(name, shape, dtype=jnp.float32):
        a = jnp.stack([jnp.stack([blk[name] for blk in tw["blocks"]]) for tw in towers])
        return a.reshape(shape).astype(dtype)

    vis = params["vision"]
    # Per-row additive term for the vision tower: row0 = cls + pos0, rows 1..n = conv bias + pos,
    # remaining (padding) rows = 0.  Padded keys are masked inside the attention kernel.
    vis_add = jnp.concatenate([
        vis["cls"] + vis["pos"][0:1],
        vis["patch_b"][None, :] + vis["pos"][1:],
        jnp.zeros((s_max - 1 - n_patch, D), jnp.float32),
    ], axis=0)

    # Fold the 1/sqrt(dh) attention scale into the Q columns of the packed QKV weight/bias
    # (zero in-kernel cost; packing happens once, outside the forward).
    att_scale = float(D // vc["num_heads"]) ** -0.5
    qkv_w = stack_blocks("qkv_w", (2, L, D, 3 * D)).at[..., :D].multiply(att_scale)
    qkv_b = stack_blocks("qkv_b", (2, L, 1, 3 * D)).at[..., :D].multiply(att_scale)

    return dict(
        patch_w=vis["patch_w"].astype(jnp.bfloat16),
        vis_add=vis_add,                                   # (s_max, D): broadcast per batch in-kernel
        tok_emb=params["text"]["tok_emb"],
        txt_pos=params["text"]["pos"],
        ln1_g=stack_blocks("ln1_g", (2, L, 1, D)),
        ln1_b=stack_blocks("ln1_b", (2, L, 1, D)),
        ln2_g=stack_blocks("ln2_g", (2, L, 1, D)),
        ln2_b=stack_blocks("ln2_b", (2, L, 1, D)),
        qkv_w=qkv_w.astype(jnp.bfloat16),
        qkv_b=qkv_b,
        proj_w=stack_blocks("proj_w", (2, L, D, D), jnp.bfloat16),
        proj_b=stack_blocks("proj_b", (2, L, 1, D)),
        fc1_w=stack_blocks("fc1_w", (2, L, D, M), jnp.bfloat16),
        fc1_b=stack_blocks("fc1_b", (2, L, 1, M)),
        fc2_w=stack_blocks("fc2_w", (2, L, M, D), jnp.bfloat16),
        fc2_b=stack_blocks("fc2_b", (2, L, 1, D)),
        lnf_g=jnp.stack([params["vision"]["ln_g"], params["text"]["ln_g"]]).reshape(2, 1, D),
        lnf_b=jnp.stack([params["vision"]["ln_b"], params["text"]["ln_b"]]).reshape(2, 1, D),
        head_w=jnp.stack([params["img_proj_w"], params["txt_proj_w"]]).astype(jnp.bfloat16),
        head_b=jnp.stack([params["img_proj_b"], params["txt_proj_b"]]).reshape(2, 1, D),
        inv_temp=(1.0 / params["temperature"]).astype(jnp.float32),   # hoisted reciprocal
    )


# ----------------------------- forward (1 pallas_call total) -----------------------------

def clip_forward(packed, image, text):
    vc, tc = VISION_CONFIG, TEXT_CONFIG
    B, C, H, W = image.shape
    P, D = vc["patch_size"], vc["hidden_dim"]
    Hp, Wp = H // P, W // P
    n_patch = Hp * Wp
    s_max = tc["seq_len"]

    # glue: Conv2d(C, D, kernel=P, stride=P) == patchify (flatten order C,P,P) + matmul in-kernel;
    # slot 0 is reserved for the CLS token, tail rows are sequence padding up to s_max.
    patches = (image.reshape(B, C, Hp, P, Wp, P)
                    .transpose(0, 2, 4, 1, 3, 5)
                    .reshape(B, n_patch, C * P * P))
    patches = jnp.pad(patches, ((0, 0), (1, s_max - 1 - n_patch), (0, 0)))
    patches = patches.reshape(B * s_max, C * P * P)

    # glue: token-embedding gather + positional embedding
    txt_x = (jnp.take(packed["tok_emb"], text, axis=0)
             + packed["txt_pos"][None]).reshape(B * s_max, D)

    feats = pallas_dual_tower(patches, packed["vis_add"], txt_x, packed,
                              batch=B, s_vis=n_patch + 1, s_txt=s_max,
                              num_heads=vc["num_heads"], num_layers=vc["num_layers"])

    # (B, B) logits matmul is far below pallas_call launch overhead -> plain XLA (review).
    return jnp.dot(feats[0], feats[1].T) * packed["inv_temp"]


# ----------------------------- main -----------------------------

if __name__ == "__main__":
    key = jax.random.PRNGKey(0)
    k_param, k_img, k_txt = jax.random.split(key, 3)

    params = init_clip_params(k_param)
    packed = pack_clip_params(params)

    image = jax.random.normal(
        k_img,
        (2, VISION_CONFIG["channels"], VISION_CONFIG["image_size"], VISION_CONFIG["image_size"]),
        jnp.float32,
    )
    text = jax.random.randint(
        k_txt, (2, TEXT_CONFIG["seq_len"]), 0, TEXT_CONFIG["vocab_size"], jnp.int32
    )

    logits = jax.jit(clip_forward)(packed, image, text)
    logits = jax.block_until_ready(logits)
    assert logits.shape == (2, 2) and bool(jnp.all(jnp.isfinite(logits)))
    print("KERNEL_OK")
</pallas_src>

<mosaic_0001>
module attributes {stable_mosaic.version = 11 : i64} {
  func.func @_dual_tower_kernel(%arg0: i32, %arg1: memref<16x256xf32, #tpu.memory_space<vmem>>, %arg2: memref<8x32xf32, #tpu.memory_space<vmem>>, %arg3: memref<16x32xf32, #tpu.memory_space<vmem>>, %arg4: memref<256x32xbf16, #tpu.memory_space<vmem>>, %arg5: memref<1x2x1x32xf32, #tpu.memory_space<vmem>>, %arg6: memref<1x2x1x32xf32, #tpu.memory_space<vmem>>, %arg7: memref<1x2x32x96xbf16, #tpu.memory_space<vmem>>, %arg8: memref<1x2x1x96xf32, #tpu.memory_space<vmem>>, %arg9: memref<1x2x32x32xbf16, #tpu.memory_space<vmem>>, %arg10: memref<1x2x1x32xf32, #tpu.memory_space<vmem>>, %arg11: memref<1x2x1x32xf32, #tpu.memory_space<vmem>>, %arg12: memref<1x2x1x32xf32, #tpu.memory_space<vmem>>, %arg13: memref<1x2x32x128xbf16, #tpu.memory_space<vmem>>, %arg14: memref<1x2x1x128xf32, #tpu.memory_space<vmem>>, %arg15: memref<1x2x128x32xbf16, #tpu.memory_space<vmem>>, %arg16: memref<1x2x1x32xf32, #tpu.memory_space<vmem>>, %arg17: memref<1x1x32xf32, #tpu.memory_space<vmem>>, %arg18: memref<1x1x32xf32, #tpu.memory_space<vmem>>, %arg19: memref<1x32x32xbf16, #tpu.memory_space<vmem>>, %arg20: memref<1x1x32xf32, #tpu.memory_space<vmem>>, %arg21: memref<1x2x32xf32, #tpu.memory_space<vmem>>, %arg22: memref<16x32xf32, #tpu.memory_space<vmem>>, %arg23: memref<2x32xf32, #tpu.memory_space<vmem>>) attributes {dimension_semantics = [#tpu.dimension_semantics<parallel>], iteration_bounds = array<i64: 2>, scalar_prefetch = 0 : i64, scratch_operands = 2 : i64, tpu.core_type = #tpu.core_type<tc>, window_params = [{pipeline_mode = #tpu.pipeline_mode<synchronous>, transform_indices = @transform_0, window_bounds = array<i64: 16, 256>}, {pipeline_mode = #tpu.pipeline_mode<synchronous>, transform_indices = @transform_1, window_bounds = array<i64: 8, 32>}, {pipeline_mode = #tpu.pipeline_mode<synchronous>, transform_indices = @transform_2, window_bounds = array<i64: 16, 32>}, {pipeline_mode = #tpu.pipeline_mode<synchronous>, transform_indices = @transform_3, window_bounds = array<i64: 256, 32>}, {transform_indices = @transform_4, window_bounds = array<i64: 1, 2, 1, 32>}, {transform_indices = @transform_5, window_bounds = array<i64: 1, 2, 1, 32>}, {transform_indices = @transform_6, window_bounds = array<i64: 1, 2, 32, 96>}, {transform_indices = @transform_7, window_bounds = array<i64: 1, 2, 1, 96>}, {transform_indices = @transform_8, window_bounds = array<i64: 1, 2, 32, 32>}, {transform_indices = @transform_9, window_bounds = array<i64: 1, 2, 1, 32>}, {transform_indices = @transform_10, window_bounds = array<i64: 1, 2, 1, 32>}, {transform_indices = @transform_11, window_bounds = array<i64: 1, 2, 1, 32>}, {transform_indices = @transform_12, window_bounds = array<i64: 1, 2, 32, 128>}, {transform_indices = @transform_13, window_bounds = array<i64: 1, 2, 1, 128>}, {transform_indices = @transform_14, window_bounds = array<i64: 1, 2, 128, 32>}, {transform_indices = @transform_15, window_bounds = array<i64: 1, 2, 1, 32>}, {transform_indices = @transform_16, window_bounds = array<i64: 1, 1, 32>}, {transform_indices = @transform_17, window_bounds = array<i64: 1, 1, 32>}, {transform_indices = @transform_18, window_bounds = array<i64: 1, 32, 32>}, {transform_indices = @transform_19, window_bounds = array<i64: 1, 1, 32>}, {transform_indices = @transform_20, window_bounds = array<i64: 1, 2, 32>}]} {
    %c0_i32 = arith.constant 0 : i32
    %0 = arith.cmpi eq, %arg0, %c0_i32 : i32
    %1 = arith.extui %0 : i1 to i32
    %c0_i32_0 = arith.constant 0 : i32
    %2 = arith.cmpi ne, %1, %c0_i32_0 : i32
    scf.if %2 {
      %c0_175 = arith.constant 0 : index
      %c0_176 = arith.constant 0 : index
      %371 = vector.load %arg1[%c0_175, %c0_176] : memref<16x256xf32, #tpu.memory_space<vmem>>, vector<16x256xf32>
      %372 = arith.truncf %371 : vector<16x256xf32> to vector<16x256xbf16>
      %c0_177 = arith.constant 0 : index
      %c0_178 = arith.constant 0 : index
      %373 = vector.load %arg4[%c0_177, %c0_178] : memref<256x32xbf16, #tpu.memory_space<vmem>>, vector<256x32xbf16>
      %cst_179 = arith.constant dense<0.000000e+00> : vector<16x32xf32>
      %374 = tpu.matmul %372, %373, %cst_179 {dimension_numbers = #tpu.dot_dimension_numbers<[1], [0], [0], [1], [0, 0, 1, 1], [], []>} : vector<16x256xbf16>, vector<256x32xbf16>, vector<16x32xf32> -> vector<16x32xf32>
      %375 = vector.shape_cast %374 : vector<16x32xf32> to vector<2x8x32xf32>
      %c0_180 = arith.constant 0 : index
      %c0_181 = arith.constant 0 : index
      %376 = vector.load %arg2[%c0_180, %c0_181] : memref<8x32xf32, #tpu.memory_space<vmem>>, vector<8x32xf32>
      %377 = vector.shape_cast %376 : vector<8x32xf32> to vector<1x8x32xf32>
      %378 = vector.broadcast %377 : vector<1x8x32xf32> to vector<2x8x32xf32>
      %379 = arith.addf %375, %378 : vector<2x8x32xf32>
      %380 = vector.shape_cast %379 : vector<2x8x32xf32> to vector<16x32xf32>
      %c0_182 = arith.constant 0 : index
      %c0_183 = arith.constant 0 : index
      %381 = vector.load %arg22[%c0_182, %c0_183] : memref<16x32xf32, #tpu.memory_space<vmem>>, vector<16x32xf32>
      tpu.vector_store %arg22[%c0_182, %c0_183], %380 {strides = array<i32>} : memref<16x32xf32, #tpu.memory_space<vmem>>, vector<16x32xf32>,
    } else {
    }
    %c1_i32 = arith.constant 1 : i32
    %3 = arith.cmpi eq, %arg0, %c1_i32 : i32
    %4 = arith.extui %3 : i1 to i32
    %c0_i32_1 = arith.constant 0 : i32
    %5 = arith.cmpi ne, %4, %c0_i32_1 : i32
    scf.if %5 {
      %c0_175 = arith.constant 0 : index
      %c0_176 = arith.constant 0 : index
      %371 = vector.load %arg3[%c0_175, %c0_176] : memref<16x32xf32, #tpu.memory_space<vmem>>, vector<16x32xf32>
      %c0_177 = arith.constant 0 : index
      %c0_178 = arith.constant 0 : index
      %372 = vector.load %arg22[%c0_177, %c0_178] : memref<16x32xf32, #tpu.memory_space<vmem>>, vector<16x32xf32>
      tpu.vector_store %arg22[%c0_177, %c0_178], %371 {strides = array<i32>} : memref<16x32xf32, #tpu.memory_space<vmem>>, vector<16x32xf32>,
    } else {
    }
    %c0 = arith.constant 0 : index
    %c0_2 = arith.constant 0 : index
    %6 = vector.load %arg22[%c0, %c0_2] : memref<16x32xf32, #tpu.memory_space<vmem>>, vector<16x32xf32>
    %7 = tpu.iota {dimensions = array<i32: 0>} : vector<8x8xi32>
    %8 = tpu.iota {dimensions = array<i32: 1>} : vector<8x8xi32>
    %c3_i32 = arith.constant 3 : i32
    %9 = arith.muli %c3_i32, %arg0 : i32
    %c5_i32 = arith.constant 5 : i32
    %10 = arith.addi %c5_i32, %9 : i32
    %c1_i32_3 = arith.constant 1 : i32
    %11 = arith.subi %c1_i32_3, %arg0 : i32
    %c8_i32 = arith.constant 8 : i32
    %12 = arith.muli %11, %c8_i32 : i32
    %13 = vector.broadcast %12 : i32 to vector<8x8xi32>
    %14 = arith.addi %7, %13 : vector<8x8xi32>
    %15 = vector.broadcast %10 : i32 to vector<8x8xi32>
    %16 = arith.cmpi slt, %8, %15 : vector<8x8xi32>
    %17 = arith.cmpi sle, %8, %14 : vector<8x8xi32>
    %18 = arith.andi %16, %17 : vector<8x8xi1>
    %cst = arith.constant 0.000000e+00 : f32
    %cst_4 = arith.constant -1.000000e+30 : f32
    %19 = vector.broadcast %cst : f32 to vector<8x8xf32>
    %20 = vector.broadcast %cst_4 : f32 to vector<8x8xf32>
    %21 = arith.select %18, %19, %20 : vector<8x8xi1>, vector<8x8xf32>
    %22 = vector.shape_cast %21 : vector<8x8xf32> to vector<1x8x8xf32>
    %c0_5 = arith.constant 0 : index
    %c0_6 = arith.constant 0 : index
    %c0_7 = arith.constant 0 : index
    %c0_8 = arith.constant 0 : index
    %23 = vector.load %arg5[%c0_5, %c0_6, %c0_7, %c0_8] : memref<1x2x1x32xf32, #tpu.memory_space<vmem>>, vector<1x1x1x32xf32>
    %24 = vector.shape_cast %23 : vector<1x1x1x32xf32> to vector<1x32xf32>
    %c0_9 = arith.constant 0 : index
    %c0_10 = arith.constant 0 : index
    %c0_11 = arith.constant 0 : index
    %c0_12 = arith.constant 0 : index
    %25 = vector.load %arg6[%c0_9, %c0_10, %c0_11, %c0_12] : memref<1x2x1x32xf32, #tpu.memory_space<vmem>>, vector<1x1x1x32xf32>
    %26 = vector.shape_cast %25 : vector<1x1x1x32xf32> to vector<1x32xf32>
    %cst_13 = arith.constant dense<0.000000e+00> : vector<16xf32>
    %27 = vector.multi_reduction <add>, %6, %cst_13 [1] : vector<16x32xf32> to vector<16xf32>
    %28 = vector.shape_cast %27 : vector<16xf32> to vector<16x1xf32>
    %cst_14 = arith.constant 3.200000e+01 : f32
    %29 = vector.broadcast %cst_14 : f32 to vector<16x1xf32>
    %30 = arith.divf %28, %29 : vector<16x1xf32>
    %31 = vector.broadcast %30 : vector<16x1xf32> to vector<16x32xf32>
    %32 = arith.subf %6, %31 : vector<16x32xf32>
    %33 = arith.mulf %32, %32 : vector<16x32xf32>
    %cst_15 = arith.constant dense<0.000000e+00> : vector<16xf32>
    %34 = vector.multi_reduction <add>, %33, %cst_15 [1] : vector<16x32xf32> to vector<16xf32>
    %35 = vector.shape_cast %34 : vector<16xf32> to vector<16x1xf32>
    %cst_16 = arith.constant 3.200000e+01 : f32
    %36 = vector.broadcast %cst_16 : f32 to vector<16x1xf32>
    %37 = arith.divf %35, %36 : vector<16x1xf32>
    %cst_17 = arith.constant 9.99999974E-6 : f32
    %38 = vector.broadcast %cst_17 : f32 to vector<16x1xf32>
    %39 = arith.addf %37, %38 : vector<16x1xf32>
    %40 = math.rsqrt %39 : vector<16x1xf32>
    %41 = vector.broadcast %40 : vector<16x1xf32> to vector<16x32xf32>
    %42 = arith.mulf %32, %41 : vector<16x32xf32>
    %43 = vector.broadcast %24 : vector<1x32xf32> to vector<16x32xf32>
    %44 = arith.mulf %42, %43 : vector<16x32xf32>
    %45 = vector.broadcast %26 : vector<1x32xf32> to vector<16x32xf32>
    %46 = arith.addf %44, %45 : vector<16x32xf32>
    %47 = arith.truncf %46 : vector<16x32xf32> to vector<16x32xbf16>
    %c0_18 = arith.constant 0 : index
    %c0_19 = arith.constant 0 : index
    %c0_20 = arith.constant 0 : index
    %c0_21 = arith.constant 0 : index
    %48 = vector.load %arg7[%c0_18, %c0_19, %c0_20, %c0_21] : memref<1x2x32x96xbf16, #tpu.memory_space<vmem>>, vector<1x1x32x96xbf16>
    %49 = vector.shape_cast %48 : vector<1x1x32x96xbf16> to vector<32x96xbf16>
    %cst_22 = arith.constant dense<0.000000e+00> : vector<16x96xf32>
    %50 = tpu.matmul %47, %49, %cst_22 {dimension_numbers = #tpu.dot_dimension_numbers<[1], [0], [0], [1], [0, 0, 1, 1], [], []>} : vector<16x32xbf16>, vector<32x96xbf16>, vector<16x96xf32> -> vector<16x96xf32>
    %c0_23 = arith.constant 0 : index
    %c0_24 = arith.constant 0 : index
    %c0_25 = arith.constant 0 : index
    %c0_26 = arith.constant 0 : index
    %51 = vector.load %arg8[%c0_23, %c0_24, %c0_25, %c0_26] : memref<1x2x1x96xf32, #tpu.memory_space<vmem>>, vector<1x1x1x96xf32>
    %52 = vector.shape_cast %51 : vector<1x1x1x96xf32> to vector<1x96xf32>
    %53 = vector.broadcast %52 : vector<1x96xf32> to vector<16x96xf32>
    %54 = arith.addf %50, %53 : vector<16x96xf32>
    %55 = vector.extract_strided_slice %54 {offsets = [0, 0], sizes = [16, 8], strides = [1, 1]} : vector<16x96xf32> to vector<16x8xf32>
    %56 = vector.shape_cast %55 : vector<16x8xf32> to vector<2x8x8xf32>
    %57 = vector.extract_strided_slice %54 {offsets = [0, 8], sizes = [16, 8], strides = [1, 1]} : vector<16x96xf32> to vector<16x8xf32>
    %58 = vector.shape_cast %57 : vector<16x8xf32> to vector<2x8x8xf32>
    %59 = vector.extract_strided_slice %54 {offsets = [0, 16], sizes = [16, 8], strides = [1, 1]} : vector<16x96xf32> to vector<16x8xf32>
    %60 = vector.shape_cast %59 : vector<16x8xf32> to vector<2x8x8xf32>
    %61 = vector.extract_strided_slice %54 {offsets = [0, 24], sizes = [16, 8], strides = [1, 1]} : vector<16x96xf32> to vector<16x8xf32>
    %62 = vector.shape_cast %61 : vector<16x8xf32> to vector<2x8x8xf32>
    %63 = tpu.concatenate %56, %58, %60, %62 in 0 : vector<2x8x8xf32>, vector<2x8x8xf32>, vector<2x8x8xf32>, vector<2x8x8xf32> -> vector<8x8x8xf32>
    %64 = vector.extract_strided_slice %54 {offsets = [0, 32], sizes = [16, 8], strides = [1, 1]} : vector<16x96xf32> to vector<16x8xf32>
    %65 = vector.shape_cast %64 : vector<16x8xf32> to vector<2x8x8xf32>
    %66 = vector.extract_strided_slice %54 {offsets = [0, 40], sizes = [16, 8], strides = [1, 1]} : vector<16x96xf32> to vector<16x8xf32>
    %67 = vector.shape_cast %66 : vector<16x8xf32> to vector<2x8x8xf32>
    %68 = vector.extract_strided_slice %54 {offsets = [0, 48], sizes = [16, 8], strides = [1, 1]} : vector<16x96xf32> to vector<16x8xf32>
    %69 = vector.shape_cast %68 : vector<16x8xf32> to vector<2x8x8xf32>
    %70 = vector.extract_strided_slice %54 {offsets = [0, 56], sizes = [16, 8], strides = [1, 1]} : vector<16x96xf32> to vector<16x8xf32>
    %71 = vector.shape_cast %70 : vector<16x8xf32> to vector<2x8x8xf32>
    %72 = tpu.concatenate %65, %67, %69, %71 in 0 : vector<2x8x8xf32>, vector<2x8x8xf32>, vector<2x8x8xf32>, vector<2x8x8xf32> -> vector<8x8x8xf32>
    %73 = vector.extract_strided_slice %54 {offsets = [0, 64], sizes = [16, 8], strides = [1, 1]} : vector<16x96xf32> to vector<16x8xf32>
    %74 = vector.shape_cast %73 : vector<16x8xf32> to vector<2x8x8xf32>
    %75 = vector.extract_strided_slice %54 {offsets = [0, 72], sizes = [16, 8], strides = [1, 1]} : vector<16x96xf32> to vector<16x8xf32>
    %76 = vector.shape_cast %75 : vector<16x8xf32> to vector<2x8x8xf32>
    %77 = vector.extract_strided_slice %54 {offsets = [0, 80], sizes = [16, 8], strides = [1, 1]} : vector<16x96xf32> to vector<16x8xf32>
    %78 = vector.shape_cast %77 : vector<16x8xf32> to vector<2x8x8xf32>
    %79 = vector.extract_strided_slice %54 {offsets = [0, 88], sizes = [16, 8], strides = [1, 1]} : vector<16x96xf32> to vector<16x8xf32>
    %80 = vector.shape_cast %79 : vector<16x8xf32> to vector<2x8x8xf32>
    %81 = tpu.concatenate %74, %76, %78, %80 in 0 : vector<2x8x8xf32>, vector<2x8x8xf32>, vector<2x8x8xf32>, vector<2x8x8xf32> -> vector<8x8x8xf32>
    %82 = arith.truncf %63 : vector<8x8x8xf32> to vector<8x8x8xbf16>
    %83 = arith.truncf %72 : vector<8x8x8xf32> to vector<8x8x8xbf16>
    "tpu.trace_start"() <{level = 10 : i32, message = "bqd,bkd->bqk"}> : () -> ()
    %cst_27 = arith.constant dense<0.000000e+00> : vector<8x8x8xf32>
    %84 = tpu.matmul %82, %83, %cst_27 {dimension_numbers = #tpu.dot_dimension_numbers<[2], [2], [1], [1], [0, 0, 0, 1, 1, 1], [0], [0]>} : vector<8x8x8xbf16>, vector<8x8x8xbf16>, vector<8x8x8xf32> -> vector<8x8x8xf32>
    "tpu.trace_stop"() : () -> ()
    %85 = vector.broadcast %22 : vector<1x8x8xf32> to vector<8x8x8xf32>
    %86 = arith.addf %84, %85 : vector<8x8x8xf32>
    %cst_28 = arith.constant dense<0xFF800000> : vector<8x8xf32>
    %87 = vector.multi_reduction <maximumf>, %86, %cst_28 [2] : vector<8x8x8xf32> to vector<8x8xf32>
    %88 = vector.shape_cast %87 : vector<8x8xf32> to vector<8x8x1xf32>
    %89 = vector.broadcast %88 : vector<8x8x1xf32> to vector<8x8x8xf32>
    %90 = arith.subf %86, %89 : vector<8x8x8xf32>
    %91 = math.exp %90 : vector<8x8x8xf32>
    %cst_29 = arith.constant dense<0.000000e+00> : vector<8x8xf32>
    %92 = vector.multi_reduction <add>, %91, %cst_29 [2] : vector<8x8x8xf32> to vector<8x8xf32>
    %93 = vector.shape_cast %92 : vector<8x8xf32> to vector<8x8x1xf32>
    %94 = tpu.reciprocal %93 {approx = true} : vector<8x8x1xf32> -> vector<8x8x1xf32>
    %95 = vector.broadcast %94 : vector<8x8x1xf32> to vector<8x8x8xf32>
    %96 = arith.mulf %91, %95 : vector<8x8x8xf32>
    %97 = arith.truncf %96 : vector<8x8x8xf32> to vector<8x8x8xbf16>
    %98 = arith.truncf %81 : vector<8x8x8xf32> to vector<8x8x8xbf16>
    "tpu.trace_start"() <{level = 10 : i32, message = "bqk,bkd->bqd"}> : () -> ()
    %cst_30 = arith.constant dense<0.000000e+00> : vector<8x8x8xf32>
    %99 = tpu.matmul %97, %98, %cst_30 {dimension_numbers = #tpu.dot_dimension_numbers<[2], [1], [1], [2], [0, 0, 0, 1, 1, 2], [0], [0]>} : vector<8x8x8xbf16>, vector<8x8x8xbf16>, vector<8x8x8xf32> -> vector<8x8x8xf32>
    "tpu.trace_stop"() : () -> ()
    %100 = vector.extract_strided_slice %99 {offsets = [0, 0, 0], sizes = [2, 8, 8], strides = [1, 1, 1]} : vector<8x8x8xf32> to vector<2x8x8xf32>
    %101 = vector.shape_cast %100 : vector<2x8x8xf32> to vector<16x8xf32>
    %102 = vector.extract_strided_slice %99 {offsets = [2, 0, 0], sizes = [2, 8, 8], strides = [1, 1, 1]} : vector<8x8x8xf32> to vector<2x8x8xf32>
    %103 = vector.shape_cast %102 : vector<2x8x8xf32> to vector<16x8xf32>
    %104 = vector.extract_strided_slice %99 {offsets = [4, 0, 0], sizes = [2, 8, 8], strides = [1, 1, 1]} : vector<8x8x8xf32> to vector<2x8x8xf32>
    %105 = vector.shape_cast %104 : vector<2x8x8xf32> to vector<16x8xf32>
    %106 = vector.extract_strided_slice %99 {offsets = [6, 0, 0], sizes = [2, 8, 8], strides = [1, 1, 1]} : vector<8x8x8xf32> to vector<2x8x8xf32>
    %107 = vector.shape_cast %106 : vector<2x8x8xf32> to vector<16x8xf32>
    %108 = tpu.concatenate %101, %103, %105, %107 in 1 : vector<16x8xf32>, vector<16x8xf32>, vector<16x8xf32>, vector<16x8xf32> -> vector<16x32xf32>
    %109 = arith.truncf %108 : vector<16x32xf32> to vector<16x32xbf16>
    %c0_31 = arith.constant 0 : index
    %c0_32 = arith.constant 0 : index
    %c0_33 = arith.constant 0 : index
    %c0_34 = arith.constant 0 : index
    %110 = vector.load %arg9[%c0_31, %c0_32, %c0_33, %c0_34] : memref<1x2x32x32xbf16, #tpu.memory_space<vmem>>, vector<1x1x32x32xbf16>
    %111 = vector.shape_cast %110 : vector<1x1x32x32xbf16> to vector<32x32xbf16>
    %cst_35 = arith.constant dense<0.000000e+00> : vector<16x32xf32>
    %112 = tpu.matmul %109, %111, %cst_35 {dimension_numbers = #tpu.dot_dimension_numbers<[1], [0], [0], [1], [0, 0, 1, 1], [], []>} : vector<16x32xbf16>, vector<32x32xbf16>, vector<16x32xf32> -> vector<16x32xf32>
    %c0_36 = arith.constant 0 : index
    %c0_37 = arith.constant 0 : index
    %c0_38 = arith.constant 0 : index
    %c0_39 = arith.constant 0 : index
    %113 = vector.load %arg10[%c0_36, %c0_37, %c0_38, %c0_39] : memref<1x2x1x32xf32, #tpu.memory_space<vmem>>, vector<1x1x1x32xf32>
    %114 = vector.shape_cast %113 : vector<1x1x1x32xf32> to vector<1x32xf32>
    %115 = vector.broadcast %114 : vector<1x32xf32> to vector<16x32xf32>
    %116 = arith.addf %112, %115 : vector<16x32xf32>
    %117 = arith.addf %6, %116 : vector<16x32xf32>
    %c0_40 = arith.constant 0 : index
    %c0_41 = arith.constant 0 : index
    %c0_42 = arith.constant 0 : index
    %c0_43 = arith.constant 0 : index
    %118 = vector.load %arg11[%c0_40, %c0_41, %c0_42, %c0_43] : memref<1x2x1x32xf32, #tpu.memory_space<vmem>>, vector<1x1x1x32xf32>
    %119 = vector.shape_cast %118 : vector<1x1x1x32xf32> to vector<1x32xf32>
    %c0_44 = arith.constant 0 : index
    %c0_45 = arith.constant 0 : index
    %c0_46 = arith.constant 0 : index
    %c0_47 = arith.constant 0 : index
    %120 = vector.load %arg12[%c0_44, %c0_45, %c0_46, %c0_47] : memref<1x2x1x32xf32, #tpu.memory_space<vmem>>, vector<1x1x1x32xf32>
    %121 = vector.shape_cast %120 : vector<1x1x1x32xf32> to vector<1x32xf32>
    %cst_48 = arith.constant dense<0.000000e+00> : vector<16xf32>
    %122 = vector.multi_reduction <add>, %117, %cst_48 [1] : vector<16x32xf32> to vector<16xf32>
    %123 = vector.shape_cast %122 : vector<16xf32> to vector<16x1xf32>
    %cst_49 = arith.constant 3.200000e+01 : f32
    %124 = vector.broadcast %cst_49 : f32 to vector<16x1xf32>
    %125 = arith.divf %123, %124 : vector<16x1xf32>
    %126 = vector.broadcast %125 : vector<16x1xf32> to vector<16x32xf32>
    %127 = arith.subf %117, %126 : vector<16x32xf32>
    %128 = arith.mulf %127, %127 : vector<16x32xf32>
    %cst_50 = arith.constant dense<0.000000e+00> : vector<16xf32>
    %129 = vector.multi_reduction <add>, %128, %cst_50 [1] : vector<16x32xf32> to vector<16xf32>
    %130 = vector.shape_cast %129 : vector<16xf32> to vector<16x1xf32>
    %cst_51 = arith.constant 3.200000e+01 : f32
    %131 = vector.broadcast %cst_51 : f32 to vector<16x1xf32>
    %132 = arith.divf %130, %131 : vector<16x1xf32>
    %cst_52 = arith.constant 9.99999974E-6 : f32
    %133 = vector.broadcast %cst_52 : f32 to vector<16x1xf32>
    %134 = arith.addf %132, %133 : vector<16x1xf32>
    %135 = math.rsqrt %134 : vector<16x1xf32>
    %136 = vector.broadcast %135 : vector<16x1xf32> to vector<16x32xf32>
    %137 = arith.mulf %127, %136 : vector<16x32xf32>
    %138 = vector.broadcast %119 : vector<1x32xf32> to vector<16x32xf32>
    %139 = arith.mulf %137, %138 : vector<16x32xf32>
    %140 = vector.broadcast %121 : vector<1x32xf32> to vector<16x32xf32>
    %141 = arith.addf %139, %140 : vector<16x32xf32>
    %142 = arith.truncf %141 : vector<16x32xf32> to vector<16x32xbf16>
    %c0_53 = arith.constant 0 : index
    %c0_54 = arith.constant 0 : index
    %c0_55 = arith.constant 0 : index
    %c0_56 = arith.constant 0 : index
    %143 = vector.load %arg13[%c0_53, %c0_54, %c0_55, %c0_56] : memref<1x2x32x128xbf16, #tpu.memory_space<vmem>>, vector<1x1x32x128xbf16>
    %144 = vector.shape_cast %143 : vector<1x1x32x128xbf16> to vector<32x128xbf16>
    %cst_57 = arith.constant dense<0.000000e+00> : vector<16x128xf32>
    %145 = tpu.matmul %142, %144, %cst_57 {dimension_numbers = #tpu.dot_dimension_numbers<[1], [0], [0], [1], [0, 0, 1, 1], [], []>} : vector<16x32xbf16>, vector<32x128xbf16>, vector<16x128xf32> -> vector<16x128xf32>
    %c0_58 = arith.constant 0 : index
    %c0_59 = arith.constant 0 : index
    %c0_60 = arith.constant 0 : index
    %c0_61 = arith.constant 0 : index
    %146 = vector.load %arg14[%c0_58, %c0_59, %c0_60, %c0_61] : memref<1x2x1x128xf32, #tpu.memory_space<vmem>>, vector<1x1x1x128xf32>
    %147 = vector.shape_cast %146 : vector<1x1x1x128xf32> to vector<1x128xf32>
    %148 = vector.broadcast %147 : vector<1x128xf32> to vector<16x128xf32>
    %149 = arith.addf %145, %148 : vector<16x128xf32>
    %cst_62 = arith.constant 5.000000e-01 : f32
    %150 = vector.broadcast %cst_62 : f32 to vector<16x128xf32>
    %151 = arith.mulf %150, %149 : vector<16x128xf32>
    %cst_63 = arith.constant 4.471500e-02 : f32
    %152 = vector.broadcast %cst_63 : f32 to vector<16x128xf32>
    %153 = arith.mulf %152, %149 : vector<16x128xf32>
    %154 = arith.mulf %153, %149 : vector<16x128xf32>
    %155 = arith.mulf %154, %149 : vector<16x128xf32>
    %156 = arith.addf %149, %155 : vector<16x128xf32>
    %cst_64 = arith.constant 0.797884583 : f32
    %157 = vector.broadcast %cst_64 : f32 to vector<16x128xf32>
    %158 = arith.mulf %157, %156 : vector<16x128xf32>
    %159 = math.tanh %158 : vector<16x128xf32>
    %cst_65 = arith.constant 1.000000e+00 : f32
    %160 = vector.broadcast %cst_65 : f32 to vector<16x128xf32>
    %161 = arith.addf %160, %159 : vector<16x128xf32>
    %162 = arith.mulf %151, %161 : vector<16x128xf32>
    %163 = arith.truncf %162 : vector<16x128xf32> to vector<16x128xbf16>
    %c0_66 = arith.constant 0 : index
    %c0_67 = arith.constant 0 : index
    %c0_68 = arith.constant 0 : index
    %c0_69 = arith.constant 0 : index
    %164 = vector.load %arg15[%c0_66, %c0_67, %c0_68, %c0_69] : memref<1x2x128x32xbf16, #tpu.memory_space<vmem>>, vector<1x1x128x32xbf16>
    %165 = vector.shape_cast %164 : vector<1x1x128x32xbf16> to vector<128x32xbf16>
    %cst_70 = arith.constant dense<0.000000e+00> : vector<16x32xf32>
    %166 = tpu.matmul %163, %165, %cst_70 {dimension_numbers = #tpu.dot_dimension_numbers<[1], [0], [0], [1], [0, 0, 1, 1], [], []>} : vector<16x128xbf16>, vector<128x32xbf16>, vector<16x32xf32> -> vector<16x32xf32>
    %c0_71 = arith.constant 0 : index
    %c0_72 = arith.constant 0 : index
    %c0_73 = arith.constant 0 : index
    %c0_74 = arith.constant 0 : index
    %167 = vector.load %arg16[%c0_71, %c0_72, %c0_73, %c0_74] : memref<1x2x1x32xf32, #tpu.memory_space<vmem>>, vector<1x1x1x32xf32>
    %168 = vector.shape_cast %167 : vector<1x1x1x32xf32> to vector<1x32xf32>
    %169 = vector.broadcast %168 : vector<1x32xf32> to vector<16x32xf32>
    %170 = arith.addf %166, %169 : vector<16x32xf32>
    %171 = arith.addf %117, %170 : vector<16x32xf32>
    %c0_75 = arith.constant 0 : index
    %c1 = arith.constant 1 : index
    %c0_76 = arith.constant 0 : index
    %c0_77 = arith.constant 0 : index
    %172 = vector.load %arg5[%c0_75, %c1, %c0_76, %c0_77] : memref<1x2x1x32xf32, #tpu.memory_space<vmem>>, vector<1x1x1x32xf32>
    %173 = vector.shape_cast %172 : vector<1x1x1x32xf32> to vector<1x32xf32>
    %c0_78 = arith.constant 0 : index
    %c1_79 = arith.constant 1 : index
    %c0_80 = arith.constant 0 : index
    %c0_81 = arith.constant 0 : index
    %174 = vector.load %arg6[%c0_78, %c1_79, %c0_80, %c0_81] : memref<1x2x1x32xf32, #tpu.memory_space<vmem>>, vector<1x1x1x32xf32>
    %175 = vector.shape_cast %174 : vector<1x1x1x32xf32> to vector<1x32xf32>
    %cst_82 = arith.constant dense<0.000000e+00> : vector<16xf32>
    %176 = vector.multi_reduction <add>, %171, %cst_82 [1] : vector<16x32xf32> to vector<16xf32>
    %177 = vector.shape_cast %176 : vector<16xf32> to vector<16x1xf32>
    %cst_83 = arith.constant 3.200000e+01 : f32
    %178 = vector.broadcast %cst_83 : f32 to vector<16x1xf32>
    %179 = arith.divf %177, %178 : vector<16x1xf32>
    %180 = vector.broadcast %179 : vector<16x1xf32> to vector<16x32xf32>
    %181 = arith.subf %171, %180 : vector<16x32xf32>
    %182 = arith.mulf %181, %181 : vector<16x32xf32>
    %cst_84 = arith.constant dense<0.000000e+00> : vector<16xf32>
    %183 = vector.multi_reduction <add>, %182, %cst_84 [1] : vector<16x32xf32> to vector<16xf32>
    %184 = vector.shape_cast %183 : vector<16xf32> to vector<16x1xf32>
    %cst_85 = arith.constant 3.200000e+01 : f32
    %185 = vector.broadcast %cst_85 : f32 to vector<16x1xf32>
    %186 = arith.divf %184, %185 : vector<16x1xf32>
    %cst_86 = arith.constant 9.99999974E-6 : f32
    %187 = vector.broadcast %cst_86 : f32 to vector<16x1xf32>
    %188 = arith.addf %186, %187 : vector<16x1xf32>
    %189 = math.rsqrt %188 : vector<16x1xf32>
    %190 = vector.broadcast %189 : vector<16x1xf32> to vector<16x32xf32>
    %191 = arith.mulf %181, %190 : vector<16x32xf32>
    %192 = vector.broadcast %173 : vector<1x32xf32> to vector<16x32xf32>
    %193 = arith.mulf %191, %192 : vector<16x32xf32>
    %194 = vector.broadcast %175 : vector<1x32xf32> to vector<16x32xf32>
    %195 = arith.addf %193, %194 : vector<16x32xf32>
    %196 = arith.truncf %195 : vector<16x32xf32> to vector<16x32xbf16>
    %c0_87 = arith.constant 0 : index
    %c1_88 = arith.constant 1 : index
    %c0_89 = arith.constant 0 : index
    %c0_90 = arith.constant 0 : index
    %197 = vector.load %arg7[%c0_87, %c1_88, %c0_89, %c0_90] : memref<1x2x32x96xbf16, #tpu.memory_space<vmem>>, vector<1x1x32x96xbf16>
    %198 = vector.shape_cast %197 : vector<1x1x32x96xbf16> to vector<32x96xbf16>
    %cst_91 = arith.constant dense<0.000000e+00> : vector<16x96xf32>
    %199 = tpu.matmul %196, %198, %cst_91 {dimension_numbers = #tpu.dot_dimension_numbers<[1], [0], [0], [1], [0, 0, 1, 1], [], []>} : vector<16x32xbf16>, vector<32x96xbf16>, vector<16x96xf32> -> vector<16x96xf32>
    %c0_92 = arith.constant 0 : index
    %c1_93 = arith.constant 1 : index
    %c0_94 = arith.constant 0 : index
    %c0_95 = arith.constant 0 : index
    %200 = vector.load %arg8[%c0_92, %c1_93, %c0_94, %c0_95] : memref<1x2x1x96xf32, #tpu.memory_space<vmem>>, vector<1x1x1x96xf32>
    %201 = vector.shape_cast %200 : vector<1x1x1x96xf32> to vector<1x96xf32>
    %202 = vector.broadcast %201 : vector<1x96xf32> to vector<16x96xf32>
    %203 = arith.addf %199, %202 : vector<16x96xf32>
    %204 = vector.extract_strided_slice %203 {offsets = [0, 0], sizes = [16, 8], strides = [1, 1]} : vector<16x96xf32> to vector<16x8xf32>
    %205 = vector.shape_cast %204 : vector<16x8xf32> to vector<2x8x8xf32>
    %206 = vector.extract_strided_slice %203 {offsets = [0, 8], sizes = [16, 8], strides = [1, 1]} : vector<16x96xf32> to vector<16x8xf32>
    %207 = vector.shape_cast %206 : vector<16x8xf32> to vector<2x8x8xf32>
    %208 = vector.extract_strided_slice %203 {offsets = [0, 16], sizes = [16, 8], strides = [1, 1]} : vector<16x96xf32> to vector<16x8xf32>
    %209 = vector.shape_cast %208 : vector<16x8xf32> to vector<2x8x8xf32>
    %210 = vector.extract_strided_slice %203 {offsets = [0, 24], sizes = [16, 8], strides = [1, 1]} : vector<16x96xf32> to vector<16x8xf32>
    %211 = vector.shape_cast %210 : vector<16x8xf32> to vector<2x8x8xf32>
    %212 = tpu.concatenate %205, %207, %209, %211 in 0 : vector<2x8x8xf32>, vector<2x8x8xf32>, vector<2x8x8xf32>, vector<2x8x8xf32> -> vector<8x8x8xf32>
    %213 = vector.extract_strided_slice %203 {offsets = [0, 32], sizes = [16, 8], strides = [1, 1]} : vector<16x96xf32> to vector<16x8xf32>
    %214 = vector.shape_cast %213 : vector<16x8xf32> to vector<2x8x8xf32>
    %215 = vector.extract_strided_slice %203 {offsets = [0, 40], sizes = [16, 8], strides = [1, 1]} : vector<16x96xf32> to vector<16x8xf32>
    %216 = vector.shape_cast %215 : vector<16x8xf32> to vector<2x8x8xf32>
    %217 = vector.extract_strided_slice %203 {offsets = [0, 48], sizes = [16, 8], strides = [1, 1]} : vector<16x96xf32> to vector<16x8xf32>
    %218 = vector.shape_cast %217 : vector<16x8xf32> to vector<2x8x8xf32>
    %219 = vector.extract_strided_slice %203 {offsets = [0, 56], sizes = [16, 8], strides = [1, 1]} : vector<16x96xf32> to vector<16x8xf32>
    %220 = vector.shape_cast %219 : vector<16x8xf32> to vector<2x8x8xf32>
    %221 = tpu.concatenate %214, %216, %218, %220 in 0 : vector<2x8x8xf32>, vector<2x8x8xf32>, vector<2x8x8xf32>, vector<2x8x8xf32> -> vector<8x8x8xf32>
    %222 = vector.extract_strided_slice %203 {offsets = [0, 64], sizes = [16, 8], strides = [1, 1]} : vector<16x96xf32> to vector<16x8xf32>
    %223 = vector.shape_cast %222 : vector<16x8xf32> to vector<2x8x8xf32>
    %224 = vector.extract_strided_slice %203 {offsets = [0, 72], sizes = [16, 8], strides = [1, 1]} : vector<16x96xf32> to vector<16x8xf32>
    %225 = vector.shape_cast %224 : vector<16x8xf32> to vector<2x8x8xf32>
    %226 = vector.extract_strided_slice %203 {offsets = [0, 80], sizes = [16, 8], strides = [1, 1]} : vector<16x96xf32> to vector<16x8xf32>
    %227 = vector.shape_cast %226 : vector<16x8xf32> to vector<2x8x8xf32>
    %228 = vector.extract_strided_slice %203 {offsets = [0, 88], sizes = [16, 8], strides = [1, 1]} : vector<16x96xf32> to vector<16x8xf32>
    %229 = vector.shape_cast %228 : vector<16x8xf32> to vector<2x8x8xf32>
    %230 = tpu.concatenate %223, %225, %227, %229 in 0 : vector<2x8x8xf32>, vector<2x8x8xf32>, vector<2x8x8xf32>, vector<2x8x8xf32> -> vector<8x8x8xf32>
    %231 = arith.truncf %212 : vector<8x8x8xf32> to vector<8x8x8xbf16>
    %232 = arith.truncf %221 : vector<8x8x8xf32> to vector<8x8x8xbf16>
    "tpu.trace_start"() <{level = 10 : i32, message = "bqd,bkd->bqk"}> : () -> ()
    %cst_96 = arith.constant dense<0.000000e+00> : vector<8x8x8xf32>
    %233 = tpu.matmul %231, %232, %cst_96 {dimension_numbers = #tpu.dot_dimension_numbers<[2], [2], [1], [1], [0, 0, 0, 1, 1, 1], [0], [0]>} : vector<8x8x8xbf16>, vector<8x8x8xbf16>, vector<8x8x8xf32> -> vector<8x8x8xf32>
    "tpu.trace_stop"() : () -> ()
    %234 = vector.broadcast %22 : vector<1x8x8xf32> to vector<8x8x8xf32>
    %235 = arith.addf %233, %234 : vector<8x8x8xf32>
    %cst_97 = arith.constant dense<0xFF800000> : vector<8x8xf32>
    %236 = vector.multi_reduction <maximumf>, %235, %cst_97 [2] : vector<8x8x8xf32> to vector<8x8xf32>
    %237 = vector.shape_cast %236 : vector<8x8xf32> to vector<8x8x1xf32>
    %238 = vector.broadcast %237 : vector<8x8x1xf32> to vector<8x8x8xf32>
    %239 = arith.subf %235, %238 : vector<8x8x8xf32>
    %240 = math.exp %239 : vector<8x8x8xf32>
    %cst_98 = arith.constant dense<0.000000e+00> : vector<8x8xf32>
    %241 = vector.multi_reduction <add>, %240, %cst_98 [2] : vector<8x8x8xf32> to vector<8x8xf32>
    %242 = vector.shape_cast %241 : vector<8x8xf32> to vector<8x8x1xf32>
    %243 = tpu.reciprocal %242 {approx = true} : vector<8x8x1xf32> -> vector<8x8x1xf32>
    %244 = vector.broadcast %243 : vector<8x8x1xf32> to vector<8x8x8xf32>
    %245 = arith.mulf %240, %244 : vector<8x8x8xf32>
    %246 = arith.truncf %245 : vector<8x8x8xf32> to vector<8x8x8xbf16>
    %247 = arith.truncf %230 : vector<8x8x8xf32> to vector<8x8x8xbf16>
    "tpu.trace_start"() <{level = 10 : i32, message = "bqk,bkd->bqd"}> : () -> ()
    %cst_99 = arith.constant dense<0.000000e+00> : vector<8x8x8xf32>
    %248 = tpu.matmul %246, %247, %cst_99 {dimension_numbers = #tpu.dot_dimension_numbers<[2], [1], [1], [2], [0, 0, 0, 1, 1, 2], [0], [0]>} : vector<8x8x8xbf16>, vector<8x8x8xbf16>, vector<8x8x8xf32> -> vector<8x8x8xf32>
    "tpu.trace_stop"() : () -> ()
    %249 = vector.extract_strided_slice %248 {offsets = [0, 0, 0], sizes = [2, 8, 8], strides = [1, 1, 1]} : vector<8x8x8xf32> to vector<2x8x8xf32>
    %250 = vector.shape_cast %249 : vector<2x8x8xf32> to vector<16x8xf32>
    %251 = vector.extract_strided_slice %248 {offsets = [2, 0, 0], sizes = [2, 8, 8], strides = [1, 1, 1]} : vector<8x8x8xf32> to vector<2x8x8xf32>
    %252 = vector.shape_cast %251 : vector<2x8x8xf32> to vector<16x8xf32>
    %253 = vector.extract_strided_slice %248 {offsets = [4, 0, 0], sizes = [2, 8, 8], strides = [1, 1, 1]} : vector<8x8x8xf32> to vector<2x8x8xf32>
    %254 = vector.shape_cast %253 : vector<2x8x8xf32> to vector<16x8xf32>
    %255 = vector.extract_strided_slice %248 {offsets = [6, 0, 0], sizes = [2, 8, 8], strides = [1, 1, 1]} : vector<8x8x8xf32> to vector<2x8x8xf32>
    %256 = vector.shape_cast %255 : vector<2x8x8xf32> to vector<16x8xf32>
    %257 = tpu.concatenate %250, %252, %254, %256 in 1 : vector<16x8xf32>, vector<16x8xf32>, vector<16x8xf32>, vector<16x8xf32> -> vector<16x32xf32>
    %258 = arith.truncf %257 : vector<16x32xf32> to vector<16x32xbf16>
    %c0_100 = arith.constant 0 : index
    %c1_101 = arith.constant 1 : index
    %c0_102 = arith.constant 0 : index
    %c0_103 = arith.constant 0 : index
    %259 = vector.load %arg9[%c0_100, %c1_101, %c0_102, %c0_103] : memref<1x2x32x32xbf16, #tpu.memory_space<vmem>>, vector<1x1x32x32xbf16>
    %260 = vector.shape_cast %259 : vector<1x1x32x32xbf16> to vector<32x32xbf16>
    %cst_104 = arith.constant dense<0.000000e+00> : vector<16x32xf32>
    %261 = tpu.matmul %258, %260, %cst_104 {dimension_numbers = #tpu.dot_dimension_numbers<[1], [0], [0], [1], [0, 0, 1, 1], [], []>} : vector<16x32xbf16>, vector<32x32xbf16>, vector<16x32xf32> -> vector<16x32xf32>
    %c0_105 = arith.constant 0 : index
    %c1_106 = arith.constant 1 : index
    %c0_107 = arith.constant 0 : index
    %c0_108 = arith.constant 0 : index
    %262 = vector.load %arg10[%c0_105, %c1_106, %c0_107, %c0_108] : memref<1x2x1x32xf32, #tpu.memory_space<vmem>>, vector<1x1x1x32xf32>
    %263 = vector.shape_cast %262 : vector<1x1x1x32xf32> to vector<1x32xf32>
    %264 = vector.broadcast %263 : vector<1x32xf32> to vector<16x32xf32>
    %265 = arith.addf %261, %264 : vector<16x32xf32>
    %266 = arith.addf %171, %265 : vector<16x32xf32>
    %c0_109 = arith.constant 0 : index
    %c1_110 = arith.constant 1 : index
    %c0_111 = arith.constant 0 : index
    %c0_112 = arith.constant 0 : index
    %267 = vector.load %arg11[%c0_109, %c1_110, %c0_111, %c0_112] : memref<1x2x1x32xf32, #tpu.memory_space<vmem>>, vector<1x1x1x32xf32>
    %268 = vector.shape_cast %267 : vector<1x1x1x32xf32> to vector<1x32xf32>
    %c0_113 = arith.constant 0 : index
    %c1_114 = arith.constant 1 : index
    %c0_115 = arith.constant 0 : index
    %c0_116 = arith.constant 0 : index
    %269 = vector.load %arg12[%c0_113, %c1_114, %c0_115, %c0_116] : memref<1x2x1x32xf32, #tpu.memory_space<vmem>>, vector<1x1x1x32xf32>
    %270 = vector.shape_cast %269 : vector<1x1x1x32xf32> to vector<1x32xf32>
    %cst_117 = arith.constant dense<0.000000e+00> : vector<16xf32>
    %271 = vector.multi_reduction <add>, %266, %cst_117 [1] : vector<16x32xf32> to vector<16xf32>
    %272 = vector.shape_cast %271 : vector<16xf32> to vector<16x1xf32>
    %cst_118 = arith.constant 3.200000e+01 : f32
    %273 = vector.broadcast %cst_118 : f32 to vector<16x1xf32>
    %274 = arith.divf %272, %273 : vector<16x1xf32>
    %275 = vector.broadcast %274 : vector<16x1xf32> to vector<16x32xf32>
    %276 = arith.subf %266, %275 : vector<16x32xf32>
    %277 = arith.mulf %276, %276 : vector<16x32xf32>
    %cst_119 = arith.constant dense<0.000000e+00> : vector<16xf32>
    %278 = vector.multi_reduction <add>, %277, %cst_119 [1] : vector<16x32xf32> to vector<16xf32>
    %279 = vector.shape_cast %278 : vector<16xf32> to vector<16x1xf32>
    %cst_120 = arith.constant 3.200000e+01 : f32
    %280 = vector.broadcast %cst_120 : f32 to vector<16x1xf32>
    %281 = arith.divf %279, %280 : vector<16x1xf32>
    %cst_121 = arith.constant 9.99999974E-6 : f32
    %282 = vector.broadcast %cst_121 : f32 to vector<16x1xf32>
    %283 = arith.addf %281, %282 : vector<16x1xf32>
    %284 = math.rsqrt %283 : vector<16x1xf32>
    %285 = vector.broadcast %284 : vector<16x1xf32> to vector<16x32xf32>
    %286 = arith.mulf %276, %285 : vector<16x32xf32>
    %287 = vector.broadcast %268 : vector<1x32xf32> to vector<16x32xf32>
    %288 = arith.mulf %286, %287 : vector<16x32xf32>
    %289 = vector.broadcast %270 : vector<1x32xf32> to vector<16x32xf32>
    %290 = arith.addf %288, %289 : vector<16x32xf32>
    %291 = arith.truncf %290 : vector<16x32xf32> to vector<16x32xbf16>
    %c0_122 = arith.constant 0 : index
    %c1_123 = arith.constant 1 : index
    %c0_124 = arith.constant 0 : index
    %c0_125 = arith.constant 0 : index
    %292 = vector.load %arg13[%c0_122, %c1_123, %c0_124, %c0_125] : memref<1x2x32x128xbf16, #tpu.memory_space<vmem>>, vector<1x1x32x128xbf16>
    %293 = vector.shape_cast %292 : vector<1x1x32x128xbf16> to vector<32x128xbf16>
    %cst_126 = arith.constant dense<0.000000e+00> : vector<16x128xf32>
    %294 = tpu.matmul %291, %293, %cst_126 {dimension_numbers = #tpu.dot_dimension_numbers<[1], [0], [0], [1], [0, 0, 1, 1], [], []>} : vector<16x32xbf16>, vector<32x128xbf16>, vector<16x128xf32> -> vector<16x128xf32>
    %c0_127 = arith.constant 0 : index
    %c1_128 = arith.constant 1 : index
    %c0_129 = arith.constant 0 : index
    %c0_130 = arith.constant 0 : index
    %295 = vector.load %arg14[%c0_127, %c1_128, %c0_129, %c0_130] : memref<1x2x1x128xf32, #tpu.memory_space<vmem>>, vector<1x1x1x128xf32>
    %296 = vector.shape_cast %295 : vector<1x1x1x128xf32> to vector<1x128xf32>
    %297 = vector.broadcast %296 : vector<1x128xf32> to vector<16x128xf32>
    %298 = arith.addf %294, %297 : vector<16x128xf32>
    %cst_131 = arith.constant 5.000000e-01 : f32
    %299 = vector.broadcast %cst_131 : f32 to vector<16x128xf32>
    %300 = arith.mulf %299, %298 : vector<16x128xf32>
    %cst_132 = arith.constant 4.471500e-02 : f32
    %301 = vector.broadcast %cst_132 : f32 to vector<16x128xf32>
    %302 = arith.mulf %301, %298 : vector<16x128xf32>
    %303 = arith.mulf %302, %298 : vector<16x128xf32>
    %304 = arith.mulf %303, %298 : vector<16x128xf32>
    %305 = arith.addf %298, %304 : vector<16x128xf32>
    %cst_133 = arith.constant 0.797884583 : f32
    %306 = vector.broadcast %cst_133 : f32 to vector<16x128xf32>
    %307 = arith.mulf %306, %305 : vector<16x128xf32>
    %308 = math.tanh %307 : vector<16x128xf32>
    %cst_134 = arith.constant 1.000000e+00 : f32
    %309 = vector.broadcast %cst_134 : f32 to vector<16x128xf32>
    %310 = arith.addf %309, %308 : vector<16x128xf32>
    %311 = arith.mulf %300, %310 : vector<16x128xf32>
    %312 = arith.truncf %311 : vector<16x128xf32> to vector<16x128xbf16>
    %c0_135 = arith.constant 0 : index
    %c1_136 = arith.constant 1 : index
    %c0_137 = arith.constant 0 : index
    %c0_138 = arith.constant 0 : index
    %313 = vector.load %arg15[%c0_135, %c1_136, %c0_137, %c0_138] : memref<1x2x128x32xbf16, #tpu.memory_space<vmem>>, vector<1x1x128x32xbf16>
    %314 = vector.shape_cast %313 : vector<1x1x128x32xbf16> to vector<128x32xbf16>
    %cst_139 = arith.constant dense<0.000000e+00> : vector<16x32xf32>
    %315 = tpu.matmul %312, %314, %cst_139 {dimension_numbers = #tpu.dot_dimension_numbers<[1], [0], [0], [1], [0, 0, 1, 1], [], []>} : vector<16x128xbf16>, vector<128x32xbf16>, vector<16x32xf32> -> vector<16x32xf32>
    %c0_140 = arith.constant 0 : index
    %c1_141 = arith.constant 1 : index
    %c0_142 = arith.constant 0 : index
    %c0_143 = arith.constant 0 : index
    %316 = vector.load %arg16[%c0_140, %c1_141, %c0_142, %c0_143] : memref<1x2x1x32xf32, #tpu.memory_space<vmem>>, vector<1x1x1x32xf32>
    %317 = vector.shape_cast %316 : vector<1x1x1x32xf32> to vector<1x32xf32>
    %318 = vector.broadcast %317 : vector<1x32xf32> to vector<16x32xf32>
    %319 = arith.addf %315, %318 : vector<16x32xf32>
    %320 = arith.addf %266, %319 : vector<16x32xf32>
    %c0_144 = arith.constant 0 : index
    %c0_145 = arith.constant 0 : index
    %321 = vector.load %arg22[%c0_144, %c0_145] : memref<16x32xf32, #tpu.memory_space<vmem>>, vector<16x32xf32>
    tpu.vector_store %arg22[%c0_144, %c0_145], %320 {strides = array<i32>} : memref<16x32xf32, #tpu.memory_space<vmem>>, vector<16x32xf32>,
    %c0_i32_146 = arith.constant 0 : i32
    %322 = arith.cmpi eq, %arg0, %c0_i32_146 : i32
    %323 = arith.extui %322 : i1 to i32
    %c0_i32_147 = arith.constant 0 : i32
    %324 = arith.cmpi ne, %323, %c0_i32_147 : i32
    scf.if %324 {
      %c0_175 = arith.constant 0 : index
      %c0_176 = arith.constant 0 : index
      %371 = tpu.strided_load %arg22[%c0_175, %c0_176] {strides = array<i32: 8, 1>} : memref<16x32xf32, #tpu.memory_space<vmem>>, vector<2x32xf32>
      %c0_177 = arith.constant 0 : index
      %c0_178 = arith.constant 0 : index
      %372 = vector.load %arg23[%c0_177, %c0_178] : memref<2x32xf32, #tpu.memory_space<vmem>>, vector<2x32xf32>
      tpu.vector_store %arg23[%c0_177, %c0_178], %371 {strides = array<i32>} : memref<2x32xf32, #tpu.memory_space<vmem>>, vector<2x32xf32>,
    } else {
    }
    %c1_i32_148 = arith.constant 1 : i32
    %325 = arith.cmpi eq, %arg0, %c1_i32_148 : i32
    %326 = arith.extui %325 : i1 to i32
    %c0_i32_149 = arith.constant 0 : i32
    %327 = arith.cmpi ne, %326, %c0_i32_149 : i32
    scf.if %327 {
      %c7 = arith.constant 7 : index
      %c0_175 = arith.constant 0 : index
      %371 = tpu.strided_load %arg22[%c7, %c0_175] {strides = array<i32: 8, 1>} : memref<16x32xf32, #tpu.memory_space<vmem>>, vector<2x32xf32>
      %c0_176 = arith.constant 0 : index
      %c0_177 = arith.constant 0 : index
      %372 = vector.load %arg23[%c0_176, %c0_177] : memref<2x32xf32, #tpu.memory_space<vmem>>, vector<2x32xf32>
      tpu.vector_store %arg23[%c0_176, %c0_177], %371 {strides = array<i32>} : memref<2x32xf32, #tpu.memory_space<vmem>>, vector<2x32xf32>,
    } else {
    }
    %c0_150 = arith.constant 0 : index
    %c0_151 = arith.constant 0 : index
    %328 = vector.load %arg23[%c0_150, %c0_151] : memref<2x32xf32, #tpu.memory_space<vmem>>, vector<2x32xf32>
    %c0_152 = arith.constant 0 : index
    %c0_153 = arith.constant 0 : index
    %c0_154 = arith.constant 0 : index
    %329 = vector.load %arg17[%c0_152, %c0_153, %c0_154] : memref<1x1x32xf32, #tpu.memory_space<vmem>>, vector<1x1x32xf32>
    %330 = vector.shape_cast %329 : vector<1x1x32xf32> to vector<1x32xf32>
    %c0_155 = arith.constant 0 : index
    %c0_156 = arith.constant 0 : index
    %c0_157 = arith.constant 0 : index
    %331 = vector.load %arg18[%c0_155, %c0_156, %c0_157] : memref<1x1x32xf32, #tpu.memory_space<vmem>>, vector<1x1x32xf32>
    %332 = vector.shape_cast %331 : vector<1x1x32xf32> to vector<1x32xf32>
    %cst_158 = arith.constant dense<0.000000e+00> : vector<2xf32>
    %333 = vector.multi_reduction <add>, %328, %cst_158 [1] : vector<2x32xf32> to vector<2xf32>
    %334 = vector.shape_cast %333 : vector<2xf32> to vector<2x1xf32>
    %cst_159 = arith.constant 3.200000e+01 : f32
    %335 = vector.broadcast %cst_159 : f32 to vector<2x1xf32>
    %336 = arith.divf %334, %335 : vector<2x1xf32>
    %337 = vector.broadcast %336 : vector<2x1xf32> to vector<2x32xf32>
    %338 = arith.subf %328, %337 : vector<2x32xf32>
    %339 = arith.mulf %338, %338 : vector<2x32xf32>
    %cst_160 = arith.constant dense<0.000000e+00> : vector<2xf32>
    %340 = vector.multi_reduction <add>, %339, %cst_160 [1] : vector<2x32xf32> to vector<2xf32>
    %341 = vector.shape_cast %340 : vector<2xf32> to vector<2x1xf32>
    %cst_161 = arith.constant 3.200000e+01 : f32
    %342 = vector.broadcast %cst_161 : f32 to vector<2x1xf32>
    %343 = arith.divf %341, %342 : vector<2x1xf32>
    %cst_162 = arith.constant 9.99999974E-6 : f32
    %344 = vector.broadcast %cst_162 : f32 to vector<2x1xf32>
    %345 = arith.addf %343, %344 : vector<2x1xf32>
    %346 = math.rsqrt %345 : vector<2x1xf32>
    %347 = vector.broadcast %346 : vector<2x1xf32> to vector<2x32xf32>
    %348 = arith.mulf %338, %347 : vector<2x32xf32>
    %349 = vector.broadcast %330 : vector<1x32xf32> to vector<2x32xf32>
    %350 = arith.mulf %348, %349 : vector<2x32xf32>
    %351 = vector.broadcast %332 : vector<1x32xf32> to vector<2x32xf32>
    %352 = arith.addf %350, %351 : vector<2x32xf32>
    %353 = arith.truncf %352 : vector<2x32xf32> to vector<2x32xbf16>
    %c0_163 = arith.constant 0 : index
    %c0_164 = arith.constant 0 : index
    %c0_165 = arith.constant 0 : index
    %354 = vector.load %arg19[%c0_163, %c0_164, %c0_165] : memref<1x32x32xbf16, #tpu.memory_space<vmem>>, vector<1x32x32xbf16>
    %355 = vector.shape_cast %354 : vector<1x32x32xbf16> to vector<32x32xbf16>
    %cst_166 = arith.constant dense<0.000000e+00> : vector<2x32xf32>
    %356 = tpu.matmul %353, %355, %cst_166 {dimension_numbers = #tpu.dot_dimension_numbers<[1], [0], [0], [1], [0, 0, 1, 1], [], []>} : vector<2x32xbf16>, vector<32x32xbf16>, vector<2x32xf32> -> vector<2x32xf32>
    %c0_167 = arith.constant 0 : index
    %c0_168 = arith.constant 0 : index
    %c0_169 = arith.constant 0 : index
    %357 = vector.load %arg20[%c0_167, %c0_168, %c0_169] : memref<1x1x32xf32, #tpu.memory_space<vmem>>, vector<1x1x32xf32>
    %358 = vector.shape_cast %357 : vector<1x1x32xf32> to vector<1x32xf32>
    %359 = vector.broadcast %358 : vector<1x32xf32> to vector<2x32xf32>
    %360 = arith.addf %356, %359 : vector<2x32xf32>
    %361 = arith.mulf %360, %360 : vector<2x32xf32>
    %cst_170 = arith.constant dense<0.000000e+00> : vector<2xf32>
    %362 = vector.multi_reduction <add>, %361, %cst_170 [1] : vector<2x32xf32> to vector<2xf32>
    %363 = vector.shape_cast %362 : vector<2xf32> to vector<2x1xf32>
    %cst_171 = arith.constant 1.000000e-24 : f32
    %364 = vector.broadcast %cst_171 : f32 to vector<2x1xf32>
    %365 = arith.maximumf %363, %364 : vector<2x1xf32>
    %366 = math.rsqrt %365 : vector<2x1xf32>
    %367 = vector.broadcast %366 : vector<2x1xf32> to vector<2x32xf32>
    %368 = arith.mulf %360, %367 : vector<2x32xf32>
    %369 = vector.shape_cast %368 : vector<2x32xf32> to vector<1x2x32xf32>
    %c0_172 = arith.constant 0 : index
    %c0_173 = arith.constant 0 : index
    %c0_174 = arith.constant 0 : index
    %370 = vector.load %arg21[%c0_172, %c0_173, %c0_174] : memref<1x2x32xf32, #tpu.memory_space<vmem>>, vector<1x2x32xf32>
    tpu.vector_store %arg21[%c0_172, %c0_173, %c0_174], %369 {strides = array<i32>} : memref<1x2x32xf32, #tpu.memory_space<vmem>>, vector<1x2x32xf32>,
    return
  }
  func.func @transform_0(%arg0: i32) -> (i32, i32) {
    %c0_i32 = arith.constant 0 : i32
    %c0_i32_0 = arith.constant 0 : i32
    %c0_i32_1 = arith.constant 0 : i32
    return %c0_i32, %c0_i32_0 : i32, i32
  }
  func.func @transform_1(%arg0: i32) -> (i32, i32) {
    %c0_i32 = arith.constant 0 : i32
    %c0_i32_0 = arith.constant 0 : i32
    %c0_i32_1 = arith.constant 0 : i32
    return %c0_i32, %c0_i32_0 : i32, i32
  }
  func.func @transform_2(%arg0: i32) -> (i32, i32) {
    %c0_i32 = arith.constant 0 : i32
    %c0_i32_0 = arith.constant 0 : i32
    %c0_i32_1 = arith.constant 0 : i32
    return %c0_i32, %c0_i32_0 : i32, i32
  }
  func.func @transform_3(%arg0: i32) -> (i32, i32) {
    %c0_i32 = arith.constant 0 : i32
    %c0_i32_0 = arith.constant 0 : i32
    %c0_i32_1 = arith.constant 0 : i32
    return %c0_i32, %c0_i32_0 : i32, i32
  }
  func.func @transform_4(%arg0: i32) -> (i32, i32, i32, i32) {
    %c0_i32 = arith.constant 0 : i32
    %c0_i32_0 = arith.constant 0 : i32
    %c0_i32_1 = arith.constant 0 : i32
    %c0_i32_2 = arith.constant 0 : i32
    return %arg0, %c0_i32, %c0_i32_0, %c0_i32_1 : i32, i32, i32, i32
  }
  func.func @transform_5(%arg0: i32) -> (i32, i32, i32, i32) {
    %c0_i32 = arith.constant 0 : i32
    %c0_i32_0 = arith.constant 0 : i32
    %c0_i32_1 = arith.constant 0 : i32
    %c0_i32_2 = arith.constant 0 : i32
    return %arg0, %c0_i32, %c0_i32_0, %c0_i32_1 : i32, i32, i32, i32
  }
  func.func @transform_6(%arg0: i32) -> (i32, i32, i32, i32) {
    %c0_i32 = arith.constant 0 : i32
    %c0_i32_0 = arith.constant 0 : i32
    %c0_i32_1 = arith.constant 0 : i32
    %c0_i32_2 = arith.constant 0 : i32
    return %arg0, %c0_i32, %c0_i32_0, %c0_i32_1 : i32, i32, i32, i32
  }
  func.func @transform_7(%arg0: i32) -> (i32, i32, i32, i32) {
    %c0_i32 = arith.constant 0 : i32
    %c0_i32_0 = arith.constant 0 : i32
    %c0_i32_1 = arith.constant 0 : i32
    %c0_i32_2 = arith.constant 0 : i32
    return %arg0, %c0_i32, %c0_i32_0, %c0_i32_1 : i32, i32, i32, i32
  }
  func.func @transform_8(%arg0: i32) -> (i32, i32, i32, i32) {
    %c0_i32 = arith.constant 0 : i32
    %c0_i32_0 = arith.constant 0 : i32
    %c0_i32_1 = arith.constant 0 : i32
    %c0_i32_2 = arith.constant 0 : i32
    return %arg0, %c0_i32, %c0_i32_0, %c0_i32_1 : i32, i32, i32, i32
  }
  func.func @transform_9(%arg0: i32) -> (i32, i32, i32, i32) {
    %c0_i32 = arith.constant 0 : i32
    %c0_i32_0 = arith.constant 0 : i32
    %c0_i32_1 = arith.constant 0 : i32
    %c0_i32_2 = arith.constant 0 : i32
    return %arg0, %c0_i32, %c0_i32_0, %c0_i32_1 : i32, i32, i32, i32
  }
  func.func @transform_10(%arg0: i32) -> (i32, i32, i32, i32) {
    %c0_i32 = arith.constant 0 : i32
    %c0_i32_0 = arith.constant 0 : i32
    %c0_i32_1 = arith.constant 0 : i32
    %c0_i32_2 = arith.constant 0 : i32
    return %arg0, %c0_i32, %c0_i32_0, %c0_i32_1 : i32, i32, i32, i32
  }
  func.func @transform_11(%arg0: i32) -> (i32, i32, i32, i32) {
    %c0_i32 = arith.constant 0 : i32
    %c0_i32_0 = arith.constant 0 : i32
    %c0_i32_1 = arith.constant 0 : i32
    %c0_i32_2 = arith.constant 0 : i32
    return %arg0, %c0_i32, %c0_i32_0, %c0_i32_1 : i32, i32, i32, i32
  }
  func.func @transform_12(%arg0: i32) -> (i32, i32, i32, i32) {
    %c0_i32 = arith.constant 0 : i32
    %c0_i32_0 = arith.constant 0 : i32
    %c0_i32_1 = arith.constant 0 : i32
    %c0_i32_2 = arith.constant 0 : i32
    return %arg0, %c0_i32, %c0_i32_0, %c0_i32_1 : i32, i32, i32, i32
  }
  func.func @transform_13(%arg0: i32) -> (i32, i32, i32, i32) {
    %c0_i32 = arith.constant 0 : i32
    %c0_i32_0 = arith.constant 0 : i32
    %c0_i32_1 = arith.constant 0 : i32
    %c0_i32_2 = arith.constant 0 : i32
    return %arg0, %c0_i32, %c0_i32_0, %c0_i32_1 : i32, i32, i32, i32
  }
  func.func @transform_14(%arg0: i32) -> (i32, i32, i32, i32) {
    %c0_i32 = arith.constant 0 : i32
    %c0_i32_0 = arith.constant 0 : i32
    %c0_i32_1 = arith.constant 0 : i32
    %c0_i32_2 = arith.constant 0 : i32
    return %arg0, %c0_i32, %c0_i32_0, %c0_i32_1 : i32, i32, i32, i32
  }
  func.func @transform_15(%arg0: i32) -> (i32, i32, i32, i32) {
    %c0_i32 = arith.constant 0 : i32
    %c0_i32_0 = arith.constant 0 : i32
    %c0_i32_1 = arith.constant 0 : i32
    %c0_i32_2 = arith.constant 0 : i32
    return %arg0, %c0_i32, %c0_i32_0, %c0_i32_1 : i32, i32, i32, i32
  }
  func.func @transform_16(%arg0: i32) -> (i32, i32, i32) {
    %c0_i32 = arith.constant 0 : i32
    %c0_i32_0 = arith.constant 0 : i32
    %c0_i32_1 = arith.constant 0 : i32
    return %arg0, %c0_i32, %c0_i32_0 : i32, i32, i32
  }
  func.func @transform_17(%arg0: i32) -> (i32, i32, i32) {
    %c0_i32 = arith.constant 0 : i32
    %c0_i32_0 = arith.constant 0 : i32
    %c0_i32_1 = arith.constant 0 : i32
    return %arg0, %c0_i32, %c0_i32_0 : i32, i32, i32
  }
  func.func @transform_18(%arg0: i32) -> (i32, i32, i32) {
    %c0_i32 = arith.constant 0 : i32
    %c0_i32_0 = arith.constant 0 : i32
    %c0_i32_1 = arith.constant 0 : i32
    return %arg0, %c0_i32, %c0_i32_0 : i32, i32, i32
  }
  func.func @transform_19(%arg0: i32) -> (i32, i32, i32) {
    %c0_i32 = arith.constant 0 : i32
    %c0_i32_0 = arith.constant 0 : i32
    %c0_i32_1 = arith.constant 0 : i32
    return %arg0, %c0_i32, %c0_i32_0 : i32, i32, i32
  }
  func.func @transform_20(%arg0: i32) -> (i32, i32, i32) {
    %c0_i32 = arith.constant 0 : i32
    %c0_i32_0 = arith.constant 0 : i32
    %c0_i32_1 = arith.constant 0 : i32
    return %arg0, %c0_i32, %c0_i32_0 : i32, i32, i32
  }
}

</mosaic_0001>

<llo_original>
// kernel: clip_forward.1
$region0: #{clip_forward.1}
  #allocation0 [shape = 'u32[]', space=smem, size = 0x4, offset = 0x4, fixed_abs, tag = 'smem constant byte address 0x4 - core index']
  #allocation1 [shape = 'u32[72,128]{1,0:T(1,128)}', space=vmem, size = 0x9000, scoped, tag = 'internal scratch']
  #allocation2 [shape = 'f32[16,32]{1,0:T(8,128)}', space=vmem, size = 0x2000, scoped, tag = 'scratch operand']
  #allocation3 [shape = 'f32[2,32]{1,0:T(2,128)}', space=vmem, size = 0x400, scoped, tag = 'scratch operand']
  %s0 = inlined_call_operand.vmem [shape: f32[16,256], index: 0, kind: input, shape index: {}]
  %s1 = inlined_call_operand.vmem [shape: f32[8,32], index: 1, kind: input, shape index: {}]
  %s2 = inlined_call_operand.vmem [shape: f32[16,32], index: 2, kind: input, shape index: {}]
  %s3 = inlined_call_operand.vmem [shape: bf16[256,32], index: 3, kind: input, shape index: {}]
  %s4 = inlined_call_operand.vmem [shape: f32[2,2,1,32], index: 4, kind: input, shape index: {}]
  %s5 = inlined_call_operand.vmem [shape: f32[2,2,1,32], index: 5, kind: input, shape index: {}]
  %s6 = inlined_call_operand.vmem [shape: bf16[2,2,32,96], index: 6, kind: input, shape index: {}]
  %s7 = inlined_call_operand.vmem [shape: f32[2,2,1,96], index: 7, kind: input, shape index: {}]
  %s8 = inlined_call_operand.vmem [shape: bf16[2,2,32,32], index: 8, kind: input, shape index: {}]
  %s9 = inlined_call_operand.vmem [shape: f32[2,2,1,32], index: 9, kind: input, shape index: {}]
  %s10 = inlined_call_operand.vmem [shape: f32[2,2,1,32], index: 10, kind: input, shape index: {}]
  %s11 = inlined_call_operand.vmem [shape: f32[2,2,1,32], index: 11, kind: input, shape index: {}]
  %s12 = inlined_call_operand.vmem [shape: bf16[2,2,32,128], index: 12, kind: input, shape index: {}]
  %s13 = inlined_call_operand.vmem [shape: f32[2,2,1,128], index: 13, kind: input, shape index: {}]
  %s14 = inlined_call_operand.vmem [shape: bf16[2,2,128,32], index: 14, kind: input, shape index: {}]
  %s15 = inlined_call_operand.vmem [shape: f32[2,2,1,32], index: 15, kind: input, shape index: {}]
  %s16 = inlined_call_operand.vmem [shape: f32[2,1,32], index: 16, kind: input, shape index: {}]
  %s17 = inlined_call_operand.vmem [shape: f32[2,1,32], index: 17, kind: input, shape index: {}]
  %s18 = inlined_call_operand.vmem [shape: bf16[2,32,32], index: 18, kind: input, shape index: {}]
  %s19 = inlined_call_operand.vmem [shape: f32[2,1,32], index: 19, kind: input, shape index: {}]
  %s20 = inlined_call_operand.vmem [shape: f32[2,2,32], index: 20, kind: output, shape index: {}]
  %s21 = sld [smem:[#allocation0]]
  $region129: #{clip_forward.1} parent=0
    _
  %s23 = ssub.s32 1, %s21
  %s24 = scalar_select 0, %s23, %s21
  loop: start=0, step=1, limit=4
  $region2: #{clip_forward.1} parent=0 // loop_pre_header
    _
  $region3: #{clip_forward.1} parent=0 // loop_header
    %s26 = sphi 0, %s30
    %p27 = scmp.ge.s32.totalorder %s26, 4
    %s34 = sphi 0, %s34
    %s36 = sphi 0, %s34
    %s37 = sphi 0, %s36
    %s51 = sphi 0, %s37
    %s55 = sphi 0, %s55
    %s57 = sphi 0, %s55
    %s58 = sphi 0, %s57
    %s72 = sphi 0, %s58
    %s76 = sphi 0, %s76
    %s78 = sphi 0, %s76
    %s79 = sphi 0, %s78
    %s93 = sphi 0, %s79
    %s97 = sphi 0, %s97
    %s99 = sphi 0, %s97
    %s100 = sphi 0, %s99
    %s114 = sphi 0, %s100
    %s120 = sphi 0, %s122
    %s123 = sphi 0, %s120
    %s124 = sphi 0, %s123
    %s140 = sphi 0, %s124
    %s146 = sphi 0, %s148
    %s149 = sphi 0, %s146
    %s150 = sphi 0, %s149
    %s166 = sphi 0, %s150
    %s172 = sphi 0, %s174
    %s175 = sphi 0, %s172
    %s176 = sphi 0, %s175
    %s192 = sphi 0, %s176
    %s198 = sphi 0, %s200
    %s201 = sphi 0, %s198
    %s202 = sphi 0, %s201
    %s218 = sphi 0, %s202
    %s224 = sphi 0, %s226
    %s227 = sphi 0, %s224
    %s228 = sphi 0, %s227
    %s244 = sphi 0, %s228
    %s250 = sphi 0, %s252
    %s253 = sphi 0, %s250
    %s254 = sphi 0, %s253
    %s270 = sphi 0, %s254
    %s276 = sphi 0, %s278
    %s279 = sphi 0, %s276
    %s280 = sphi 0, %s279
    %s296 = sphi 0, %s280
    %s302 = sphi 0, %s304
    %s305 = sphi 0, %s302
    %s306 = sphi 0, %s305
    %s322 = sphi 0, %s306
    %s328 = sphi 0, %s330
    %s331 = sphi 0, %s328
    %s332 = sphi 0, %s331
    %s348 = sphi 0, %s332
    %s354 = sphi 0, %s356
    %s357 = sphi 0, %s354
    %s358 = sphi 0, %s357
    %s374 = sphi 0, %s358
    %s380 = sphi 0, %s382
    %s383 = sphi 0, %s380
    %s384 = sphi 0, %s383
    %s400 = sphi 0, %s384
    %s406 = sphi 0, %s408
    %s409 = sphi 0, %s406
    %s410 = sphi 0, %s409
    %s426 = sphi 0, %s410
    %s432 = sphi 0, %s434
    %s435 = sphi 0, %s432
    %s436 = sphi 0, %s435
    %s452 = sphi 0, %s436
    %s458 = sphi 0, %s460
    %s461 = sphi 0, %s458
    %s462 = sphi 0, %s461
    %s478 = sphi 0, %s462
    %s484 = sphi 0, %s486
    %s487 = sphi 0, %s484
    %s488 = sphi 0, %s487
    %s504 = sphi 0, %s488
    %s510 = sphi 0, %s512
    %s513 = sphi 0, %s510
    %s514 = sphi 0, %s513
    %s530 = sphi 0, %s514
    %s536 = sphi 0, %s538
    %s539 = sphi 0, %s536
    %s540 = sphi 0, %s539
    %s556 = sphi 0, %s540
  $region4: #{clip_forward.1} parent=0 // loop_header_branch
    %29 = sbr.rel (%p27) target = $region8
  $region5: #{clip_forward.1} parent=0 // loop_body
    %s31 = ssub.s32 %s26, 1
    %s32 = ssub.s32 %s26, 2
    %s33 = sadd.s32 %s26, 1
    %s35 = sadd.s32 %s34, 1
    %p38 = scmp.eq.s32.totalorder %s26, 1
    %p39 = scmp.ne.s32.totalorder %s34, %s36
    %p40 = scmp.eq.s32.totalorder %s26, 0
    %p41 = por %p39, %p40
    %p42 = scmp.ne.s32.totalorder %s34, %s36
    %p43 = scmp.eq.s32.totalorder %s31, 1
    %p44 = por %p42, %p43
    %p45 = scmp.ne.s32.totalorder %s36, %s37
    %p46 = scmp.eq.s32.totalorder %s31, 0
    %p47 = por %p45, %p46
    %p48 = scmp.ne.s32.totalorder %s36, %s37
    %p49 = scmp.eq.s32.totalorder %s32, 1
    %p50 = por %p48, %p49
    %p52 = scmp.ne.s32.totalorder %s37, %s51
    %p53 = scmp.eq.s32.totalorder %s32, 0
    %p54 = por %p52, %p53
    %s56 = sadd.s32 %s55, 1
    %p59 = scmp.eq.s32.totalorder %s26, 1
    %p60 = scmp.ne.s32.totalorder %s55, %s57
    %p61 = scmp.eq.s32.totalorder %s26, 0
    %p62 = por %p60, %p61
    %p63 = scmp.ne.s32.totalorder %s55, %s57
    %p64 = scmp.eq.s32.totalorder %s31, 1
    %p65 = por %p63, %p64
    %p66 = scmp.ne.s32.totalorder %s57, %s58
    %p67 = scmp.eq.s32.totalorder %s31, 0
    %p68 = por %p66, %p67
    %p69 = scmp.ne.s32.totalorder %s57, %s58
    %p70 = scmp.eq.s32.totalorder %s32, 1
    %p71 = por %p69, %p70
    %p73 = scmp.ne.s32.totalorder %s58, %s72
    %p74 = scmp.eq.s32.totalorder %s32, 0
    %p75 = por %p73, %p74
    %s77 = sadd.s32 %s76, 1
    %p80 = scmp.eq.s32.totalorder %s26, 1
    %p81 = scmp.ne.s32.totalorder %s76, %s78
    %p82 = scmp.eq.s32.totalorder %s26, 0
    %p83 = por %p81, %p82
    %p84 = scmp.ne.s32.totalorder %s76, %s78
    %p85 = scmp.eq.s32.totalorder %s31, 1
    %p86 = por %p84, %p85
    %p87 = scmp.ne.s32.totalorder %s78, %s79
    %p88 = scmp.eq.s32.totalorder %s31, 0
    %p89 = por %p87, %p88
    %p90 = scmp.ne.s32.totalorder %s78, %s79
    %p91 = scmp.eq.s32.totalorder %s32, 1
    %p92 = por %p90, %p91
    %p94 = scmp.ne.s32.totalorder %s79, %s93
    %p95 = scmp.eq.s32.totalorder %s32, 0
    %p96 = por %p94, %p95
    %s98 = sadd.s32 %s97, 1
    %p101 = scmp.eq.s32.totalorder %s26, 1
    %p102 = scmp.ne.s32.totalorder %s97, %s99
    %p103 = scmp.eq.s32.totalorder %s26, 0
    %p104 = por %p102, %p103
    %p105 = scmp.ne.s32.totalorder %s97, %s99
    %p106 = scmp.eq.s32.totalorder %s31, 1
    %p107 = por %p105, %p106
    %p108 = scmp.ne.s32.totalorder %s99, %s100
    %p109 = scmp.eq.s32.totalorder %s31, 0
    %p110 = por %p108, %p109
    %p111 = scmp.ne.s32.totalorder %s99, %s100
    %p112 = scmp.eq.s32.totalorder %s32, 1
    %p113 = por %p111, %p112
    %p115 = scmp.ne.s32.totalorder %s100, %s114
    %p116 = scmp.eq.s32.totalorder %s32, 0
    %p117 = por %p115, %p116
    %s118 = ssub.s32 %s26, %s33
    %p119 = scmp.eq.s32.totalorder %s118, 0
    %s121 = sadd.s32 %s120, 1
    %s122 = scalar_select %p119, %s120, %s121
    %p125 = pneg %p119
    %p126 = scmp.eq.s32.totalorder %s26, 1
    %p127 = por %p125, %p126
    %p128 = scmp.ne.s32.totalorder %s120, %s123
    %p129 = scmp.eq.s32.totalorder %s26, 0
    %p130 = por %p128, %p129
    %p131 = scmp.ne.s32.totalorder %s120, %s123
    %p132 = scmp.eq.s32.totalorder %s31, 1
    %p133 = por %p131, %p132
    %p134 = scmp.ne.s32.totalorder %s123, %s124
    %p135 = scmp.eq.s32.totalorder %s31, 0
    %p136 = por %p134, %p135
    %p137 = scmp.ne.s32.totalorder %s123, %s124
    %p138 = scmp.eq.s32.totalorder %s32, 1
    %p139 = por %p137, %p138
    %p141 = scmp.ne.s32.totalorder %s124, %s140
    %p142 = scmp.eq.s32.totalorder %s32, 0
    %p143 = por %p141, %p142
    %s144 = ssub.s32 %s26, %s33
    %p145 = scmp.eq.s32.totalorder %s144, 0
    %s147 = sadd.s32 %s146, 1
    %s148 = scalar_select %p145, %s146, %s147
    %p151 = pneg %p145
    %p152 = scmp.eq.s32.totalorder %s26, 1
    %p153 = por %p151, %p152
    %p154 = scmp.ne.s32.totalorder %s146, %s149
    %p155 = scmp.eq.s32.totalorder %s26, 0
    %p156 = por %p154, %p155
    %p157 = scmp.ne.s32.totalorder %s146, %s149
    %p158 = scmp.eq.s32.totalorder %s31, 1
    %p159 = por %p157, %p158
    %p160 = scmp.ne.s32.totalorder %s149, %s150
    %p161 = scmp.eq.s32.totalorder %s31, 0
    %p162 = por %p160, %p161
    %p163 = scmp.ne.s32.totalorder %s149, %s150
    %p164 = scmp.eq.s32.totalorder %s32, 1
    %p165 = por %p163, %p164
    %p167 = scmp.ne.s32.totalorder %s150, %s166
    %p168 = scmp.eq.s32.totalorder %s32, 0
    %p169 = por %p167, %p168
    %s170 = ssub.s32 %s26, %s33
    %p171 = scmp.eq.s32.totalorder %s170, 0
    %s173 = sadd.s32 %s172, 1
    %s174 = scalar_select %p171, %s172, %s173
    %p177 = pneg %p171
    %p178 = scmp.eq.s32.totalorder %s26, 1
    %p179 = por %p177, %p178
    %p180 = scmp.ne.s32.totalorder %s172, %s175
    %p181 = scmp.eq.s32.totalorder %s26, 0
    %p182 = por %p180, %p181
    %p183 = scmp.ne.s32.totalorder %s172, %s175
    %p184 = scmp.eq.s32.totalorder %s31, 1
    %p185 = por %p183, %p184
    %p186 = scmp.ne.s32.totalorder %s175, %s176
    %p187 = scmp.eq.s32.totalorder %s31, 0
    %p188 = por %p186, %p187
    %p189 = scmp.ne.s32.totalorder %s175, %s176
    %p190 = scmp.eq.s32.totalorder %s32, 1
    %p191 = por %p189, %p190
    %p193 = scmp.ne.s32.totalorder %s176, %s192
    %p194 = scmp.eq.s32.totalorder %s32, 0
    %p195 = por %p193, %p194
    %s196 = ssub.s32 %s26, %s33
    %p197 = scmp.eq.s32.totalorder %s196, 0
    %s199 = sadd.s32 %s198, 1
    %s200 = scalar_select %p197, %s198, %s199
    %p203 = pneg %p197
    %p204 = scmp.eq.s32.totalorder %s26, 1
    %p205 = por %p203, %p204
    %p206 = scmp.ne.s32.totalorder %s198, %s201
    %p207 = scmp.eq.s32.totalorder %s26, 0
    %p208 = por %p206, %p207
    %p209 = scmp.ne.s32.totalorder %s198, %s201
    %p210 = scmp.eq.s32.totalorder %s31, 1
    %p211 = por %p209, %p210
    %p212 = scmp.ne.s32.totalorder %s201, %s202
    %p213 = scmp.eq.s32.totalorder %s31, 0
    %p214 = por %p212, %p213
    %p215 = scmp.ne.s32.totalorder %s201, %s202
    %p216 = scmp.eq.s32.totalorder %s32, 1
    %p217 = por %p215, %p216
    %p219 = scmp.ne.s32.totalorder %s202, %s218
    %p220 = scmp.eq.s32.totalorder %s32, 0
    %p221 = por %p219, %p220
    %s222 = ssub.s32 %s26, %s33
    %p223 = scmp.eq.s32.totalorder %s222, 0
    %s225 = sadd.s32 %s224, 1
    %s226 = scalar_select %p223, %s224, %s225
    %p229 = pneg %p223
    %p230 = scmp.eq.s32.totalorder %s26, 1
    %p231 = por %p229, %p230
    %p232 = scmp.ne.s32.totalorder %s224, %s227
    %p233 = scmp.eq.s32.totalorder %s26, 0
    %p234 = por %p232, %p233
    %p235 = scmp.ne.s32.totalorder %s224, %s227
    %p236 = scmp.eq.s32.totalorder %s31, 1
    %p237 = por %p235, %p236
    %p238 = scmp.ne.s32.totalorder %s227, %s228
    %p239 = scmp.eq.s32.totalorder %s31, 0
    %p240 = por %p238, %p239
    %p241 = scmp.ne.s32.totalorder %s227, %s228
    %p242 = scmp.eq.s32.totalorder %s32, 1
    %p243 = por %p241, %p242
    %p245 = scmp.ne.s32.totalorder %s228, %s244
    %p246 = scmp.eq.s32.totalorder %s32, 0
    %p247 = por %p245, %p246
    %s248 = ssub.s32 %s26, %s33
    %p249 = scmp.eq.s32.totalorder %s248, 0
    %s251 = sadd.s32 %s250, 1
    %s252 = scalar_select %p249, %s250, %s251
    %p255 = pneg %p249
    %p256 = scmp.eq.s32.totalorder %s26, 1
    %p257 = por %p255, %p256
    %p258 = scmp.ne.s32.totalorder %s250, %s253
    %p259 = scmp.eq.s32.totalorder %s26, 0
    %p260 = por %p258, %p259
    %p261 = scmp.ne.s32.totalorder %s250, %s253
    %p262 = scmp.eq.s32.totalorder %s31, 1
    %p263 = por %p261, %p262
    %p264 = scmp.ne.s32.totalorder %s253, %s254
    %p265 = scmp.eq.s32.totalorder %s31, 0
    %p266 = por %p264, %p265
    %p267 = scmp.ne.s32.totalorder %s253, %s254
    %p268 = scmp.eq.s32.totalorder %s32, 1
    %p269 = por %p267, %p268
    %p271 = scmp.ne.s32.totalorder %s254, %s270
    %p272 = scmp.eq.s32.totalorder %s32, 0
    %p273 = por %p271, %p272
    %s274 = ssub.s32 %s26, %s33
    %p275 = scmp.eq.s32.totalorder %s274, 0
    %s277 = sadd.s32 %s276, 1
    %s278 = scalar_select %p275, %s276, %s277
    %p281 = pneg %p275
    %p282 = scmp.eq.s32.totalorder %s26, 1
    %p283 = por %p281, %p282
    %p284 = scmp.ne.s32.totalorder %s276, %s279
    %p285 = scmp.eq.s32.totalorder %s26, 0
    %p286 = por %p284, %p285
    %p287 = scmp.ne.s32.totalorder %s276, %s279
    %p288 = scmp.eq.s32.totalorder %s31, 1
    %p289 = por %p287, %p288
    %p290 = scmp.ne.s32.totalorder %s279, %s280
    %p291 = scmp.eq.s32.totalorder %s31, 0
    %p292 = por %p290, %p291
    %p293 = scmp.ne.s32.totalorder %s279, %s280
    %p294 = scmp.eq.s32.totalorder %s32, 1
    %p295 = por %p293, %p294
    %p297 = scmp.ne.s32.totalorder %s280, %s296
    %p298 = scmp.eq.s32.totalorder %s32, 0
    %p299 = por %p297, %p298
    %s300 = ssub.s32 %s26, %s33
    %p301 = scmp.eq.s32.totalorder %s300, 0
    %s303 = sadd.s32 %s302, 1
    %s304 = scalar_select %p301, %s302, %s303
    %p307 = pneg %p301
    %p308 = scmp.eq.s32.totalorder %s26, 1
    %p309 = por %p307, %p308
    %p310 = scmp.ne.s32.totalorder %s302, %s305
    %p311 = scmp.eq.s32.totalorder %s26, 0
    %p312 = por %p310, %p311
    %p313 = scmp.ne.s32.totalorder %s302, %s305
    %p314 = scmp.eq.s32.totalorder %s31, 1
    %p315 = por %p313, %p314
    %p316 = scmp.ne.s32.totalorder %s305, %s306
    %p317 = scmp.eq.s32.totalorder %s31, 0
    %p318 = por %p316, %p317
    %p319 = scmp.ne.s32.totalorder %s305, %s306
    %p320 = scmp.eq.s32.totalorder %s32, 1
    %p321 = por %p319, %p320
    %p323 = scmp.ne.s32.totalorder %s306, %s322
    %p324 = scmp.eq.s32.totalorder %s32, 0
    %p325 = por %p323, %p324
    %s326 = ssub.s32 %s26, %s33
    %p327 = scmp.eq.s32.totalorder %s326, 0
    %s329 = sadd.s32 %s328, 1
    %s330 = scalar_select %p327, %s328, %s329
    %p333 = pneg %p327
    %p334 = scmp.eq.s32.totalorder %s26, 1
    %p335 = por %p333, %p334
    %p336 = scmp.ne.s32.totalorder %s328, %s331
    %p337 = scmp.eq.s32.totalorder %s26, 0
    %p338 = por %p336, %p337
    %p339 = scmp.ne.s32.totalorder %s328, %s331
    %p340 = scmp.eq.s32.totalorder %s31, 1
    %p341 = por %p339, %p340
    %p342 = scmp.ne.s32.totalorder %s331, %s332
    %p343 = scmp.eq.s32.totalorder %s31, 0
    %p344 = por %p342, %p343
    %p345 = scmp.ne.s32.totalorder %s331, %s332
    %p346 = scmp.eq.s32.totalorder %s32, 1
    %p347 = por %p345, %p346
    %p349 = scmp.ne.s32.totalorder %s332, %s348
    %p350 = scmp.eq.s32.totalorder %s32, 0
    %p351 = por %p349, %p350
    %s352 = ssub.s32 %s26, %s33
    %p353 = scmp.eq.s32.totalorder %s352, 0
    %s355 = sadd.s32 %s354, 1
    %s356 = scalar_select %p353, %s354, %s355
    %p359 = pneg %p353
    %p360 = scmp.eq.s32.totalorder %s26, 1
    %p361 = por %p359, %p360
    %p362 = scmp.ne.s32.totalorder %s354, %s357
    %p363 = scmp.eq.s32.totalorder %s26, 0
    %p364 = por %p362, %p363
    %p365 = scmp.ne.s32.totalorder %s354, %s357
    %p366 = scmp.eq.s32.totalorder %s31, 1
    %p367 = por %p365, %p366
    %p368 = scmp.ne.s32.totalorder %s357, %s358
    %p369 = scmp.eq.s32.totalorder %s31, 0
    %p370 = por %p368, %p369
    %p371 = scmp.ne.s32.totalorder %s357, %s358
    %p372 = scmp.eq.s32.totalorder %s32, 1
    %p373 = por %p371, %p372
    %p375 = scmp.ne.s32.totalorder %s358, %s374
    %p376 = scmp.eq.s32.totalorder %s32, 0
    %p377 = por %p375, %p376
    %s378 = ssub.s32 %s26, %s33
    %p379 = scmp.eq.s32.totalorder %s378, 0
    %s381 = sadd.s32 %s380, 1
    %s382 = scalar_select %p379, %s380, %s381
    %p385 = pneg %p379
    %p386 = scmp.eq.s32.totalorder %s26, 1
    %p387 = por %p385, %p386
    %p388 = scmp.ne.s32.totalorder %s380, %s383
    %p389 = scmp.eq.s32.totalorder %s26, 0
    %p390 = por %p388, %p389
    %p391 = scmp.ne.s32.totalorder %s380, %s383
    %p392 = scmp.eq.s32.totalorder %s31, 1
    %p393 = por %p391, %p392
    %p394 = scmp.ne.s32.totalorder %s383, %s384
    %p395 = scmp.eq.s32.totalorder %s31, 0
    %p396 = por %p394, %p395
    %p397 = scmp.ne.s32.totalorder %s383, %s384
    %p398 = scmp.eq.s32.totalorder %s32, 1
    %p399 = por %p397, %p398
    %p401 = scmp.ne.s32.totalorder %s384, %s400
    %p402 = scmp.eq.s32.totalorder %s32, 0
    %p403 = por %p401, %p402
    %s404 = ssub.s32 %s26, %s33
    %p405 = scmp.eq.s32.totalorder %s404, 0
    %s407 = sadd.s32 %s406, 1
    %s408 = scalar_select %p405, %s406, %s407
    %p411 = pneg %p405
    %p412 = scmp.eq.s32.totalorder %s26, 1
    %p413 = por %p411, %p412
    %p414 = scmp.ne.s32.totalorder %s406, %s409
    %p415 = scmp.eq.s32.totalorder %s26, 0
    %p416 = por %p414, %p415
    %p417 = scmp.ne.s32.totalorder %s406, %s409
    %p418 = scmp.eq.s32.totalorder %s31, 1
    %p419 = por %p417, %p418
    %p420 = scmp.ne.s32.totalorder %s409, %s410
    %p421 = scmp.eq.s32.totalorder %s31, 0
    %p422 = por %p420, %p421
    %p423 = scmp.ne.s32.totalorder %s409, %s410
    %p424 = scmp.eq.s32.totalorder %s32, 1
    %p425 = por %p423, %p424
    %p427 = scmp.ne.s32.totalorder %s410, %s426
    %p428 = scmp.eq.s32.totalorder %s32, 0
    %p429 = por %p427, %p428
    %s430 = ssub.s32 %s26, %s33
    %p431 = scmp.eq.s32.totalorder %s430, 0
    %s433 = sadd.s32 %s432, 1
    %s434 = scalar_select %p431, %s432, %s433
    %p437 = pneg %p431
    %p438 = scmp.eq.s32.totalorder %s26, 1
    %p439 = por %p437, %p438
    %p440 = scmp.ne.s32.totalorder %s432, %s435
    %p441 = scmp.eq.s32.totalorder %s26, 0
    %p442 = por %p440, %p441
    %p443 = scmp.ne.s32.totalorder %s432, %s435
    %p444 = scmp.eq.s32.totalorder %s31, 1
    %p445 = por %p443, %p444
    %p446 = scmp.ne.s32.totalorder %s435, %s436
    %p447 = scmp.eq.s32.totalorder %s31, 0
    %p448 = por %p446, %p447
    %p449 = scmp.ne.s32.totalorder %s435, %s436
    %p450 = scmp.eq.s32.totalorder %s32, 1
    %p451 = por %p449, %p450
    %p453 = scmp.ne.s32.totalorder %s436, %s452
    %p454 = scmp.eq.s32.totalorder %s32, 0
    %p455 = por %p453, %p454
    %s456 = ssub.s32 %s26, %s33
    %p457 = scmp.eq.s32.totalorder %s456, 0
    %s459 = sadd.s32 %s458, 1
    %s460 = scalar_select %p457, %s458, %s459
    %p463 = pneg %p457
    %p464 = scmp.eq.s32.totalorder %s26, 1
    %p465 = por %p463, %p464
    %p466 = scmp.ne.s32.totalorder %s458, %s461
    %p467 = scmp.eq.s32.totalorder %s26, 0
    %p468 = por %p466, %p467
    %p469 = scmp.ne.s32.totalorder %s458, %s461
    %p470 = scmp.eq.s32.totalorder %s31, 1
    %p471 = por %p469, %p470
    %p472 = scmp.ne.s32.totalorder %s461, %s462
    %p473 = scmp.eq.s32.totalorder %s31, 0
    %p474 = por %p472, %p473
    %p475 = scmp.ne.s32.totalorder %s461, %s462
    %p476 = scmp.eq.s32.totalorder %s32, 1
    %p477 = por %p475, %p476
    %p479 = scmp.ne.s32.totalorder %s462, %s478
    %p480 = scmp.eq.s32.totalorder %s32, 0
    %p481 = por %p479, %p480
    %s482 = ssub.s32 %s26, %s33
    %p483 = scmp.eq.s32.totalorder %s482, 0
    %s485 = sadd.s32 %s484, 1
    %s486 = scalar_select %p483, %s484, %s485
    %p489 = pneg %p483
    %p490 = scmp.eq.s32.totalorder %s26, 1
    %p491 = por %p489, %p490
    %p492 = scmp.ne.s32.totalorder %s484, %s487
    %p493 = scmp.eq.s32.totalorder %s26, 0
    %p494 = por %p492, %p493
    %p495 = scmp.ne.s32.totalorder %s484, %s487
    %p496 = scmp.eq.s32.totalorder %s31, 1
    %p497 = por %p495, %p496
    %p498 = scmp.ne.s32.totalorder %s487, %s488
    %p499 = scmp.eq.s32.totalorder %s31, 0
    %p500 = por %p498, %p499
    %p501 = scmp.ne.s32.totalorder %s487, %s488
    %p502 = scmp.eq.s32.totalorder %s32, 1
    %p503 = por %p501, %p502
    %p505 = scmp.ne.s32.totalorder %s488, %s504
    %p506 = scmp.eq.s32.totalorder %s32, 0
    %p507 = por %p505, %p506
    %s508 = ssub.s32 %s26, %s33
    %p509 = scmp.eq.s32.totalorder %s508, 0
    %s511 = sadd.s32 %s510, 1
    %s512 = scalar_select %p509, %s510, %s511
    %p515 = pneg %p509
    %p516 = scmp.eq.s32.totalorder %s26, 1
    %p517 = por %p515, %p516
    %p518 = scmp.ne.s32.totalorder %s510, %s513
    %p519 = scmp.eq.s32.totalorder %s26, 0
    %p520 = por %p518, %p519
    %p521 = scmp.ne.s32.totalorder %s510, %s513
    %p522 = scmp.eq.s32.totalorder %s31, 1
    %p523 = por %p521, %p522
    %p524 = scmp.ne.s32.totalorder %s513, %s514
    %p525 = scmp.eq.s32.totalorder %s31, 0
    %p526 = por %p524, %p525
    %p527 = scmp.ne.s32.totalorder %s513, %s514
    %p528 = scmp.eq.s32.totalorder %s32, 1
    %p529 = por %p527, %p528
    %p531 = scmp.ne.s32.totalorder %s514, %s530
    %p532 = scmp.eq.s32.totalorder %s32, 0
    %p533 = por %p531, %p532
    %s534 = ssub.s32 %s26, %s33
    %p535 = scmp.eq.s32.totalorder %s534, 0
    %s537 = sadd.s32 %s536, 1
    %s538 = scalar_select %p535, %s536, %s537
    %p541 = pneg %p535
    %p542 = scmp.eq.s32.totalorder %s26, 1
    %p543 = por %p541, %p542
    %p544 = scmp.ne.s32.totalorder %s536, %s539
    %p545 = scmp.eq.s32.totalorder %s26, 0
    %p546 = por %p544, %p545
    %p547 = scmp.ne.s32.totalorder %s536, %s539
    %p548 = scmp.eq.s32.totalorder %s31, 1
    %p549 = por %p547, %p548
    %p550 = scmp.ne.s32.totalorder %s539, %s540
    %p551 = scmp.eq.s32.totalorder %s31, 0
    %p552 = por %p550, %p551
    %p553 = scmp.ne.s32.totalorder %s539, %s540
    %p554 = scmp.eq.s32.totalorder %s32, 1
    %p555 = por %p553, %p554
    %p557 = scmp.ne.s32.totalorder %s540, %s556
    %p558 = scmp.eq.s32.totalorder %s32, 0
    %p559 = por %p557, %p558
    %p560 = scmp.le.s32.totalorder 1, %s26
    %p561 = scmp.lt.s32.totalorder %s26, 3
    %p562 = pnand %p560, %p561
    %p563 = pneg %p562
    // Predicated region
    $region9: #{clip_forward.1} parent=5 // pred_check
      _
    $region10: #{clip_forward.1} parent=5 // pred_check_branch
      %565 = sbr.rel (%p562) target = $region12
    $region11: #{clip_forward.1} parent=5 // pred_region
      %s566 = ssub.s32 %s26, 1
      // Predicated region
      $region13: #{clip_forward.1} parent=11 // pred_check
        %p567 = pneg %p47
      $region14: #{clip_forward.1} parent=11 // pred_check_branch
        %569 = sbr.rel (%p567) target = $region16
      $region15: #{clip_forward.1} parent=11 // pred_region
        _
      $region16: #{clip_forward.1} parent=11 // pred_fallthru
        _
      // Predicated region
      $region17: #{clip_forward.1} parent=11 // pred_check
        %p570 = pneg %p68
      $region18: #{clip_forward.1} parent=11 // pred_check_branch
        %572 = sbr.rel (%p570) target = $region20
      $region19: #{clip_forward.1} parent=11 // pred_region
        _
      $region20: #{clip_forward.1} parent=11 // pred_fallthru
        _
      // Predicated region
      $region21: #{clip_forward.1} parent=11 // pred_check
        %p573 = pneg %p89
      $region22: #{clip_forward.1} parent=11 // pred_check_branch
        %575 = sbr.rel (%p573) target = $region24
      $region23: #{clip_forward.1} parent=11 // pred_region
        _
      $region24: #{clip_forward.1} parent=11 // pred_fallthru
        _
      // Predicated region
      $region25: #{clip_forward.1} parent=11 // pred_check
        %p576 = pneg %p110
      $region26: #{clip_forward.1} parent=11 // pred_check_branch
        %578 = sbr.rel (%p576) target = $region28
      $region27: #{clip_forward.1} parent=11 // pred_region
        _
      $region28: #{clip_forward.1} parent=11 // pred_fallthru
        _
    $region12: #{clip_forward.1} parent=5 // pred_fallthru
      _
    %p579 = scmp.lt.s32.totalorder %s26, 2
    // Predicated region
    $region29: #{clip_forward.1} parent=5 // pred_check
      %p580 = pneg %p579
    $region30: #{clip_forward.1} parent=5 // pred_check_branch
      %582 = sbr.rel (%p580) target = $region32
    $region31: #{clip_forward.1} parent=5 // pred_region
      // Predicated region
      $region33: #{clip_forward.1} parent=31 // pred_check
        %p583 = pneg %p130
      $region34: #{clip_forward.1} parent=31 // pred_check_branch
        %585 = sbr.rel (%p583) target = $region36
      $region35: #{clip_forward.1} parent=31 // pred_region
        %p586 = scmp.lt.s32.totalorder %s26, 1
        %s587 = scalar_select %p586, %s26, 1
        %s588 = smul.addr %s587, 2
        %s589 = scalar_lea.vmem %s4, %s588
      $region36: #{clip_forward.1} parent=31 // pred_fallthru
        _
      // Predicated region
      $region37: #{clip_forward.1} parent=31 // pred_check
        %p590 = pneg %p156
      $region38: #{clip_forward.1} parent=31 // pred_check_branch
        %592 = sbr.rel (%p590) target = $region40
      $region39: #{clip_forward.1} parent=31 // pred_region
        %p593 = scmp.lt.s32.totalorder %s26, 1
        %s594 = scalar_select %p593, %s26, 1
        %s595 = smul.addr %s594, 2
        %s596 = scalar_lea.vmem %s5, %s595
      $region40: #{clip_forward.1} parent=31 // pred_fallthru
        _
      // Predicated region
      $region41: #{clip_forward.1} parent=31 // pred_check
        %p597 = pneg %p182
      $region42: #{clip_forward.1} parent=31 // pred_check_branch
        %599 = sbr.rel (%p597) target = $region44
      $region43: #{clip_forward.1} parent=31 // pred_region
        %p600 = scmp.lt.s32.totalorder %s26, 1
        %s601 = scalar_select %p600, %s26, 1
        %s602 = smul.addr %s601, 8
        %s603 = smul.addr %s602, 4
        %s604 = scalar_lea.vmem %s6, %s603
      $region44: #{clip_forward.1} parent=31 // pred_fallthru
        _
      // Predicated region
      $region45: #{clip_forward.1} parent=31 // pred_check
        %p605 = pneg %p208
      $region46: #{clip_forward.1} parent=31 // pred_check_branch
        %607 = sbr.rel (%p605) target = $region48
      $region47: #{clip_forward.1} parent=31 // pred_region
        %p608 = scmp.lt.s32.totalorder %s26, 1
        %s609 = scalar_select %p608, %s26, 1
        %s610 = smul.addr %s609, 2
        %s611 = scalar_lea.vmem %s7, %s610
      $region48: #{clip_forward.1} parent=31 // pred_fallthru
        _
      // Predicated region
      $region49: #{clip_forward.1} parent=31 // pred_check
        %p612 = pneg %p234
      $region50: #{clip_forward.1} parent=31 // pred_check_branch
        %614 = sbr.rel (%p612) target = $region52
      $region51: #{clip_forward.1} parent=31 // pred_region
        %p615 = scmp.lt.s32.totalorder %s26, 1
        %s616 = scalar_select %p615, %s26, 1
        %s617 = smul.addr %s616, 8
        %s618 = smul.addr %s617, 4
        %s619 = scalar_lea.vmem %s8, %s618
      $region52: #{clip_forward.1} parent=31 // pred_fallthru
        _
      // Predicated region
      $region53: #{clip_forward.1} parent=31 // pred_check
        %p620 = pneg %p260
      $region54: #{clip_forward.1} parent=31 // pred_check_branch
        %622 = sbr.rel (%p620) target = $region56
      $region55: #{clip_forward.1} parent=31 // pred_region
        %p623 = scmp.lt.s32.totalorder %s26, 1
        %s624 = scalar_select %p623, %s26, 1
        %s625 = smul.addr %s624, 2
        %s626 = scalar_lea.vmem %s9, %s625
      $region56: #{clip_forward.1} parent=31 // pred_fallthru
        _
      // Predicated region
      $region57: #{clip_forward.1} parent=31 // pred_check
        %p627 = pneg %p286
      $region58: #{clip_forward.1} parent=31 // pred_check_branch
        %629 = sbr.rel (%p627) target = $region60
      $region59: #{clip_forward.1} parent=31 // pred_region
        %p630 = scmp.lt.s32.totalorder %s26, 1
        %s631 = scalar_select %p630, %s26, 1
        %s632 = smul.addr %s631, 2
        %s633 = scalar_lea.vmem %s10, %s632
      $region60: #{clip_forward.1} parent=31 // pred_fallthru
        _
      // Predicated region
      $region61: #{clip_forward.1} parent=31 // pred_check
        %p634 = pneg %p312
      $region62: #{clip_forward.1} parent=31 // pred_check_branch
        %636 = sbr.rel (%p634) target = $region64
      $region63: #{clip_forward.1} parent=31 // pred_region
        %p637 = scmp.lt.s32.totalorder %s26, 1
        %s638 = scalar_select %p637, %s26, 1
        %s639 = smul.addr %s638, 2
        %s640 = scalar_lea.vmem %s11, %s639
      $region64: #{clip_forward.1} parent=31 // pred_fallthru
        _
      // Predicated region
      $region65: #{clip_forward.1} parent=31 // pred_check
        %p641 = pneg %p338
      $region66: #{clip_forward.1} parent=31 // pred_check_branch
        %643 = sbr.rel (%p641) target = $region68
      $region67: #{clip_forward.1} parent=31 // pred_region
        %p644 = scmp.lt.s32.totalorder %s26, 1
        %s645 = scalar_select %p644, %s26, 1
        %s646 = smul.addr %s645, 8
        %s647 = smul.addr %s646, 4
        %s648 = scalar_lea.vmem %s12, %s647
      $region68: #{clip_forward.1} parent=31 // pred_fallthru
        _
      // Predicated region
      $region69: #{clip_forward.1} parent=31 // pred_check
        %p649 = pneg %p364
      $region70: #{clip_forward.1} parent=31 // pred_check_branch
        %651 = sbr.rel (%p649) target = $region72
      $region71: #{clip_forward.1} parent=31 // pred_region
        %p652 = scmp.lt.s32.totalorder %s26, 1
        %s653 = scalar_select %p652, %s26, 1
        %s654 = smul.addr %s653, 2
        %s655 = scalar_lea.vmem %s13, %s654
      $region72: #{clip_forward.1} parent=31 // pred_fallthru
        _
      // Predicated region
      $region73: #{clip_forward.1} parent=31 // pred_check
        %p656 = pneg %p390
      $region74: #{clip_forward.1} parent=31 // pred_check_branch
        %658 = sbr.rel (%p656) target = $region76
      $region75: #{clip_forward.1} parent=31 // pred_region
        %p659 = scmp.lt.s32.totalorder %s26, 1
        %s660 = scalar_select %p659, %s26, 1
        %s661 = smul.addr %s660, 32
        %s662 = smul.addr %s661, 4
        %s663 = scalar_lea.vmem %s14, %s662
      $region76: #{clip_forward.1} parent=31 // pred_fallthru
        _
      // Predicated region
      $region77: #{clip_forward.1} parent=31 // pred_check
        %p664 = pneg %p416
      $region78: #{clip_forward.1} parent=31 // pred_check_branch
        %666 = sbr.rel (%p664) target = $region80
      $region79: #{clip_forward.1} parent=31 // pred_region
        %p667 = scmp.lt.s32.totalorder %s26, 1
        %s668 = scalar_select %p667, %s26, 1
        %s669 = smul.addr %s668, 2
        %s670 = scalar_lea.vmem %s15, %s669
      $region80: #{clip_forward.1} parent=31 // pred_fallthru
        _
      // Predicated region
      $region81: #{clip_forward.1} parent=31 // pred_check
        %p671 = pneg %p442
      $region82: #{clip_forward.1} parent=31 // pred_check_branch
        %673 = sbr.rel (%p671) target = $region84
      $region83: #{clip_forward.1} parent=31 // pred_region
        %p674 = scmp.lt.s32.totalorder %s26, 1
        %s675 = scalar_select %p674, %s26, 1
        %s676 = scalar_lea.vmem %s16, %s675
      $region84: #{clip_forward.1} parent=31 // pred_fallthru
        _
      // Predicated region
      $region85: #{clip_forward.1} parent=31 // pred_check
        %p677 = pneg %p468
      $region86: #{clip_forward.1} parent=31 // pred_check_branch
        %679 = sbr.rel (%p677) target = $region88
      $region87: #{clip_forward.1} parent=31 // pred_region
        %p680 = scmp.lt.s32.totalorder %s26, 1
        %s681 = scalar_select %p680, %s26, 1
        %s682 = scalar_lea.vmem %s17, %s681
      $region88: #{clip_forward.1} parent=31 // pred_fallthru
        _
      // Predicated region
      $region89: #{clip_forward.1} parent=31 // pred_check
        %p683 = pneg %p494
      $region90: #{clip_forward.1} parent=31 // pred_check_branch
        %685 = sbr.rel (%p683) target = $region92
      $region91: #{clip_forward.1} parent=31 // pred_region
        %p686 = scmp.lt.s32.totalorder %s26, 1
        %s687 = scalar_select %p686, %s26, 1
        %s688 = smul.addr %s687, 4
        %s689 = smul.addr %s688, 4
        %s690 = scalar_lea.vmem %s18, %s689
      $region92: #{clip_forward.1} parent=31 // pred_fallthru
        _
      // Predicated region
      $region93: #{clip_forward.1} parent=31 // pred_check
        %p691 = pneg %p520
      $region94: #{clip_forward.1} parent=31 // pred_check_branch
        %693 = sbr.rel (%p691) target = $region96
      $region95: #{clip_forward.1} parent=31 // pred_region
        %p694 = scmp.lt.s32.totalorder %s26, 1
        %s695 = scalar_select %p694, %s26, 1
        %s696 = scalar_lea.vmem %s19, %s695
      $region96: #{clip_forward.1} parent=31 // pred_fallthru
        _
    $region32: #{clip_forward.1} parent=5 // pred_fallthru
      _
    %p697 = scmp.le.s32.totalorder 1, %s26
    %p698 = scmp.lt.s32.totalorder %s26, 3
    %p699 = pnand %p697, %p698
    %p700 = pneg %p699
    // Predicated region
    $region97: #{clip_forward.1} parent=5 // pred_check
      _
    $region98: #{clip_forward.1} parent=5 // pred_check_branch
      %702 = sbr.rel (%p699) target = $region100
    $region99: #{clip_forward.1} parent=5 // pred_region
      %s703 = ssub.s32 %s26, 1
      %p704 = pneg %p47
      %p705 = pneg %p44
      %p706 = pneg %p68
      %p707 = pneg %p65
      %p708 = pneg %p89
      %p709 = pneg %p86
      %p710 = pneg %p110
      %p711 = pneg %p107
      %p712 = scmp.lt.s32.totalorder %s31, 1
      %s713 = scalar_select %p712, %s31, 1
      %s714 = smul.addr %s713, 2
      %s715 = scalar_lea.vmem %s4, %s714
      %p716 = pneg %p136
      %p717 = pneg %p133
      %p718 = scmp.lt.s32.totalorder %s31, 1
      %s719 = scalar_select %p718, %s31, 1
      %s720 = smul.addr %s719, 2
      %s721 = scalar_lea.vmem %s5, %s720
      %p722 = pneg %p162
      %p723 = pneg %p159
      %p724 = scmp.lt.s32.totalorder %s31, 1
      %s725 = scalar_select %p724, %s31, 1
      %s726 = smul.addr %s725, 8
      %s727 = smul.addr %s726, 4
      %s728 = scalar_lea.vmem %s6, %s727
      %p729 = pneg %p188
      %p730 = pneg %p185
      %p731 = scmp.lt.s32.totalorder %s31, 1
      %s732 = scalar_select %p731, %s31, 1
      %s733 = smul.addr %s732, 2
      %s734 = scalar_lea.vmem %s7, %s733
      %p735 = pneg %p214
      %p736 = pneg %p211
      %p737 = scmp.lt.s32.totalorder %s31, 1
      %s738 = scalar_select %p737, %s31, 1
      %s739 = smul.addr %s738, 8
      %s740 = smul.addr %s739, 4
      %s741 = scalar_lea.vmem %s8, %s740
      %p742 = pneg %p240
      %p743 = pneg %p237
      %p744 = scmp.lt.s32.totalorder %s31, 1
      %s745 = scalar_select %p744, %s31, 1
      %s746 = smul.addr %s745, 2
      %s747 = scalar_lea.vmem %s9, %s746
      %p748 = pneg %p266
      %p749 = pneg %p263
      %p750 = scmp.lt.s32.totalorder %s31, 1
      %s751 = scalar_select %p750, %s31, 1
      %s752 = smul.addr %s751, 2
      %s753 = scalar_lea.vmem %s10, %s752
      %p754 = pneg %p292
      %p755 = pneg %p289
      %p756 = scmp.lt.s32.totalorder %s31, 1
      %s757 = scalar_select %p756, %s31, 1
      %s758 = smul.addr %s757, 2
      %s759 = scalar_lea.vmem %s11, %s758
      %p760 = pneg %p318
      %p761 = pneg %p315
      %p762 = scmp.lt.s32.totalorder %s31, 1
      %s763 = scalar_select %p762, %s31, 1
      %s764 = smul.addr %s763, 8
      %s765 = smul.addr %s764, 4
      %s766 = scalar_lea.vmem %s12, %s765
      %p767 = pneg %p344
      %p768 = pneg %p341
      %p769 = scmp.lt.s32.totalorder %s31, 1
      %s770 = scalar_select %p769, %s31, 1
      %s771 = smul.addr %s770, 2
      %s772 = scalar_lea.vmem %s13, %s771
      %p773 = pneg %p370
      %p774 = pneg %p367
      %p775 = scmp.lt.s32.totalorder %s31, 1
      %s776 = scalar_select %p775, %s31, 1
      %s777 = smul.addr %s776, 32
      %s778 = smul.addr %s777, 4
      %s779 = scalar_lea.vmem %s14, %s778
      %p780 = pneg %p396
      %p781 = pneg %p393
      %p782 = scmp.lt.s32.totalorder %s31, 1
      %s783 = scalar_select %p782, %s31, 1
      %s784 = smul.addr %s783, 2
      %s785 = scalar_lea.vmem %s15, %s784
      %p786 = pneg %p422
      %p787 = pneg %p419
      %p788 = scmp.lt.s32.totalorder %s31, 1
      %s789 = scalar_select %p788, %s31, 1
      %s790 = scalar_lea.vmem %s16, %s789
      %p791 = pneg %p448
      %p792 = pneg %p445
      %p793 = scmp.lt.s32.totalorder %s31, 1
      %s794 = scalar_select %p793, %s31, 1
      %s795 = scalar_lea.vmem %s17, %s794
      %p796 = pneg %p474
      %p797 = pneg %p471
      %p798 = scmp.lt.s32.totalorder %s31, 1
      %s799 = scalar_select %p798, %s31, 1
      %s800 = smul.addr %s799, 4
      %s801 = smul.addr %s800, 4
      %s802 = scalar_lea.vmem %s18, %s801
      %p803 = pneg %p500
      %p804 = pneg %p497
      %p805 = scmp.lt.s32.totalorder %s31, 1
      %s806 = scalar_select %p805, %s31, 1
      %s807 = scalar_lea.vmem %s19, %s806
      %p808 = pneg %p526
      %p809 = pneg %p523
      %p810 = pneg %p552
      %p811 = pneg %p549
      %p812 = scmp.lt.s32.totalorder %s31, 1
      %s813 = scalar_select %p812, %s31, 1
      %s814 = smul.addr %s813, 2
      %s815 = scalar_lea.vmem %s20, %s814
      %p816 = scmp.lt.s32.totalorder %s31, 1
      %s817 = scalar_select %p816, %s31, 1
      %s818 = smul.addr %s817, 2
      %s819 = scalar_lea.vmem %s4, %s818
      %p820 = scmp.lt.s32.totalorder %s31, 1
      %s821 = scalar_select %p820, %s31, 1
      %s822 = smul.addr %s821, 2
      %s823 = scalar_lea.vmem %s5, %s822
      %p824 = scmp.lt.s32.totalorder %s31, 1
      %s825 = scalar_select %p824, %s31, 1
      %s826 = smul.addr %s825, 8
      %s827 = smul.addr %s826, 4
      %s828 = scalar_lea.vmem %s6, %s827
      %p829 = scmp.lt.s32.totalorder %s31, 1
      %s830 = scalar_select %p829, %s31, 1
      %s831 = smul.addr %s830, 2
      %s832 = scalar_lea.vmem %s7, %s831
      %p833 = scmp.lt.s32.totalorder %s31, 1
      %s834 = scalar_select %p833, %s31, 1
      %s835 = smul.addr %s834, 8
      %s836 = smul.addr %s835, 4
      %s837 = scalar_lea.vmem %s8, %s836
      %p838 = scmp.lt.s32.totalorder %s31, 1
      %s839 = scalar_select %p838, %s31, 1
      %s840 = smul.addr %s839, 2
      %s841 = scalar_lea.vmem %s9, %s840
      %p842 = scmp.lt.s32.totalorder %s31, 1
      %s843 = scalar_select %p842, %s31, 1
      %s844 = smul.addr %s843, 2
      %s845 = scalar_lea.vmem %s10, %s844
      %p846 = scmp.lt.s32.totalorder %s31, 1
      %s847 = scalar_select %p846, %s31, 1
      %s848 = smul.addr %s847, 2
      %s849 = scalar_lea.vmem %s11, %s848
      %p850 = scmp.lt.s32.totalorder %s31, 1
      %s851 = scalar_select %p850, %s31, 1
      %s852 = smul.addr %s851, 8
      %s853 = smul.addr %s852, 4
      %s854 = scalar_lea.vmem %s12, %s853
      %p855 = scmp.lt.s32.totalorder %s31, 1
      %s856 = scalar_select %p855, %s31, 1
      %s857 = smul.addr %s856, 2
      %s858 = scalar_lea.vmem %s13, %s857
      %p859 = scmp.lt.s32.totalorder %s31, 1
      %s860 = scalar_select %p859, %s31, 1
      %s861 = smul.addr %s860, 32
      %s862 = smul.addr %s861, 4
      %s863 = scalar_lea.vmem %s14, %s862
      %p864 = scmp.lt.s32.totalorder %s31, 1
      %s865 = scalar_select %p864, %s31, 1
      %s866 = smul.addr %s865, 2
      %s867 = scalar_lea.vmem %s15, %s866
      %p868 = scmp.lt.s32.totalorder %s31, 1
      %s869 = scalar_select %p868, %s31, 1
      %s870 = scalar_lea.vmem %s16, %s869
      %p871 = scmp.lt.s32.totalorder %s31, 1
      %s872 = scalar_select %p871, %s31, 1
      %s873 = scalar_lea.vmem %s17, %s872
      %p874 = scmp.lt.s32.totalorder %s31, 1
      %s875 = scalar_select %p874, %s31, 1
      %s876 = smul.addr %s875, 4
      %s877 = smul.addr %s876, 4
      %s878 = scalar_lea.vmem %s18, %s877
      %p879 = scmp.lt.s32.totalorder %s31, 1
      %s880 = scalar_select %p879, %s31, 1
      %s881 = scalar_lea.vmem %s19, %s880
      %p882 = scmp.lt.s32.totalorder %s31, 1
      %s883 = scalar_select %p882, %s31, 1
      %s884 = smul.addr %s883, 2
      %s885 = scalar_lea.vmem %s20, %s884
      %p887 = scmp.eq.s32.totalorder %s31, 0
      // Predicated region
      $region101: #{clip_forward.1} parent=99 // pred_check
        %p888 = pneg %p887
      $region102: #{clip_forward.1} parent=99 // pred_check_branch
        %890 = sbr.rel (%p888) target = $region104
      $region103: #{clip_forward.1} parent=99 // pred_region
        %v891 = vld [vmem:[%s0] sm:$0xff]
        %v892 = vld [vmem:[%s0 + $0x8] sm:$0xff]
        %v893 = vld [vmem:[%s0 + $0x10] sm:$0xff]
        %v894 = vld [vmem:[%s0 + $0x18] sm:$0xff]
        %v895 = vpack.c.bf16 %v893, %v891
        %v896 = vpack.c.bf16 %v894, %v892
        %v897 = vld [vmem:[%s3] sm:$0xf]
        %v898 = vld [vmem:[%s3 + $0x4] sm:$0xf]
        %v899 = vld [vmem:[%s3 + $0x8] sm:$0xf]
        %v900 = vld [vmem:[%s3 + $0xc] sm:$0xf]
        %v901 = vld [vmem:[%s3 + $0x10] sm:$0xf]
        %v902 = vld [vmem:[%s3 + $0x14] sm:$0xf]
        %v903 = vld [vmem:[%s3 + $0x18] sm:$0xf]
        %v904 = vld [vmem:[%s3 + $0x1c] sm:$0xf]
        %v905 = vld [vmem:[%s3 + $0x20] sm:$0xf]
        %v906 = vld [vmem:[%s3 + $0x24] sm:$0xf]
        %v907 = vld [vmem:[%s3 + $0x28] sm:$0xf]
        %v908 = vld [vmem:[%s3 + $0x2c] sm:$0xf]
        %v909 = vld [vmem:[%s3 + $0x30] sm:$0xf]
        %v910 = vld [vmem:[%s3 + $0x34] sm:$0xf]
        %v911 = vld [vmem:[%s3 + $0x38] sm:$0xf]
        %v912 = vld [vmem:[%s3 + $0x3c] sm:$0xf]
        %v913 = vld [vmem:[%s3 + $0x40] sm:$0xf]
        %v914 = vld [vmem:[%s3 + $0x44] sm:$0xf]
        %v915 = vld [vmem:[%s3 + $0x48] sm:$0xf]
        %v916 = vld [vmem:[%s3 + $0x4c] sm:$0xf]
        %v917 = vld [vmem:[%s3 + $0x50] sm:$0xf]
        %v918 = vld [vmem:[%s3 + $0x54] sm:$0xf]
        %v919 = vld [vmem:[%s3 + $0x58] sm:$0xf]
        %v920 = vld [vmem:[%s3 + $0x5c] sm:$0xf]
        %v921 = vld [vmem:[%s3 + $0x60] sm:$0xf]
        %v922 = vld [vmem:[%s3 + $0x64] sm:$0xf]
        %v923 = vld [vmem:[%s3 + $0x68] sm:$0xf]
        %v924 = vld [vmem:[%s3 + $0x6c] sm:$0xf]
        %v925 = vld [vmem:[%s3 + $0x70] sm:$0xf]
        %v926 = vld [vmem:[%s3 + $0x74] sm:$0xf]
        %v927 = vld [vmem:[%s3 + $0x78] sm:$0xf]
        %v928 = vld [vmem:[%s3 + $0x7c] sm:$0xf]
        %v961 = vunpack.c.l.b16 %v897
        %v962 = vunpack.c.l.b16 %v898
        %v963 = vunpack.c.l.b16 %v899
        %v964 = vunpack.c.l.b16 %v900
        %v965 = vunpack.c.l.b16 %v901
        %v966 = vunpack.c.l.b16 %v902
        %v967 = vunpack.c.l.b16 %v903
        %v968 = vunpack.c.l.b16 %v904
        %v969 = vunpack.c.l.b16 %v905
        %v970 = vunpack.c.l.b16 %v906
        %v971 = vunpack.c.l.b16 %v907
        %v972 = vunpack.c.l.b16 %v908
        %v973 = vunpack.c.l.b16 %v909
        %v974 = vunpack.c.l.b16 %v910
        %v975 = vunpack.c.l.b16 %v911
        %v976 = vunpack.c.l.b16 %v912
        %v977 = vunpack.c.l.b16 %v913
        %v978 = vunpack.c.l.b16 %v914
        %v979 = vunpack.c.l.b16 %v915
        %v980 = vunpack.c.l.b16 %v916
        %v981 = vunpack.c.l.b16 %v917
        %v982 = vunpack.c.l.b16 %v918
        %v983 = vunpack.c.l.b16 %v919
        %v984 = vunpack.c.l.b16 %v920
        %v985 = vunpack.c.l.b16 %v921
        %v986 = vunpack.c.l.b16 %v922
        %v987 = vunpack.c.l.b16 %v923
        %v988 = vunpack.c.l.b16 %v924
        %v989 = vunpack.c.l.b16 %v925
        %v990 = vunpack.c.l.b16 %v926
        %v991 = vunpack.c.l.b16 %v927
        %v992 = vunpack.c.l.b16 %v928
        %v993 = vpack.c.b16 %v962, %v961
        %v994 = vpack.c.b16 %v964, %v963
        %v995 = vpack.c.b16 %v966, %v965
        %v996 = vpack.c.b16 %v968, %v967
        %v997 = vpack.c.b16 %v970, %v969
        %v998 = vpack.c.b16 %v972, %v971
        %v999 = vpack.c.b16 %v974, %v973
        %v1000 = vpack.c.b16 %v976, %v975
        %v1001 = vpack.c.b16 %v978, %v977
        %v1002 = vpack.c.b16 %v980, %v979
        %v1003 = vpack.c.b16 %v982, %v981
        %v1004 = vpack.c.b16 %v984, %v983
        %v1005 = vpack.c.b16 %v986, %v985
        %v1006 = vpack.c.b16 %v988, %v987
        %v1007 = vpack.c.b16 %v990, %v989
        %v1008 = vpack.c.b16 %v992, %v991
        %1025 = vmatpush.bf16.msra.mxu0 %v1000
        %1026 = vmatpush.bf16.msra.mxu0 %v999
        %1027 = vmatpush.bf16.msra.mxu0 %v998
        %1028 = vmatpush.bf16.msra.mxu0 %v997
        %1029 = vmatpush.bf16.msra.mxu0 %v996
        %1030 = vmatpush.bf16.msra.mxu0 %v995
        %1031 = vmatpush.bf16.msra.mxu0 %v994
        %1032 = vmatpush.bf16.msra.mxu0 %v993
        %1033 = vmatmul.bf16.gmra.mxu0 %v895
        %v1034 = vpop.f32.mrf.mxu0
        %v1035 = vadd.f32 0.0, %v1034
        %v1036 = vpop.f32.mrf.mxu0
        %v1037 = vadd.f32 0.0, %v1036
        %1038 = vdwg.mxu0
        %1039 = vmatpush.bf16.msra.mxu0 %v1008
        %1040 = vmatpush.bf16.msra.mxu0 %v1007
        %1041 = vmatpush.bf16.msra.mxu0 %v1006
        %1042 = vmatpush.bf16.msra.mxu0 %v1005
        %1043 = vmatpush.bf16.msra.mxu0 %v1004
        %1044 = vmatpush.bf16.msra.mxu0 %v1003
        %1045 = vmatpush.bf16.msra.mxu0 %v1002
        %1046 = vmatpush.bf16.msra.mxu0 %v1001
        %1047 = vmatmul.bf16.gmra.mxu0 %v896
        %v1048 = vpop.f32.mrf.mxu0
        %v1049 = vadd.f32 %v1035, %v1048
        %v1050 = vpop.f32.mrf.mxu0
        %v1051 = vadd.f32 %v1037, %v1050
        %1052 = vdwg.mxu0
        %v1053 = vld [vmem:[%s1] sm:$0xff]
        %v1054 = vadd.f32 %v1049, %v1053
        %v1055 = vadd.f32 %v1051, %v1053
        %vm1056 = vcmask 261120
        %1057 = vst.msk [vmem:[#allocation2] sm:$0xff] %vm1056, %v1054
        %1058 = vst.msk [vmem:[#allocation2 + $0x8] sm:$0xff] %vm1056, %v1055
      $region104: #{clip_forward.1} parent=99 // pred_fallthru
        _
      %p1059 = scmp.eq.s32.totalorder %s31, 1
      // Predicated region
      $region105: #{clip_forward.1} parent=99 // pred_check
        %p1060 = pneg %p1059
      $region106: #{clip_forward.1} parent=99 // pred_check_branch
        %1062 = sbr.rel (%p1060) target = $region108
      $region107: #{clip_forward.1} parent=99 // pred_region
        %v1063 = vld [vmem:[%s2] sm:$0xff]
        %v1064 = vld [vmem:[%s2 + $0x8] sm:$0xff]
        %vm1065 = vcmask 261120
        %1066 = vst.msk [vmem:[#allocation2] sm:$0xff] %vm1065, %v1063
        %1067 = vst.msk [vmem:[#allocation2 + $0x8] sm:$0xff] %vm1065, %v1064
      $region108: #{clip_forward.1} parent=99 // pred_fallthru
        _
      %v1068 = vld [vmem:[#allocation2] sm:$0xff]
      %v1069 = vld [vmem:[#allocation2 + $0x8] sm:$0xff]
      %v1070 = vlaneseq
      %v1071 = vshrl.u32 %v1070, 7
      %v1072 = vlaneseq
      %v1073 = vand.u32 %v1072, 127
      %s1074 = smul.u32 %s31, 3
      %s1075 = sadd.s32 %s1074, 5
      %s1076 = ssub.s32 1, %s31
      %s1077 = smul.u32 %s1076, 8
      %v1078 = vstv %s1077
      %v1079 = vadd.s32 %v1071, %v1078
      %v1080 = vstv %s1075
      %vm1081 = vcmp.lt.s32.totalorder %v1073, %v1080
      %vm1082 = vcmp.le.s32.totalorder %v1073, %v1079
      %vm1083 = vmand %vm1081, %vm1082
      %v1084 = vsel %vm1083, 0.0, -1e+30
      %v1085 = vld [vmem:[%s819] sm:$0x1]
      %v1086 = vld [vmem:[%s823] sm:$0x1]
      %vm1087 = vcmask 261120
      %v1088 = vsel %vm1087, %v1068, 0.0
      %1089 = vadd.xlane.f32.xlu0 %v1088
      %v1090 = vpop.xlane.xlu0 %1089
      %v1091 = vsel %vm1087, %v1069, 0.0
      %1092 = vadd.xlane.f32.xlu0 %v1091
      %v1093 = vpop.xlane.xlu0 %1092
      %v1094 = vrcp.pop 32.0
      %v1095 = vmul.f32 32.0, %v1094
      %v1096 = vsub.f32 1.0, %v1095
      %v1097 = vmul.f32 %v1094, %v1096
      %v1098 = vadd.f32 %v1094, %v1097
      %vm1099 = vweird.f32 %v1094
      %v1100 = vsel %vm1099, %v1094, %v1098
      %v1101 = vmul.f32 %v1090, %v1100
      %v1102 = vmul.f32 %v1093, %v1100
      %v1103 = vsub.f32 %v1068, %v1101
      %v1104 = vsub.f32 %v1069, %v1102
      %v1105 = vmul.f32 %v1103, %v1103
      %v1106 = vmul.f32 %v1104, %v1104
      %v1107 = vsel %vm1087, %v1105, 0.0
      %1108 = vadd.xlane.f32.xlu0 %v1107
      %v1109 = vpop.xlane.xlu0 %1108
      %v1110 = vsel %vm1087, %v1106, 0.0
      %1111 = vadd.xlane.f32.xlu0 %v1110
      %v1112 = vpop.xlane.xlu0 %1111
      %v1113 = vmul.f32 %v1109, %v1100
      %v1114 = vmul.f32 %v1112, %v1100
      %v1115 = vadd.f32 %v1113, 1e-05
      %v1116 = vadd.f32 %v1114, 1e-05
      %v1117 = vrsqrt.pop %v1115
      %v1118 = vmul.f32 %v1117, %v1115
      %v1119 = vmul.f32 %v1118, %v1117
      %v1120 = vmul.f32 0.5, %v1119
      %v1121 = vsub.f32 1.5, %v1120
      %v1122 = vmul.f32 %v1117, %v1121
      %vm1123 = vweird.f32 %v1115
      %vm1124 = vweird.f32 %v1117
      %vm1125 = vmor %vm1123, %vm1124
      %v1126 = vsel %vm1125, %v1117, %v1122
      %v1127 = vrsqrt.pop %v1116
      %v1128 = vmul.f32 %v1127, %v1116
      %v1129 = vmul.f32 %v1128, %v1127
      %v1130 = vmul.f32 0.5, %v1129
      %v1131 = vsub.f32 1.5, %v1130
      %v1132 = vmul.f32 %v1127, %v1131
      %vm1133 = vweird.f32 %v1116
      %vm1134 = vweird.f32 %v1127
      %vm1135 = vmor %vm1133, %vm1134
      %v1136 = vsel %vm1135, %v1127, %v1132
      %v1137 = vmul.f32 %v1103, %v1126
      %v1138 = vmul.f32 %v1104, %v1136
      %v1140 = vperm.slane %v1085, 0
      %v1142 = vmul.f32 %v1137, %v1140
      %v1143 = vmul.f32 %v1138, %v1140
      %v1145 = vperm.slane %v1086, 0
      %v1147 = vadd.f32 %v1142, %v1145
      %v1148 = vadd.f32 %v1143, %v1145
      %v1149 = vpack.c.bf16 %v1148, %v1147
      %v1150 = vld [vmem:[%s828] sm:$0xf]
      %v1151 = vld [vmem:[%s828 + $0x4] sm:$0xf]
      %v1152 = vld [vmem:[%s828 + $0x8] sm:$0xf]
      %v1153 = vld [vmem:[%s828 + $0xc] sm:$0xf]
      %v1154 = vld [vmem:[%s832] sm:$0x1]
      %v1156 = vperm.slane %v1154, 0
      %v1162 = vunpack.c.l.b16 %v1150
      %v1163 = vunpack.c.l.b16 %v1151
      %v1164 = vunpack.c.l.b16 %v1152
      %v1165 = vunpack.c.l.b16 %v1153
      %v1166 = vpack.c.b16 %v1163, %v1162
      %v1167 = vpack.c.b16 %v1165, %v1164
      %v1171 = vsel %vm1087, %v1149, 0
      %1173 = vmatpush.bf16.msra.mxu0 0
      %1174 = vmatpush.bf16.msra.mxu0 0
      %1175 = vmatpush.bf16.msra.mxu0 0
      %1176 = vmatpush.bf16.msra.mxu0 0
      %1177 = vmatpush.bf16.msra.mxu0 0
      %1178 = vmatpush.bf16.msra.mxu0 0
      %1179 = vmatpush.bf16.msra.mxu0 %v1167
      %1180 = vmatpush.bf16.msra.mxu0 %v1166
      %1181 = vmatmul.bf16.gmra.mxu0 %v1171
      %v1182 = vpop.f32.mrf.mxu0
      %v1183 = vadd.f32 %v1156, %v1182
      %v1184 = vpop.f32.mrf.mxu0
      %v1185 = vadd.f32 %v1156, %v1184
      %1186 = vdwg.mxu0
      %1189 = vrot.lane.b32.xlu0 %v1183, 120
      %v1190 = vpop.permute.xlu0 %1189
      %1191 = vrot.lane.b32.xlu0 %v1185, 120
      %v1192 = vpop.permute.xlu0 %1191
      %1195 = vrot.lane.b32.xlu0 %v1183, 112
      %v1196 = vpop.permute.xlu0 %1195
      %1197 = vrot.lane.b32.xlu0 %v1185, 112
      %v1198 = vpop.permute.xlu0 %1197
      %1201 = vrot.lane.b32.xlu0 %v1183, 104
      %v1202 = vpop.permute.xlu0 %1201
      %1203 = vrot.lane.b32.xlu0 %v1185, 104
      %v1204 = vpop.permute.xlu0 %1203
      %v1207 = vpack.c.bf16 %v1183, %v1183
      %v1208 = vpack.c.bf16 %v1185, %v1185
      %v1209 = vpack.c.bf16 %v1190, %v1190
      %v1210 = vpack.c.bf16 %v1192, %v1192
      %v1211 = vpack.c.bf16 %v1196, %v1196
      %v1212 = vpack.c.bf16 %v1198, %v1198
      %v1213 = vpack.c.bf16 %v1202, %v1202
      %v1214 = vpack.c.bf16 %v1204, %v1204
      %v1216 = vunpack.c.l.b16 %v1207
      %v1217 = vpack.c.b16 %v1216, %v1216
      %1218 = vrot.lane.b32.xlu0 %v1217, 96
      %v1219 = vpop.permute.xlu0 %1218
      %vm1220 = vcmask 64512
      %v1222 = vsel %vm1220, %v1207, 0
      %v1225 = vsel %vm1220, %v1219, 0
      %1227 = vmatpush.bf16.xpose.msra.mxu0 0
      %1228 = vmatpush.bf16.xpose.msra.mxu0 0
      %1229 = vmatpush.bf16.xpose.msra.mxu0 0
      %1230 = vmatpush.bf16.xpose.msra.mxu0 0
      %1231 = vmatpush.bf16.xpose.msra.mxu0 0
      %1232 = vmatpush.bf16.xpose.msra.mxu0 0
      %1233 = vmatpush.bf16.xpose.msra.mxu0 0
      %1234 = vmatpush.bf16.xpose.msra.mxu0 %v1225
      %1235 = vmatmul.bf16.gmra.mxu0 %v1222
      %v1236 = vpop.f32.mrf.mxu0
      %v1237 = vadd.f32 %v1084, %v1236
      %v1238 = vpop.f32.mrf.mxu0
      %1239 = vdwg.mxu0
      %v1241 = vunpack.c.l.b16 %v1208
      %v1242 = vpack.c.b16 %v1241, %v1241
      %1243 = vrot.lane.b32.xlu0 %v1242, 96
      %v1244 = vpop.permute.xlu0 %1243
      %v1246 = vsel %vm1220, %v1208, 0
      %v1249 = vsel %vm1220, %v1244, 0
      %1251 = vmatpush.bf16.xpose.msra.mxu0 0
      %1252 = vmatpush.bf16.xpose.msra.mxu0 0
      %1253 = vmatpush.bf16.xpose.msra.mxu0 0
      %1254 = vmatpush.bf16.xpose.msra.mxu0 0
      %1255 = vmatpush.bf16.xpose.msra.mxu0 0
      %1256 = vmatpush.bf16.xpose.msra.mxu0 0
      %1257 = vmatpush.bf16.xpose.msra.mxu0 0
      %1258 = vmatpush.bf16.xpose.msra.mxu0 %v1249
      %1259 = vmatmul.bf16.gmra.mxu0 %v1246
      %v1260 = vpop.f32.mrf.mxu0
      %v1261 = vadd.f32 %v1084, %v1260
      %v1262 = vpop.f32.mrf.mxu0
      %1263 = vdwg.mxu0
      %v1265 = vunpack.c.l.b16 %v1209
      %v1266 = vpack.c.b16 %v1265, %v1265
      %1267 = vrot.lane.b32.xlu0 %v1266, 96
      %v1268 = vpop.permute.xlu0 %1267
      %v1270 = vsel %vm1220, %v1209, 0
      %v1273 = vsel %vm1220, %v1268, 0
      %1275 = vmatpush.bf16.xpose.msra.mxu0 0
      %1276 = vmatpush.bf16.xpose.msra.mxu0 0
      %1277 = vmatpush.bf16.xpose.msra.mxu0 0
      %1278 = vmatpush.bf16.xpose.msra.mxu0 0
      %1279 = vmatpush.bf16.xpose.msra.mxu0 0
      %1280 = vmatpush.bf16.xpose.msra.mxu0 0
      %1281 = vmatpush.bf16.xpose.msra.mxu0 0
      %1282 = vmatpush.bf16.xpose.msra.mxu0 %v1273
      %1283 = vmatmul.bf16.gmra.mxu0 %v1270
      %v1284 = vpop.f32.mrf.mxu0
      %v1285 = vadd.f32 %v1084, %v1284
      %v1286 = vpop.f32.mrf.mxu0
      %1287 = vdwg.mxu0
      %v1289 = vunpack.c.l.b16 %v1210
      %v1290 = vpack.c.b16 %v1289, %v1289
      %1291 = vrot.lane.b32.xlu0 %v1290, 96
      %v1292 = vpop.permute.xlu0 %1291
      %v1294 = vsel %vm1220, %v1210, 0
      %v1297 = vsel %vm1220, %v1292, 0
      %1299 = vmatpush.bf16.xpose.msra.mxu0 0
      %1300 = vmatpush.bf16.xpose.msra.mxu0 0
      %1301 = vmatpush.bf16.xpose.msra.mxu0 0
      %1302 = vmatpush.bf16.xpose.msra.mxu0 0
      %1303 = vmatpush.bf16.xpose.msra.mxu0 0
      %1304 = vmatpush.bf16.xpose.msra.mxu0 0
      %1305 = vmatpush.bf16.xpose.msra.mxu0 0
      %1306 = vmatpush.bf16.xpose.msra.mxu0 %v1297
      %1307 = vmatmul.bf16.gmra.mxu0 %v1294
      %v1308 = vpop.f32.mrf.mxu0
      %v1309 = vadd.f32 %v1084, %v1308
      %v1310 = vpop.f32.mrf.mxu0
      %1311 = vdwg.mxu0
      %v1313 = vunpack.c.l.b16 %v1211
      %v1314 = vpack.c.b16 %v1313, %v1313
      %1315 = vrot.lane.b32.xlu0 %v1314, 96
      %v1316 = vpop.permute.xlu0 %1315
      %v1318 = vsel %vm1220, %v1211, 0
      %v1321 = vsel %vm1220, %v1316, 0
      %1323 = vmatpush.bf16.xpose.msra.mxu0 0
      %1324 = vmatpush.bf16.xpose.msra.mxu0 0
      %1325 = vmatpush.bf16.xpose.msra.mxu0 0
      %1326 = vmatpush.bf16.xpose.msra.mxu0 0
      %1327 = vmatpush.bf16.xpose.msra.mxu0 0
      %1328 = vmatpush.bf16.xpose.msra.mxu0 0
      %1329 = vmatpush.bf16.xpose.msra.mxu0 0
      %1330 = vmatpush.bf16.xpose.msra.mxu0 %v1321
      %1331 = vmatmul.bf16.gmra.mxu0 %v1318
      %v1332 = vpop.f32.mrf.mxu0
      %v1333 = vadd.f32 %v1084, %v1332
      %v1334 = vpop.f32.mrf.mxu0
      %1335 = vdwg.mxu0
      %v1337 = vunpack.c.l.b16 %v1212
      %v1338 = vpack.c.b16 %v1337, %v1337
      %1339 = vrot.lane.b32.xlu0 %v1338, 96
      %v1340 = vpop.permute.xlu0 %1339
      %v1342 = vsel %vm1220, %v1212, 0
      %v1345 = vsel %vm1220, %v1340, 0
      %1347 = vmatpush.bf16.xpose.msra.mxu0 0
      %1348 = vmatpush.bf16.xpose.msra.mxu0 0
      %1349 = vmatpush.bf16.xpose.msra.mxu0 0
      %1350 = vmatpush.bf16.xpose.msra.mxu0 0
      %1351 = vmatpush.bf16.xpose.msra.mxu0 0
      %1352 = vmatpush.bf16.xpose.msra.mxu0 0
      %1353 = vmatpush.bf16.xpose.msra.mxu0 0
      %1354 = vmatpush.bf16.xpose.msra.mxu0 %v1345
      %1355 = vmatmul.bf16.gmra.mxu0 %v1342
      %v1356 = vpop.f32.mrf.mxu0
      %v1357 = vadd.f32 %v1084, %v1356
      %v1358 = vpop.f32.mrf.mxu0
      %1359 = vdwg.mxu0
      %v1361 = vunpack.c.l.b16 %v1213
      %v1362 = vpack.c.b16 %v1361, %v1361
      %1363 = vrot.lane.b32.xlu0 %v1362, 96
      %v1364 = vpop.permute.xlu0 %1363
      %v1366 = vsel %vm1220, %v1213, 0
      %v1369 = vsel %vm1220, %v1364, 0
      %1371 = vmatpush.bf16.xpose.msra.mxu0 0
      %1372 = vmatpush.bf16.xpose.msra.mxu0 0
      %1373 = vmatpush.bf16.xpose.msra.mxu0 0
      %1374 = vmatpush.bf16.xpose.msra.mxu0 0
      %1375 = vmatpush.bf16.xpose.msra.mxu0 0
      %1376 = vmatpush.bf16.xpose.msra.mxu0 0
      %1377 = vmatpush.bf16.xpose.msra.mxu0 0
      %1378 = vmatpush.bf16.xpose.msra.mxu0 %v1369
      %1379 = vmatmul.bf16.gmra.mxu0 %v1366
      %v1380 = vpop.f32.mrf.mxu0
      %v1381 = vadd.f32 %v1084, %v1380
      %v1382 = vpop.f32.mrf.mxu0
      %1383 = vdwg.mxu0
      %v1385 = vunpack.c.l.b16 %v1214
      %v1386 = vpack.c.b16 %v1385, %v1385
      %1387 = vrot.lane.b32.xlu0 %v1386, 96
      %v1388 = vpop.permute.xlu0 %1387
      %v1390 = vsel %vm1220, %v1214, 0
      %v1393 = vsel %vm1220, %v1388, 0
      %1395 = vmatpush.bf16.xpose.msra.mxu0 0
      %1396 = vmatpush.bf16.xpose.msra.mxu0 0
      %1397 = vmatpush.bf16.xpose.msra.mxu0 0
      %1398 = vmatpush.bf16.xpose.msra.mxu0 0
      %1399 = vmatpush.bf16.xpose.msra.mxu0 0
      %1400 = vmatpush.bf16.xpose.msra.mxu0 0
      %1401 = vmatpush.bf16.xpose.msra.mxu0 0
      %1402 = vmatpush.bf16.xpose.msra.mxu0 %v1393
      %1403 = vmatmul.bf16.gmra.mxu0 %v1390
      %v1404 = vpop.f32.mrf.mxu0
      %v1405 = vadd.f32 %v1084, %v1404
      %v1406 = vpop.f32.mrf.mxu0
      %1407 = vdwg.mxu0
      %v1408 = vsel %vm1220, %v1237, -inf
      %1409 = vmax.xlane.f32.xlu0 %v1408
      %v1410 = vpop.xlane.xlu0 %1409
      %v1411 = vsel %vm1220, %v1261, -inf
      %1412 = vmax.xlane.f32.xlu0 %v1411
      %v1413 = vpop.xlane.xlu0 %1412
      %v1414 = vsel %vm1220, %v1285, -inf
      %1415 = vmax.xlane.f32.xlu0 %v1414
      %v1416 = vpop.xlane.xlu0 %1415
      %v1417 = vsel %vm1220, %v1309, -inf
      %1418 = vmax.xlane.f32.xlu0 %v1417
      %v1419 = vpop.xlane.xlu0 %1418
      %v1420 = vsel %vm1220, %v1333, -inf
      %1421 = vmax.xlane.f32.xlu0 %v1420
      %v1422 = vpop.xlane.xlu0 %1421
      %v1423 = vsel %vm1220, %v1357, -inf
      %1424 = vmax.xlane.f32.xlu0 %v1423
      %v1425 = vpop.xlane.xlu0 %1424
      %v1426 = vsel %vm1220, %v1381, -inf
      %1427 = vmax.xlane.f32.xlu0 %v1426
      %v1428 = vpop.xlane.xlu0 %1427
      %v1429 = vsel %vm1220, %v1405, -inf
      %1430 = vmax.xlane.f32.xlu0 %v1429
      %v1431 = vpop.xlane.xlu0 %1430
      %v1432 = vsub.f32 %v1237, %v1410
      %v1433 = vsub.f32 %v1261, %v1413
      %v1434 = vsub.f32 %v1285, %v1416
      %v1435 = vsub.f32 %v1309, %v1419
      %v1436 = vsub.f32 %v1333, %v1422
      %v1437 = vsub.f32 %v1357, %v1425
      %v1438 = vsub.f32 %v1381, %v1428
      %v1439 = vsub.f32 %v1405, %v1431
      %v1440 = vmul.f32 %v1432, 1.442695
      %v1441 = vpow.pop %v1440
      %v1442 = vmul.f32 %v1433, 1.442695
      %v1443 = vpow.pop %v1442
      %v1444 = vmul.f32 %v1434, 1.442695
      %v1445 = vpow.pop %v1444
      %v1446 = vmul.f32 %v1435, 1.442695
      %v1447 = vpow.pop %v1446
      %v1448 = vmul.f32 %v1436, 1.442695
      %v1449 = vpow.pop %v1448
      %v1450 = vmul.f32 %v1437, 1.442695
      %v1451 = vpow.pop %v1450
      %v1452 = vmul.f32 %v1438, 1.442695
      %v1453 = vpow.pop %v1452
      %v1454 = vmul.f32 %v1439, 1.442695
      %v1455 = vpow.pop %v1454
      %v1456 = vsel %vm1220, %v1441, 0.0
      %1457 = vadd.xlane.f32.xlu0 %v1456
      %v1458 = vpop.xlane.xlu0 %1457
      %v1459 = vsel %vm1220, %v1443, 0.0
      %1460 = vadd.xlane.f32.xlu0 %v1459
      %v1461 = vpop.xlane.xlu0 %1460
      %v1462 = vsel %vm1220, %v1445, 0.0
      %1463 = vadd.xlane.f32.xlu0 %v1462
      %v1464 = vpop.xlane.xlu0 %1463
      %v1465 = vsel %vm1220, %v1447, 0.0
      %1466 = vadd.xlane.f32.xlu0 %v1465
      %v1467 = vpop.xlane.xlu0 %1466
      %v1468 = vsel %vm1220, %v1449, 0.0
      %1469 = vadd.xlane.f32.xlu0 %v1468
      %v1470 = vpop.xlane.xlu0 %1469
      %v1471 = vsel %vm1220, %v1451, 0.0
      %1472 = vadd.xlane.f32.xlu0 %v1471
      %v1473 = vpop.xlane.xlu0 %1472
      %v1474 = vsel %vm1220, %v1453, 0.0
      %1475 = vadd.xlane.f32.xlu0 %v1474
      %v1476 = vpop.xlane.xlu0 %1475
      %v1477 = vsel %vm1220, %v1455, 0.0
      %1478 = vadd.xlane.f32.xlu0 %v1477
      %v1479 = vpop.xlane.xlu0 %1478
      %v1480 = vrcp.pop %v1458
      %v1481 = vrcp.pop %v1461
      %v1482 = vrcp.pop %v1464
      %v1483 = vrcp.pop %v1467
      %v1484 = vrcp.pop %v1470
      %v1485 = vrcp.pop %v1473
      %v1486 = vrcp.pop %v1476
      %v1487 = vrcp.pop %v1479
      %v1488 = vmul.f32 %v1441, %v1480
      %v1489 = vmul.f32 %v1443, %v1481
      %v1490 = vmul.f32 %v1445, %v1482
      %v1491 = vmul.f32 %v1447, %v1483
      %v1492 = vmul.f32 %v1449, %v1484
      %v1493 = vmul.f32 %v1451, %v1485
      %v1494 = vmul.f32 %v1453, %v1486
      %v1495 = vmul.f32 %v1455, %v1487
      %v1496 = vpack.c.bf16 %v1488, %v1488
      %v1497 = vpack.c.bf16 %v1489, %v1489
      %v1498 = vpack.c.bf16 %v1490, %v1490
      %v1499 = vpack.c.bf16 %v1491, %v1491
      %v1500 = vpack.c.bf16 %v1492, %v1492
      %v1501 = vpack.c.bf16 %v1493, %v1493
      %v1502 = vpack.c.bf16 %v1494, %v1494
      %v1503 = vpack.c.bf16 %v1495, %v1495
      %1504 = vrot.lane.b32.xlu0 %v1217, 64
      %v1505 = vpop.permute.xlu0 %1504
      %v1507 = vsel %vm1220, %v1496, 0
      %vm1509 = vcmask 1043456
      %v1511 = vsel %vm1509, %v1505, 0
      %1513 = vmatpush.bf16.msra.mxu0 0
      %1514 = vmatpush.bf16.msra.mxu0 0
      %1515 = vmatpush.bf16.msra.mxu0 0
      %1516 = vmatpush.bf16.msra.mxu0 0
      %1517 = vmatpush.bf16.msra.mxu0 0
      %1518 = vmatpush.bf16.msra.mxu0 0
      %1519 = vmatpush.bf16.msra.mxu0 0
      %1520 = vmatpush.bf16.msra.mxu0 %v1511
      %1521 = vmatmul.bf16.gmra.mxu0 %v1507
      %v1522 = vpop.f32.mrf.mxu0
      %v1523 = vadd.f32 0.0, %v1522
      %v1524 = vpop.f32.mrf.mxu0
      %1525 = vdwg.mxu0
      %1526 = vrot.lane.b32.xlu0 %v1242, 64
      %v1527 = vpop.permute.xlu0 %1526
      %v1529 = vsel %vm1220, %v1497, 0
      %v1532 = vsel %vm1509, %v1527, 0
      %1534 = vmatpush.bf16.msra.mxu0 0
      %1535 = vmatpush.bf16.msra.mxu0 0
      %1536 = vmatpush.bf16.msra.mxu0 0
      %1537 = vmatpush.bf16.msra.mxu0 0
      %1538 = vmatpush.bf16.msra.mxu0 0
      %1539 = vmatpush.bf16.msra.mxu0 0
      %1540 = vmatpush.bf16.msra.mxu0 0
      %1541 = vmatpush.bf16.msra.mxu0 %v1532
      %1542 = vmatmul.bf16.gmra.mxu0 %v1529
      %v1543 = vpop.f32.mrf.mxu0
      %v1544 = vadd.f32 0.0, %v1543
      %v1545 = vpop.f32.mrf.mxu0
      %1546 = vdwg.mxu0
      %1547 = vrot.lane.b32.xlu0 %v1266, 64
      %v1548 = vpop.permute.xlu0 %1547
      %v1550 = vsel %vm1220, %v1498, 0
      %v1553 = vsel %vm1509, %v1548, 0
      %1555 = vmatpush.bf16.msra.mxu0 0
      %1556 = vmatpush.bf16.msra.mxu0 0
      %1557 = vmatpush.bf16.msra.mxu0 0
      %1558 = vmatpush.bf16.msra.mxu0 0
      %1559 = vmatpush.bf16.msra.mxu0 0
      %1560 = vmatpush.bf16.msra.mxu0 0
      %1561 = vmatpush.bf16.msra.mxu0 0
      %1562 = vmatpush.bf16.msra.mxu0 %v1553
      %1563 = vmatmul.bf16.gmra.mxu0 %v1550
      %v1564 = vpop.f32.mrf.mxu0
      %v1565 = vadd.f32 0.0, %v1564
      %v1566 = vpop.f32.mrf.mxu0
      %1567 = vdwg.mxu0
      %1568 = vrot.lane.b32.xlu0 %v1290, 64
      %v1569 = vpop.permute.xlu0 %1568
      %v1571 = vsel %vm1220, %v1499, 0
      %v1574 = vsel %vm1509, %v1569, 0
      %1576 = vmatpush.bf16.msra.mxu0 0
      %1577 = vmatpush.bf16.msra.mxu0 0
      %1578 = vmatpush.bf16.msra.mxu0 0
      %1579 = vmatpush.bf16.msra.mxu0 0
      %1580 = vmatpush.bf16.msra.mxu0 0
      %1581 = vmatpush.bf16.msra.mxu0 0
      %1582 = vmatpush.bf16.msra.mxu0 0
      %1583 = vmatpush.bf16.msra.mxu0 %v1574
      %1584 = vmatmul.bf16.gmra.mxu0 %v1571
      %v1585 = vpop.f32.mrf.mxu0
      %v1586 = vadd.f32 0.0, %v1585
      %v1587 = vpop.f32.mrf.mxu0
      %1588 = vdwg.mxu0
      %1589 = vrot.lane.b32.xlu0 %v1314, 64
      %v1590 = vpop.permute.xlu0 %1589
      %v1592 = vsel %vm1220, %v1500, 0
      %v1595 = vsel %vm1509, %v1590, 0
      %1597 = vmatpush.bf16.msra.mxu0 0
      %1598 = vmatpush.bf16.msra.mxu0 0
      %1599 = vmatpush.bf16.msra.mxu0 0
      %1600 = vmatpush.bf16.msra.mxu0 0
      %1601 = vmatpush.bf16.msra.mxu0 0
      %1602 = vmatpush.bf16.msra.mxu0 0
      %1603 = vmatpush.bf16.msra.mxu0 0
      %1604 = vmatpush.bf16.msra.mxu0 %v1595
      %1605 = vmatmul.bf16.gmra.mxu0 %v1592
      %v1606 = vpop.f32.mrf.mxu0
      %v1607 = vadd.f32 0.0, %v1606
      %v1608 = vpop.f32.mrf.mxu0
      %1609 = vdwg.mxu0
      %1610 = vrot.lane.b32.xlu0 %v1338, 64
      %v1611 = vpop.permute.xlu0 %1610
      %v1613 = vsel %vm1220, %v1501, 0
      %v1616 = vsel %vm1509, %v1611, 0
      %1618 = vmatpush.bf16.msra.mxu0 0
      %1619 = vmatpush.bf16.msra.mxu0 0
      %1620 = vmatpush.bf16.msra.mxu0 0
      %1621 = vmatpush.bf16.msra.mxu0 0
      %1622 = vmatpush.bf16.msra.mxu0 0
      %1623 = vmatpush.bf16.msra.mxu0 0
      %1624 = vmatpush.bf16.msra.mxu0 0
      %1625 = vmatpush.bf16.msra.mxu0 %v1616
      %1626 = vmatmul.bf16.gmra.mxu0 %v1613
      %v1627 = vpop.f32.mrf.mxu0
      %v1628 = vadd.f32 0.0, %v1627
      %v1629 = vpop.f32.mrf.mxu0
      %1630 = vdwg.mxu0
      %1631 = vrot.lane.b32.xlu0 %v1362, 64
      %v1632 = vpop.permute.xlu0 %1631
      %v1634 = vsel %vm1220, %v1502, 0
      %v1637 = vsel %vm1509, %v1632, 0
      %1639 = vmatpush.bf16.msra.mxu0 0
      %1640 = vmatpush.bf16.msra.mxu0 0
      %1641 = vmatpush.bf16.msra.mxu0 0
      %1642 = vmatpush.bf16.msra.mxu0 0
      %1643 = vmatpush.bf16.msra.mxu0 0
      %1644 = vmatpush.bf16.msra.mxu0 0
      %1645 = vmatpush.bf16.msra.mxu0 0
      %1646 = vmatpush.bf16.msra.mxu0 %v1637
      %1647 = vmatmul.bf16.gmra.mxu0 %v1634
      %v1648 = vpop.f32.mrf.mxu0
      %v1649 = vadd.f32 0.0, %v1648
      %v1650 = vpop.f32.mrf.mxu0
      %1651 = vdwg.mxu0
      %1652 = vrot.lane.b32.xlu0 %v1386, 64
      %v1653 = vpop.permute.xlu0 %1652
      %v1655 = vsel %vm1220, %v1503, 0
      %v1658 = vsel %vm1509, %v1653, 0
      %1660 = vmatpush.bf16.msra.mxu0 0
      %1661 = vmatpush.bf16.msra.mxu0 0
      %1662 = vmatpush.bf16.msra.mxu0 0
      %1663 = vmatpush.bf16.msra.mxu0 0
      %1664 = vmatpush.bf16.msra.mxu0 0
      %1665 = vmatpush.bf16.msra.mxu0 0
      %1666 = vmatpush.bf16.msra.mxu0 0
      %1667 = vmatpush.bf16.msra.mxu0 %v1658
      %1668 = vmatmul.bf16.gmra.mxu0 %v1655
      %v1669 = vpop.f32.mrf.mxu0
      %v1670 = vadd.f32 0.0, %v1669
      %v1671 = vpop.f32.mrf.mxu0
      %1672 = vdwg.mxu0
      %1675 = vrot.lane.b32.xlu0 %v1565, 8
      %v1676 = vpop.permute.xlu0 %1675
      %1677 = vrot.lane.b32.xlu0 %v1586, 8
      %v1678 = vpop.permute.xlu0 %1677
      %1683 = vrot.lane.b32.xlu0 %v1607, 16
      %v1684 = vpop.permute.xlu0 %1683
      %1685 = vrot.lane.b32.xlu0 %v1628, 16
      %v1686 = vpop.permute.xlu0 %1685
      %1691 = vrot.lane.b32.xlu0 %v1649, 24
      %v1692 = vpop.permute.xlu0 %1691
      %1693 = vrot.lane.b32.xlu0 %v1670, 24
      %v1694 = vpop.permute.xlu0 %1693
      %v1697 = vsel %vm1220, %v1523, %v1676
      %v1698 = vsel %vm1220, %v1544, %v1678
      %vm1699 = vcmask 130048
      %v1700 = vsel %vm1699, %v1697, %v1684
      %v1701 = vsel %vm1699, %v1698, %v1686
      %vm1702 = vcmask 195584
      %v1703 = vsel %vm1702, %v1700, %v1692
      %v1704 = vsel %vm1702, %v1701, %v1694
      %v1705 = vpack.c.bf16 %v1704, %v1703
      %v1706 = vld [vmem:[%s837] sm:$0xf]
      %v1707 = vld [vmem:[%s837 + $0x4] sm:$0xf]
      %v1708 = vld [vmem:[%s837 + $0x8] sm:$0xf]
      %v1709 = vld [vmem:[%s837 + $0xc] sm:$0xf]
      %v1710 = vld [vmem:[%s841] sm:$0x1]
      %v1712 = vperm.slane %v1710, 0
      %v1718 = vunpack.c.l.b16 %v1706
      %v1719 = vunpack.c.l.b16 %v1707
      %v1720 = vunpack.c.l.b16 %v1708
      %v1721 = vunpack.c.l.b16 %v1709
      %v1722 = vpack.c.b16 %v1719, %v1718
      %v1723 = vpack.c.b16 %v1721, %v1720
      %v1727 = vsel %vm1087, %v1705, 0
      %1729 = vmatpush.bf16.msra.mxu0 0
      %1730 = vmatpush.bf16.msra.mxu0 0
      %1731 = vmatpush.bf16.msra.mxu0 0
      %1732 = vmatpush.bf16.msra.mxu0 0
      %1733 = vmatpush.bf16.msra.mxu0 0
      %1734 = vmatpush.bf16.msra.mxu0 0
      %1735 = vmatpush.bf16.msra.mxu0 %v1723
      %1736 = vmatpush.bf16.msra.mxu0 %v1722
      %1737 = vmatmul.bf16.gmra.mxu0 %v1727
      %v1738 = vpop.f32.mrf.mxu0
      %v1739 = vadd.f32 %v1712, %v1738
      %v1740 = vpop.f32.mrf.mxu0
      %v1741 = vadd.f32 %v1712, %v1740
      %1742 = vdwg.mxu0
      %v1743 = vadd.f32 %v1068, %v1739
      %v1744 = vadd.f32 %v1069, %v1741
      %v1745 = vld [vmem:[%s845] sm:$0x1]
      %v1746 = vld [vmem:[%s849] sm:$0x1]
      %v1747 = vsel %vm1087, %v1743, 0.0
      %1748 = vadd.xlane.f32.xlu0 %v1747
      %v1749 = vpop.xlane.xlu0 %1748
      %v1750 = vsel %vm1087, %v1744, 0.0
      %1751 = vadd.xlane.f32.xlu0 %v1750
      %v1752 = vpop.xlane.xlu0 %1751
      %v1753 = vmul.f32 %v1749, %v1100
      %v1754 = vmul.f32 %v1752, %v1100
      %v1755 = vsub.f32 %v1743, %v1753
      %v1756 = vsub.f32 %v1744, %v1754
      %v1757 = vmul.f32 %v1755, %v1755
      %v1758 = vmul.f32 %v1756, %v1756
      %v1759 = vsel %vm1087, %v1757, 0.0
      %1760 = vadd.xlane.f32.xlu0 %v1759
      %v1761 = vpop.xlane.xlu0 %1760
      %v1762 = vsel %vm1087, %v1758, 0.0
      %1763 = vadd.xlane.f32.xlu0 %v1762
      %v1764 = vpop.xlane.xlu0 %1763
      %v1765 = vmul.f32 %v1761, %v1100
      %v1766 = vmul.f32 %v1764, %v1100
      %v1767 = vadd.f32 %v1765, 1e-05
      %v1768 = vadd.f32 %v1766, 1e-05
      %v1769 = vrsqrt.pop %v1767
      %v1770 = vmul.f32 %v1769, %v1767
      %v1771 = vmul.f32 %v1770, %v1769
      %v1772 = vmul.f32 0.5, %v1771
      %v1773 = vsub.f32 1.5, %v1772
      %v1774 = vmul.f32 %v1769, %v1773
      %vm1775 = vweird.f32 %v1767
      %vm1776 = vweird.f32 %v1769
      %vm1777 = vmor %vm1775, %vm1776
      %v1778 = vsel %vm1777, %v1769, %v1774
      %v1779 = vrsqrt.pop %v1768
      %v1780 = vmul.f32 %v1779, %v1768
      %v1781 = vmul.f32 %v1780, %v1779
      %v1782 = vmul.f32 0.5, %v1781
      %v1783 = vsub.f32 1.5, %v1782
      %v1784 = vmul.f32 %v1779, %v1783
      %vm1785 = vweird.f32 %v1768
      %vm1786 = vweird.f32 %v1779
      %vm1787 = vmor %vm1785, %vm1786
      %v1788 = vsel %vm1787, %v1779, %v1784
      %v1789 = vmul.f32 %v1755, %v1778
      %v1790 = vmul.f32 %v1756, %v1788
      %v1792 = vperm.slane %v1745, 0
      %v1794 = vmul.f32 %v1789, %v1792
      %v1795 = vmul.f32 %v1790, %v1792
      %v1797 = vperm.slane %v1746, 0
      %v1799 = vadd.f32 %v1794, %v1797
      %v1800 = vadd.f32 %v1795, %v1797
      %v1801 = vpack.c.bf16 %v1800, %v1799
      %v1802 = vld [vmem:[%s854] sm:$0xf]
      %v1803 = vld [vmem:[%s854 + $0x4] sm:$0xf]
      %v1804 = vld [vmem:[%s854 + $0x8] sm:$0xf]
      %v1805 = vld [vmem:[%s854 + $0xc] sm:$0xf]
      %v1806 = vld [vmem:[%s858] sm:$0x1]
      %v1808 = vperm.slane %v1806, 0
      %v1814 = vunpack.c.l.b16 %v1802
      %v1815 = vunpack.c.l.b16 %v1803
      %v1816 = vunpack.c.l.b16 %v1804
      %v1817 = vunpack.c.l.b16 %v1805
      %v1818 = vpack.c.b16 %v1815, %v1814
      %v1819 = vpack.c.b16 %v1817, %v1816
      %v1823 = vsel %vm1087, %v1801, 0
      %1825 = vmatpush.bf16.msra.mxu0 0
      %1826 = vmatpush.bf16.msra.mxu0 0
      %1827 = vmatpush.bf16.msra.mxu0 0
      %1828 = vmatpush.bf16.msra.mxu0 0
      %1829 = vmatpush.bf16.msra.mxu0 0
      %1830 = vmatpush.bf16.msra.mxu0 0
      %1831 = vmatpush.bf16.msra.mxu0 %v1819
      %1832 = vmatpush.bf16.msra.mxu0 %v1818
      %1833 = vmatmul.bf16.gmra.mxu0 %v1823
      %v1834 = vpop.f32.mrf.mxu0
      %v1835 = vadd.f32 %v1808, %v1834
      %v1836 = vpop.f32.mrf.mxu0
      %v1837 = vadd.f32 %v1808, %v1836
      %1838 = vdwg.mxu0
      %v1839 = vmul.f32 %v1835, 0.5
      %v1840 = vmul.f32 %v1837, 0.5
      %v1841 = vmul.f32 %v1835, 0.044715
      %v1842 = vmul.f32 %v1837, 0.044715
      %v1843 = vmul.f32 %v1841, %v1835
      %v1844 = vmul.f32 %v1842, %v1837
      %v1845 = vmul.f32 %v1843, %v1835
      %v1846 = vmul.f32 %v1844, %v1837
      %v1847 = vadd.f32 %v1835, %v1845
      %v1848 = vadd.f32 %v1837, %v1846
      %v1849 = vmul.f32 %v1847, 0.7978846
      %v1850 = vmul.f32 %v1848, 0.7978846
      %v1851 = vtanh.pop %v1849
      %v1852 = vtanh.pop %v1850
      %v1853 = vadd.f32 %v1851, 1.0
      %v1854 = vadd.f32 %v1852, 1.0
      %v1855 = vmul.f32 %v1839, %v1853
      %v1856 = vmul.f32 %v1840, %v1854
      %v1857 = vpack.c.bf16 %v1856, %v1855
      %v1858 = vld [vmem:[%s863] sm:$0xf]
      %v1859 = vld [vmem:[%s863 + $0x4] sm:$0xf]
      %v1860 = vld [vmem:[%s863 + $0x8] sm:$0xf]
      %v1861 = vld [vmem:[%s863 + $0xc] sm:$0xf]
      %v1862 = vld [vmem:[%s863 + $0x10] sm:$0xf]
      %v1863 = vld [vmem:[%s863 + $0x14] sm:$0xf]
      %v1864 = vld [vmem:[%s863 + $0x18] sm:$0xf]
      %v1865 = vld [vmem:[%s863 + $0x1c] sm:$0xf]
      %v1866 = vld [vmem:[%s863 + $0x20] sm:$0xf]
      %v1867 = vld [vmem:[%s863 + $0x24] sm:$0xf]
      %v1868 = vld [vmem:[%s863 + $0x28] sm:$0xf]
      %v1869 = vld [vmem:[%s863 + $0x2c] sm:$0xf]
      %v1870 = vld [vmem:[%s863 + $0x30] sm:$0xf]
      %v1871 = vld [vmem:[%s863 + $0x34] sm:$0xf]
      %v1872 = vld [vmem:[%s863 + $0x38] sm:$0xf]
      %v1873 = vld [vmem:[%s863 + $0x3c] sm:$0xf]
      %v1874 = vld [vmem:[%s867] sm:$0x1]
      %v1876 = vperm.slane %v1874, 0
      %v1894 = vunpack.c.l.b16 %v1858
      %v1895 = vunpack.c.l.b16 %v1859
      %v1896 = vunpack.c.l.b16 %v1860
      %v1897 = vunpack.c.l.b16 %v1861
      %v1898 = vunpack.c.l.b16 %v1862
      %v1899 = vunpack.c.l.b16 %v1863
      %v1900 = vunpack.c.l.b16 %v1864
      %v1901 = vunpack.c.l.b16 %v1865
      %v1902 = vunpack.c.l.b16 %v1866
      %v1903 = vunpack.c.l.b16 %v1867
      %v1904 = vunpack.c.l.b16 %v1868
      %v1905 = vunpack.c.l.b16 %v1869
      %v1906 = vunpack.c.l.b16 %v1870
      %v1907 = vunpack.c.l.b16 %v1871
      %v1908 = vunpack.c.l.b16 %v1872
      %v1909 = vunpack.c.l.b16 %v1873
      %v1910 = vpack.c.b16 %v1895, %v1894
      %v1911 = vpack.c.b16 %v1897, %v1896
      %v1912 = vpack.c.b16 %v1899, %v1898
      %v1913 = vpack.c.b16 %v1901, %v1900
      %v1914 = vpack.c.b16 %v1903, %v1902
      %v1915 = vpack.c.b16 %v1905, %v1904
      %v1916 = vpack.c.b16 %v1907, %v1906
      %v1917 = vpack.c.b16 %v1909, %v1908
      %1926 = vmatpush.bf16.msra.mxu0 %v1917
      %1927 = vmatpush.bf16.msra.mxu0 %v1916
      %1928 = vmatpush.bf16.msra.mxu0 %v1915
      %1929 = vmatpush.bf16.msra.mxu0 %v1914
      %1930 = vmatpush.bf16.msra.mxu0 %v1913
      %1931 = vmatpush.bf16.msra.mxu0 %v1912
      %1932 = vmatpush.bf16.msra.mxu0 %v1911
      %1933 = vmatpush.bf16.msra.mxu0 %v1910
      %1934 = vmatmul.bf16.gmra.mxu0 %v1857
      %v1935 = vpop.f32.mrf.mxu0
      %v1936 = vadd.f32 %v1876, %v1935
      %v1937 = vpop.f32.mrf.mxu0
      %v1938 = vadd.f32 %v1876, %v1937
      %1939 = vdwg.mxu0
      %v1940 = vadd.f32 %v1743, %v1936
      %v1941 = vadd.f32 %v1744, %v1938
      %s1942 = scalar_lea.vmem %s819, 1
      %v1943 = vld [vmem:[%s1942] sm:$0x1]
      %s1944 = scalar_lea.vmem %s823, 1
      %v1945 = vld [vmem:[%s1944] sm:$0x1]
      %v1946 = vsel %vm1087, %v1940, 0.0
      %1947 = vadd.xlane.f32.xlu0 %v1946
      %v1948 = vpop.xlane.xlu0 %1947
      %v1949 = vsel %vm1087, %v1941, 0.0
      %1950 = vadd.xlane.f32.xlu0 %v1949
      %v1951 = vpop.xlane.xlu0 %1950
      %v1952 = vmul.f32 %v1948, %v1100
      %v1953 = vmul.f32 %v1951, %v1100
      %v1954 = vsub.f32 %v1940, %v1952
      %v1955 = vsub.f32 %v1941, %v1953
      %v1956 = vmul.f32 %v1954, %v1954
      %v1957 = vmul.f32 %v1955, %v1955
      %v1958 = vsel %vm1087, %v1956, 0.0
      %1959 = vadd.xlane.f32.xlu0 %v1958
      %v1960 = vpop.xlane.xlu0 %1959
      %v1961 = vsel %vm1087, %v1957, 0.0
      %1962 = vadd.xlane.f32.xlu0 %v1961
      %v1963 = vpop.xlane.xlu0 %1962
      %v1964 = vmul.f32 %v1960, %v1100
      %v1965 = vmul.f32 %v1963, %v1100
      %v1966 = vadd.f32 %v1964, 1e-05
      %v1967 = vadd.f32 %v1965, 1e-05
      %v1968 = vrsqrt.pop %v1966
      %v1969 = vmul.f32 %v1968, %v1966
      %v1970 = vmul.f32 %v1969, %v1968
      %v1971 = vmul.f32 0.5, %v1970
      %v1972 = vsub.f32 1.5, %v1971
      %v1973 = vmul.f32 %v1968, %v1972
      %vm1974 = vweird.f32 %v1966
      %vm1975 = vweird.f32 %v1968
      %vm1976 = vmor %vm1974, %vm1975
      %v1977 = vsel %vm1976, %v1968, %v1973
      %v1978 = vrsqrt.pop %v1967
      %v1979 = vmul.f32 %v1978, %v1967
      %v1980 = vmul.f32 %v1979, %v1978
      %v1981 = vmul.f32 0.5, %v1980
      %v1982 = vsub.f32 1.5, %v1981
      %v1983 = vmul.f32 %v1978, %v1982
      %vm1984 = vweird.f32 %v1967
      %vm1985 = vweird.f32 %v1978
      %vm1986 = vmor %vm1984, %vm1985
      %v1987 = vsel %vm1986, %v1978, %v1983
      %v1988 = vmul.f32 %v1954, %v1977
      %v1989 = vmul.f32 %v1955, %v1987
      %v1991 = vperm.slane %v1943, 0
      %v1993 = vmul.f32 %v1988, %v1991
      %v1994 = vmul.f32 %v1989, %v1991
      %v1996 = vperm.slane %v1945, 0
      %v1998 = vadd.f32 %v1993, %v1996
      %v1999 = vadd.f32 %v1994, %v1996
      %v2000 = vpack.c.bf16 %v1999, %v1998
      %s2001 = scalar_lea.vmem %s828, 16
      %v2002 = vld [vmem:[%s2001] sm:$0xf]
      %v2003 = vld [vmem:[%s2001 + $0x4] sm:$0xf]
      %v2004 = vld [vmem:[%s2001 + $0x8] sm:$0xf]
      %v2005 = vld [vmem:[%s2001 + $0xc] sm:$0xf]
      %s2006 = scalar_lea.vmem %s832, 1
      %v2007 = vld [vmem:[%s2006] sm:$0x1]
      %v2009 = vperm.slane %v2007, 0
      %v2015 = vunpack.c.l.b16 %v2002
      %v2016 = vunpack.c.l.b16 %v2003
      %v2017 = vunpack.c.l.b16 %v2004
      %v2018 = vunpack.c.l.b16 %v2005
      %v2019 = vpack.c.b16 %v2016, %v2015
      %v2020 = vpack.c.b16 %v2018, %v2017
      %v2024 = vsel %vm1087, %v2000, 0
      %2026 = vmatpush.bf16.msra.mxu0 0
      %2027 = vmatpush.bf16.msra.mxu0 0
      %2028 = vmatpush.bf16.msra.mxu0 0
      %2029 = vmatpush.bf16.msra.mxu0 0
      %2030 = vmatpush.bf16.msra.mxu0 0
      %2031 = vmatpush.bf16.msra.mxu0 0
      %2032 = vmatpush.bf16.msra.mxu0 %v2020
      %2033 = vmatpush.bf16.msra.mxu0 %v2019
      %2034 = vmatmul.bf16.gmra.mxu0 %v2024
      %v2035 = vpop.f32.mrf.mxu0
      %v2036 = vadd.f32 %v2009, %v2035
      %v2037 = vpop.f32.mrf.mxu0
      %v2038 = vadd.f32 %v2009, %v2037
      %2039 = vdwg.mxu0
      %2042 = vrot.lane.b32.xlu0 %v2036, 120
      %v2043 = vpop.permute.xlu0 %2042
      %2044 = vrot.lane.b32.xlu0 %v2038, 120
      %v2045 = vpop.permute.xlu0 %2044
      %2048 = vrot.lane.b32.xlu0 %v2036, 112
      %v2049 = vpop.permute.xlu0 %2048
      %2050 = vrot.lane.b32.xlu0 %v2038, 112
      %v2051 = vpop.permute.xlu0 %2050
      %2054 = vrot.lane.b32.xlu0 %v2036, 104
      %v2055 = vpop.permute.xlu0 %2054
      %2056 = vrot.lane.b32.xlu0 %v2038, 104
      %v2057 = vpop.permute.xlu0 %2056
      %v2060 = vpack.c.bf16 %v2036, %v2036
      %v2061 = vpack.c.bf16 %v2038, %v2038
      %v2062 = vpack.c.bf16 %v2043, %v2043
      %v2063 = vpack.c.bf16 %v2045, %v2045
      %v2064 = vpack.c.bf16 %v2049, %v2049
      %v2065 = vpack.c.bf16 %v2051, %v2051
      %v2066 = vpack.c.bf16 %v2055, %v2055
      %v2067 = vpack.c.bf16 %v2057, %v2057
      %v2069 = vunpack.c.l.b16 %v2060
      %v2070 = vpack.c.b16 %v2069, %v2069
      %2071 = vrot.lane.b32.xlu0 %v2070, 96
      %v2072 = vpop.permute.xlu0 %2071
      %v2074 = vsel %vm1220, %v2060, 0
      %v2077 = vsel %vm1220, %v2072, 0
      %2079 = vmatpush.bf16.xpose.msra.mxu0 0
      %2080 = vmatpush.bf16.xpose.msra.mxu0 0
      %2081 = vmatpush.bf16.xpose.msra.mxu0 0
      %2082 = vmatpush.bf16.xpose.msra.mxu0 0
      %2083 = vmatpush.bf16.xpose.msra.mxu0 0
      %2084 = vmatpush.bf16.xpose.msra.mxu0 0
      %2085 = vmatpush.bf16.xpose.msra.mxu0 0
      %2086 = vmatpush.bf16.xpose.msra.mxu0 %v2077
      %2087 = vmatmul.bf16.gmra.mxu0 %v2074
      %v2088 = vpop.f32.mrf.mxu0
      %v2089 = vadd.f32 %v1084, %v2088
      %v2090 = vpop.f32.mrf.mxu0
      %2091 = vdwg.mxu0
      %v2093 = vunpack.c.l.b16 %v2061
      %v2094 = vpack.c.b16 %v2093, %v2093
      %2095 = vrot.lane.b32.xlu0 %v2094, 96
      %v2096 = vpop.permute.xlu0 %2095
      %v2098 = vsel %vm1220, %v2061, 0
      %v2101 = vsel %vm1220, %v2096, 0
      %2103 = vmatpush.bf16.xpose.msra.mxu0 0
      %2104 = vmatpush.bf16.xpose.msra.mxu0 0
      %2105 = vmatpush.bf16.xpose.msra.mxu0 0
      %2106 = vmatpush.bf16.xpose.msra.mxu0 0
      %2107 = vmatpush.bf16.xpose.msra.mxu0 0
      %2108 = vmatpush.bf16.xpose.msra.mxu0 0
      %2109 = vmatpush.bf16.xpose.msra.mxu0 0
      %2110 = vmatpush.bf16.xpose.msra.mxu0 %v2101
      %2111 = vmatmul.bf16.gmra.mxu0 %v2098
      %v2112 = vpop.f32.mrf.mxu0
      %v2113 = vadd.f32 %v1084, %v2112
      %v2114 = vpop.f32.mrf.mxu0
      %2115 = vdwg.mxu0
      %v2117 = vunpack.c.l.b16 %v2062
      %v2118 = vpack.c.b16 %v2117, %v2117
      %2119 = vrot.lane.b32.xlu0 %v2118, 96
      %v2120 = vpop.permute.xlu0 %2119
      %v2122 = vsel %vm1220, %v2062, 0
      %v2125 = vsel %vm1220, %v2120, 0
      %2127 = vmatpush.bf16.xpose.msra.mxu0 0
      %2128 = vmatpush.bf16.xpose.msra.mxu0 0
      %2129 = vmatpush.bf16.xpose.msra.mxu0 0
      %2130 = vmatpush.bf16.xpose.msra.mxu0 0
      %2131 = vmatpush.bf16.xpose.msra.mxu0 0
      %2132 = vmatpush.bf16.xpose.msra.mxu0 0
      %2133 = vmatpush.bf16.xpose.msra.mxu0 0
      %2134 = vmatpush.bf16.xpose.msra.mxu0 %v2125
      %2135 = vmatmul.bf16.gmra.mxu0 %v2122
      %v2136 = vpop.f32.mrf.mxu0
      %v2137 = vadd.f32 %v1084, %v2136
      %v2138 = vpop.f32.mrf.mxu0
      %2139 = vdwg.mxu0
      %v2141 = vunpack.c.l.b16 %v2063
      %v2142 = vpack.c.b16 %v2141, %v2141
      %2143 = vrot.lane.b32.xlu0 %v2142, 96
      %v2144 = vpop.permute.xlu0 %2143
      %v2146 = vsel %vm1220, %v2063, 0
      %v2149 = vsel %vm1220, %v2144, 0
      %2151 = vmatpush.bf16.xpose.msra.mxu0 0
      %2152 = vmatpush.bf16.xpose.msra.mxu0 0
      %2153 = vmatpush.bf16.xpose.msra.mxu0 0
      %2154 = vmatpush.bf16.xpose.msra.mxu0 0
      %2155 = vmatpush.bf16.xpose.msra.mxu0 0
      %2156 = vmatpush.bf16.xpose.msra.mxu0 0
      %2157 = vmatpush.bf16.xpose.msra.mxu0 0
      %2158 = vmatpush.bf16.xpose.msra.mxu0 %v2149
      %2159 = vmatmul.bf16.gmra.mxu0 %v2146
      %v2160 = vpop.f32.mrf.mxu0
      %v2161 = vadd.f32 %v1084, %v2160
      %v2162 = vpop.f32.mrf.mxu0
      %2163 = vdwg.mxu0
      %v2165 = vunpack.c.l.b16 %v2064
      %v2166 = vpack.c.b16 %v2165, %v2165
      %2167 = vrot.lane.b32.xlu0 %v2166, 96
      %v2168 = vpop.permute.xlu0 %2167
      %v2170 = vsel %vm1220, %v2064, 0
      %v2173 = vsel %vm1220, %v2168, 0
      %2175 = vmatpush.bf16.xpose.msra.mxu0 0
      %2176 = vmatpush.bf16.xpose.msra.mxu0 0
      %2177 = vmatpush.bf16.xpose.msra.mxu0 0
      %2178 = vmatpush.bf16.xpose.msra.mxu0 0
      %2179 = vmatpush.bf16.xpose.msra.mxu0 0
      %2180 = vmatpush.bf16.xpose.msra.mxu0 0
      %2181 = vmatpush.bf16.xpose.msra.mxu0 0
      %2182 = vmatpush.bf16.xpose.msra.mxu0 %v2173
      %2183 = vmatmul.bf16.gmra.mxu0 %v2170
      %v2184 = vpop.f32.mrf.mxu0
      %v2185 = vadd.f32 %v1084, %v2184
      %v2186 = vpop.f32.mrf.mxu0
      %2187 = vdwg.mxu0
      %v2189 = vunpack.c.l.b16 %v2065
      %v2190 = vpack.c.b16 %v2189, %v2189
      %2191 = vrot.lane.b32.xlu0 %v2190, 96
      %v2192 = vpop.permute.xlu0 %2191
      %v2194 = vsel %vm1220, %v2065, 0
      %v2197 = vsel %vm1220, %v2192, 0
      %2199 = vmatpush.bf16.xpose.msra.mxu0 0
      %2200 = vmatpush.bf16.xpose.msra.mxu0 0
      %2201 = vmatpush.bf16.xpose.msra.mxu0 0
      %2202 = vmatpush.bf16.xpose.msra.mxu0 0
      %2203 = vmatpush.bf16.xpose.msra.mxu0 0
      %2204 = vmatpush.bf16.xpose.msra.mxu0 0
      %2205 = vmatpush.bf16.xpose.msra.mxu0 0
      %2206 = vmatpush.bf16.xpose.msra.mxu0 %v2197
      %2207 = vmatmul.bf16.gmra.mxu0 %v2194
      %v2208 = vpop.f32.mrf.mxu0
      %v2209 = vadd.f32 %v1084, %v2208
      %v2210 = vpop.f32.mrf.mxu0
      %2211 = vdwg.mxu0
      %v2213 = vunpack.c.l.b16 %v2066
      %v2214 = vpack.c.b16 %v2213, %v2213
      %2215 = vrot.lane.b32.xlu0 %v2214, 96
      %v2216 = vpop.permute.xlu0 %2215
      %v2218 = vsel %vm1220, %v2066, 0
      %v2221 = vsel %vm1220, %v2216, 0
      %2223 = vmatpush.bf16.xpose.msra.mxu0 0
      %2224 = vmatpush.bf16.xpose.msra.mxu0 0
      %2225 = vmatpush.bf16.xpose.msra.mxu0 0
      %2226 = vmatpush.bf16.xpose.msra.mxu0 0
      %2227 = vmatpush.bf16.xpose.msra.mxu0 0
      %2228 = vmatpush.bf16.xpose.msra.mxu0 0
      %2229 = vmatpush.bf16.xpose.msra.mxu0 0
      %2230 = vmatpush.bf16.xpose.msra.mxu0 %v2221
      %2231 = vmatmul.bf16.gmra.mxu0 %v2218
      %v2232 = vpop.f32.mrf.mxu0
      %v2233 = vadd.f32 %v1084, %v2232
      %v2234 = vpop.f32.mrf.mxu0
      %2235 = vdwg.mxu0
      %v2237 = vunpack.c.l.b16 %v2067
      %v2238 = vpack.c.b16 %v2237, %v2237
      %2239 = vrot.lane.b32.xlu0 %v2238, 96
      %v2240 = vpop.permute.xlu0 %2239
      %v2242 = vsel %vm1220, %v2067, 0
      %v2245 = vsel %vm1220, %v2240, 0
      %2247 = vmatpush.bf16.xpose.msra.mxu0 0
      %2248 = vmatpush.bf16.xpose.msra.mxu0 0
      %2249 = vmatpush.bf16.xpose.msra.mxu0 0
      %2250 = vmatpush.bf16.xpose.msra.mxu0 0
      %2251 = vmatpush.bf16.xpose.msra.mxu0 0
      %2252 = vmatpush.bf16.xpose.msra.mxu0 0
      %2253 = vmatpush.bf16.xpose.msra.mxu0 0
      %2254 = vmatpush.bf16.xpose.msra.mxu0 %v2245
      %2255 = vmatmul.bf16.gmra.mxu0 %v2242
      %v2256 = vpop.f32.mrf.mxu0
      %v2257 = vadd.f32 %v1084, %v2256
      %v2258 = vpop.f32.mrf.mxu0
      %2259 = vdwg.mxu0
      %v2260 = vsel %vm1220, %v2089, -inf
      %2261 = vmax.xlane.f32.xlu0 %v2260
      %v2262 = vpop.xlane.xlu0 %2261
      %v2263 = vsel %vm1220, %v2113, -inf
      %2264 = vmax.xlane.f32.xlu0 %v2263
      %v2265 = vpop.xlane.xlu0 %2264
      %v2266 = vsel %vm1220, %v2137, -inf
      %2267 = vmax.xlane.f32.xlu0 %v2266
      %v2268 = vpop.xlane.xlu0 %2267
      %v2269 = vsel %vm1220, %v2161, -inf
      %2270 = vmax.xlane.f32.xlu0 %v2269
      %v2271 = vpop.xlane.xlu0 %2270
      %v2272 = vsel %vm1220, %v2185, -inf
      %2273 = vmax.xlane.f32.xlu0 %v2272
      %v2274 = vpop.xlane.xlu0 %2273
      %v2275 = vsel %vm1220, %v2209, -inf
      %2276 = vmax.xlane.f32.xlu0 %v2275
      %v2277 = vpop.xlane.xlu0 %2276
      %v2278 = vsel %vm1220, %v2233, -inf
      %2279 = vmax.xlane.f32.xlu0 %v2278
      %v2280 = vpop.xlane.xlu0 %2279
      %v2281 = vsel %vm1220, %v2257, -inf
      %2282 = vmax.xlane.f32.xlu0 %v2281
      %v2283 = vpop.xlane.xlu0 %2282
      %v2284 = vsub.f32 %v2089, %v2262
      %v2285 = vsub.f32 %v2113, %v2265
      %v2286 = vsub.f32 %v2137, %v2268
      %v2287 = vsub.f32 %v2161, %v2271
      %v2288 = vsub.f32 %v2185, %v2274
      %v2289 = vsub.f32 %v2209, %v2277
      %v2290 = vsub.f32 %v2233, %v2280
      %v2291 = vsub.f32 %v2257, %v2283
      %v2292 = vmul.f32 %v2284, 1.442695
      %v2293 = vpow.pop %v2292
      %v2294 = vmul.f32 %v2285, 1.442695
      %v2295 = vpow.pop %v2294
      %v2296 = vmul.f32 %v2286, 1.442695
      %v2297 = vpow.pop %v2296
      %v2298 = vmul.f32 %v2287, 1.442695
      %v2299 = vpow.pop %v2298
      %v2300 = vmul.f32 %v2288, 1.442695
      %v2301 = vpow.pop %v2300
      %v2302 = vmul.f32 %v2289, 1.442695
      %v2303 = vpow.pop %v2302
      %v2304 = vmul.f32 %v2290, 1.442695
      %v2305 = vpow.pop %v2304
      %v2306 = vmul.f32 %v2291, 1.442695
      %v2307 = vpow.pop %v2306
      %v2308 = vsel %vm1220, %v2293, 0.0
      %2309 = vadd.xlane.f32.xlu0 %v2308
      %v2310 = vpop.xlane.xlu0 %2309
      %v2311 = vsel %vm1220, %v2295, 0.0
      %2312 = vadd.xlane.f32.xlu0 %v2311
      %v2313 = vpop.xlane.xlu0 %2312
      %v2314 = vsel %vm1220, %v2297, 0.0
      %2315 = vadd.xlane.f32.xlu0 %v2314
      %v2316 = vpop.xlane.xlu0 %2315
      %v2317 = vsel %vm1220, %v2299, 0.0
      %2318 = vadd.xlane.f32.xlu0 %v2317
      %v2319 = vpop.xlane.xlu0 %2318
      %v2320 = vsel %vm1220, %v2301, 0.0
      %2321 = vadd.xlane.f32.xlu0 %v2320
      %v2322 = vpop.xlane.xlu0 %2321
      %v2323 = vsel %vm1220, %v2303, 0.0
      %2324 = vadd.xlane.f32.xlu0 %v2323
      %v2325 = vpop.xlane.xlu0 %2324
      %v2326 = vsel %vm1220, %v2305, 0.0
      %2327 = vadd.xlane.f32.xlu0 %v2326
      %v2328 = vpop.xlane.xlu0 %2327
      %v2329 = vsel %vm1220, %v2307, 0.0
      %2330 = vadd.xlane.f32.xlu0 %v2329
      %v2331 = vpop.xlane.xlu0 %2330
      %v2332 = vrcp.pop %v2310
      %v2333 = vrcp.pop %v2313
      %v2334 = vrcp.pop %v2316
      %v2335 = vrcp.pop %v2319
      %v2336 = vrcp.pop %v2322
      %v2337 = vrcp.pop %v2325
      %v2338 = vrcp.pop %v2328
      %v2339 = vrcp.pop %v2331
      %v2340 = vmul.f32 %v2293, %v2332
      %v2341 = vmul.f32 %v2295, %v2333
      %v2342 = vmul.f32 %v2297, %v2334
      %v2343 = vmul.f32 %v2299, %v2335
      %v2344 = vmul.f32 %v2301, %v2336
      %v2345 = vmul.f32 %v2303, %v2337
      %v2346 = vmul.f32 %v2305, %v2338
      %v2347 = vmul.f32 %v2307, %v2339
      %v2348 = vpack.c.bf16 %v2340, %v2340
      %v2349 = vpack.c.bf16 %v2341, %v2341
      %v2350 = vpack.c.bf16 %v2342, %v2342
      %v2351 = vpack.c.bf16 %v2343, %v2343
      %v2352 = vpack.c.bf16 %v2344, %v2344
      %v2353 = vpack.c.bf16 %v2345, %v2345
      %v2354 = vpack.c.bf16 %v2346, %v2346
      %v2355 = vpack.c.bf16 %v2347, %v2347
      %2356 = vrot.lane.b32.xlu0 %v2070, 64
      %v2357 = vpop.permute.xlu0 %2356
      %v2359 = vsel %vm1220, %v2348, 0
      %v2362 = vsel %vm1509, %v2357, 0
      %2364 = vmatpush.bf16.msra.mxu0 0
      %2365 = vmatpush.bf16.msra.mxu0 0
      %2366 = vmatpush.bf16.msra.mxu0 0
      %2367 = vmatpush.bf16.msra.mxu0 0
      %2368 = vmatpush.bf16.msra.mxu0 0
      %2369 = vmatpush.bf16.msra.mxu0 0
      %2370 = vmatpush.bf16.msra.mxu0 0
      %2371 = vmatpush.bf16.msra.mxu0 %v2362
      %2372 = vmatmul.bf16.gmra.mxu0 %v2359
      %v2373 = vpop.f32.mrf.mxu0
      %v2374 = vadd.f32 0.0, %v2373
      %v2375 = vpop.f32.mrf.mxu0
      %2376 = vdwg.mxu0
      %2377 = vrot.lane.b32.xlu0 %v2094, 64
      %v2378 = vpop.permute.xlu0 %2377
      %v2380 = vsel %vm1220, %v2349, 0
      %v2383 = vsel %vm1509, %v2378, 0
      %2385 = vmatpush.bf16.msra.mxu0 0
      %2386 = vmatpush.bf16.msra.mxu0 0
      %2387 = vmatpush.bf16.msra.mxu0 0
      %2388 = vmatpush.bf16.msra.mxu0 0
      %2389 = vmatpush.bf16.msra.mxu0 0
      %2390 = vmatpush.bf16.msra.mxu0 0
      %2391 = vmatpush.bf16.msra.mxu0 0
      %2392 = vmatpush.bf16.msra.mxu0 %v2383
      %2393 = vmatmul.bf16.gmra.mxu0 %v2380
      %v2394 = vpop.f32.mrf.mxu0
      %v2395 = vadd.f32 0.0, %v2394
      %v2396 = vpop.f32.mrf.mxu0
      %2397 = vdwg.mxu0
      %2398 = vrot.lane.b32.xlu0 %v2118, 64
      %v2399 = vpop.permute.xlu0 %2398
      %v2401 = vsel %vm1220, %v2350, 0
      %v2404 = vsel %vm1509, %v2399, 0
      %2406 = vmatpush.bf16.msra.mxu0 0
      %2407 = vmatpush.bf16.msra.mxu0 0
      %2408 = vmatpush.bf16.msra.mxu0 0
      %2409 = vmatpush.bf16.msra.mxu0 0
      %2410 = vmatpush.bf16.msra.mxu0 0
      %2411 = vmatpush.bf16.msra.mxu0 0
      %2412 = vmatpush.bf16.msra.mxu0 0
      %2413 = vmatpush.bf16.msra.mxu0 %v2404
      %2414 = vmatmul.bf16.gmra.mxu0 %v2401
      %v2415 = vpop.f32.mrf.mxu0
      %v2416 = vadd.f32 0.0, %v2415
      %v2417 = vpop.f32.mrf.mxu0
      %2418 = vdwg.mxu0
      %2419 = vrot.lane.b32.xlu0 %v2142, 64
      %v2420 = vpop.permute.xlu0 %2419
      %v2422 = vsel %vm1220, %v2351, 0
      %v2425 = vsel %vm1509, %v2420, 0
      %2427 = vmatpush.bf16.msra.mxu0 0
      %2428 = vmatpush.bf16.msra.mxu0 0
      %2429 = vmatpush.bf16.msra.mxu0 0
      %2430 = vmatpush.bf16.msra.mxu0 0
      %2431 = vmatpush.bf16.msra.mxu0 0
      %2432 = vmatpush.bf16.msra.mxu0 0
      %2433 = vmatpush.bf16.msra.mxu0 0
      %2434 = vmatpush.bf16.msra.mxu0 %v2425
      %2435 = vmatmul.bf16.gmra.mxu0 %v2422
      %v2436 = vpop.f32.mrf.mxu0
      %v2437 = vadd.f32 0.0, %v2436
      %v2438 = vpop.f32.mrf.mxu0
      %2439 = vdwg.mxu0
      %2440 = vrot.lane.b32.xlu0 %v2166, 64
      %v2441 = vpop.permute.xlu0 %2440
      %v2443 = vsel %vm1220, %v2352, 0
      %v2446 = vsel %vm1509, %v2441, 0
      %2448 = vmatpush.bf16.msra.mxu0 0
      %2449 = vmatpush.bf16.msra.mxu0 0
      %2450 = vmatpush.bf16.msra.mxu0 0
      %2451 = vmatpush.bf16.msra.mxu0 0
      %2452 = vmatpush.bf16.msra.mxu0 0
      %2453 = vmatpush.bf16.msra.mxu0 0
      %2454 = vmatpush.bf16.msra.mxu0 0
      %2455 = vmatpush.bf16.msra.mxu0 %v2446
      %2456 = vmatmul.bf16.gmra.mxu0 %v2443
      %v2457 = vpop.f32.mrf.mxu0
      %v2458 = vadd.f32 0.0, %v2457
      %v2459 = vpop.f32.mrf.mxu0
      %2460 = vdwg.mxu0
      %2461 = vrot.lane.b32.xlu0 %v2190, 64
      %v2462 = vpop.permute.xlu0 %2461
      %v2464 = vsel %vm1220, %v2353, 0
      %v2467 = vsel %vm1509, %v2462, 0
      %2469 = vmatpush.bf16.msra.mxu0 0
      %2470 = vmatpush.bf16.msra.mxu0 0
      %2471 = vmatpush.bf16.msra.mxu0 0
      %2472 = vmatpush.bf16.msra.mxu0 0
      %2473 = vmatpush.bf16.msra.mxu0 0
      %2474 = vmatpush.bf16.msra.mxu0 0
      %2475 = vmatpush.bf16.msra.mxu0 0
      %2476 = vmatpush.bf16.msra.mxu0 %v2467
      %2477 = vmatmul.bf16.gmra.mxu0 %v2464
      %v2478 = vpop.f32.mrf.mxu0
      %v2479 = vadd.f32 0.0, %v2478
      %v2480 = vpop.f32.mrf.mxu0
      %2481 = vdwg.mxu0
      %2482 = vrot.lane.b32.xlu0 %v2214, 64
      %v2483 = vpop.permute.xlu0 %2482
      %v2485 = vsel %vm1220, %v2354, 0
      %v2488 = vsel %vm1509, %v2483, 0
      %2490 = vmatpush.bf16.msra.mxu0 0
      %2491 = vmatpush.bf16.msra.mxu0 0
      %2492 = vmatpush.bf16.msra.mxu0 0
      %2493 = vmatpush.bf16.msra.mxu0 0
      %2494 = vmatpush.bf16.msra.mxu0 0
      %2495 = vmatpush.bf16.msra.mxu0 0
      %2496 = vmatpush.bf16.msra.mxu0 0
      %2497 = vmatpush.bf16.msra.mxu0 %v2488
      %2498 = vmatmul.bf16.gmra.mxu0 %v2485
      %v2499 = vpop.f32.mrf.mxu0
      %v2500 = vadd.f32 0.0, %v2499
      %v2501 = vpop.f32.mrf.mxu0
      %2502 = vdwg.mxu0
      %2503 = vrot.lane.b32.xlu0 %v2238, 64
      %v2504 = vpop.permute.xlu0 %2503
      %v2506 = vsel %vm1220, %v2355, 0
      %v2509 = vsel %vm1509, %v2504, 0
      %2511 = vmatpush.bf16.msra.mxu0 0
      %2512 = vmatpush.bf16.msra.mxu0 0
      %2513 = vmatpush.bf16.msra.mxu0 0
      %2514 = vmatpush.bf16.msra.mxu0 0
      %2515 = vmatpush.bf16.msra.mxu0 0
      %2516 = vmatpush.bf16.msra.mxu0 0
      %2517 = vmatpush.bf16.msra.mxu0 0
      %2518 = vmatpush.bf16.msra.mxu0 %v2509
      %2519 = vmatmul.bf16.gmra.mxu0 %v2506
      %v2520 = vpop.f32.mrf.mxu0
      %v2521 = vadd.f32 0.0, %v2520
      %v2522 = vpop.f32.mrf.mxu0
      %2523 = vdwg.mxu0
      %2526 = vrot.lane.b32.xlu0 %v2416, 8
      %v2527 = vpop.permute.xlu0 %2526
      %2528 = vrot.lane.b32.xlu0 %v2437, 8
      %v2529 = vpop.permute.xlu0 %2528
      %2534 = vrot.lane.b32.xlu0 %v2458, 16
      %v2535 = vpop.permute.xlu0 %2534
      %2536 = vrot.lane.b32.xlu0 %v2479, 16
      %v2537 = vpop.permute.xlu0 %2536
      %2542 = vrot.lane.b32.xlu0 %v2500, 24
      %v2543 = vpop.permute.xlu0 %2542
      %2544 = vrot.lane.b32.xlu0 %v2521, 24
      %v2545 = vpop.permute.xlu0 %2544
      %v2548 = vsel %vm1220, %v2374, %v2527
      %v2549 = vsel %vm1220, %v2395, %v2529
      %v2550 = vsel %vm1699, %v2548, %v2535
      %v2551 = vsel %vm1699, %v2549, %v2537
      %v2552 = vsel %vm1702, %v2550, %v2543
      %v2553 = vsel %vm1702, %v2551, %v2545
      %v2554 = vpack.c.bf16 %v2553, %v2552
      %s2555 = scalar_lea.vmem %s837, 16
      %v2556 = vld [vmem:[%s2555] sm:$0xf]
      %v2557 = vld [vmem:[%s2555 + $0x4] sm:$0xf]
      %v2558 = vld [vmem:[%s2555 + $0x8] sm:$0xf]
      %v2559 = vld [vmem:[%s2555 + $0xc] sm:$0xf]
      %s2560 = scalar_lea.vmem %s841, 1
      %v2561 = vld [vmem:[%s2560] sm:$0x1]
      %v2563 = vperm.slane %v2561, 0
      %v2569 = vunpack.c.l.b16 %v2556
      %v2570 = vunpack.c.l.b16 %v2557
      %v2571 = vunpack.c.l.b16 %v2558
      %v2572 = vunpack.c.l.b16 %v2559
      %v2573 = vpack.c.b16 %v2570, %v2569
      %v2574 = vpack.c.b16 %v2572, %v2571
      %v2578 = vsel %vm1087, %v2554, 0
      %2580 = vmatpush.bf16.msra.mxu0 0
      %2581 = vmatpush.bf16.msra.mxu0 0
      %2582 = vmatpush.bf16.msra.mxu0 0
      %2583 = vmatpush.bf16.msra.mxu0 0
      %2584 = vmatpush.bf16.msra.mxu0 0
      %2585 = vmatpush.bf16.msra.mxu0 0
      %2586 = vmatpush.bf16.msra.mxu0 %v2574
      %2587 = vmatpush.bf16.msra.mxu0 %v2573
      %2588 = vmatmul.bf16.gmra.mxu0 %v2578
      %v2589 = vpop.f32.mrf.mxu0
      %v2590 = vadd.f32 %v2563, %v2589
      %v2591 = vpop.f32.mrf.mxu0
      %v2592 = vadd.f32 %v2563, %v2591
      %2593 = vdwg.mxu0
      %v2594 = vadd.f32 %v1940, %v2590
      %v2595 = vadd.f32 %v1941, %v2592
      %s2596 = scalar_lea.vmem %s845, 1
      %v2597 = vld [vmem:[%s2596] sm:$0x1]
      %s2598 = scalar_lea.vmem %s849, 1
      %v2599 = vld [vmem:[%s2598] sm:$0x1]
      %v2600 = vsel %vm1087, %v2594, 0.0
      %2601 = vadd.xlane.f32.xlu0 %v2600
      %v2602 = vpop.xlane.xlu0 %2601
      %v2603 = vsel %vm1087, %v2595, 0.0
      %2604 = vadd.xlane.f32.xlu0 %v2603
      %v2605 = vpop.xlane.xlu0 %2604
      %v2606 = vmul.f32 %v2602, %v1100
      %v2607 = vmul.f32 %v2605, %v1100
      %v2608 = vsub.f32 %v2594, %v2606
      %v2609 = vsub.f32 %v2595, %v2607
      %v2610 = vmul.f32 %v2608, %v2608
      %v2611 = vmul.f32 %v2609, %v2609
      %v2612 = vsel %vm1087, %v2610, 0.0
      %2613 = vadd.xlane.f32.xlu0 %v2612
      %v2614 = vpop.xlane.xlu0 %2613
      %v2615 = vsel %vm1087, %v2611, 0.0
      %2616 = vadd.xlane.f32.xlu0 %v2615
      %v2617 = vpop.xlane.xlu0 %2616
      %v2618 = vmul.f32 %v2614, %v1100
      %v2619 = vmul.f32 %v2617, %v1100
      %v2620 = vadd.f32 %v2618, 1e-05
      %v2621 = vadd.f32 %v2619, 1e-05
      %v2622 = vrsqrt.pop %v2620
      %v2623 = vmul.f32 %v2622, %v2620
      %v2624 = vmul.f32 %v2623, %v2622
      %v2625 = vmul.f32 0.5, %v2624
      %v2626 = vsub.f32 1.5, %v2625
      %v2627 = vmul.f32 %v2622, %v2626
      %vm2628 = vweird.f32 %v2620
      %vm2629 = vweird.f32 %v2622
      %vm2630 = vmor %vm2628, %vm2629
      %v2631 = vsel %vm2630, %v2622, %v2627
      %v2632 = vrsqrt.pop %v2621
      %v2633 = vmul.f32 %v2632, %v2621
      %v2634 = vmul.f32 %v2633, %v2632
      %v2635 = vmul.f32 0.5, %v2634
      %v2636 = vsub.f32 1.5, %v2635
      %v2637 = vmul.f32 %v2632, %v2636
      %vm2638 = vweird.f32 %v2621
      %vm2639 = vweird.f32 %v2632
      %vm2640 = vmor %vm2638, %vm2639
      %v2641 = vsel %vm2640, %v2632, %v2637
      %v2642 = vmul.f32 %v2608, %v2631
      %v2643 = vmul.f32 %v2609, %v2641
      %v2645 = vperm.slane %v2597, 0
      %v2647 = vmul.f32 %v2642, %v2645
      %v2648 = vmul.f32 %v2643, %v2645
      %v2650 = vperm.slane %v2599, 0
      %v2652 = vadd.f32 %v2647, %v2650
      %v2653 = vadd.f32 %v2648, %v2650
      %v2654 = vpack.c.bf16 %v2653, %v2652
      %s2655 = scalar_lea.vmem %s854, 16
      %v2656 = vld [vmem:[%s2655] sm:$0xf]
      %v2657 = vld [vmem:[%s2655 + $0x4] sm:$0xf]
      %v2658 = vld [vmem:[%s2655 + $0x8] sm:$0xf]
      %v2659 = vld [vmem:[%s2655 + $0xc] sm:$0xf]
      %s2660 = scalar_lea.vmem %s858, 1
      %v2661 = vld [vmem:[%s2660] sm:$0x1]
      %v2663 = vperm.slane %v2661, 0
      %v2669 = vunpack.c.l.b16 %v2656
      %v2670 = vunpack.c.l.b16 %v2657
      %v2671 = vunpack.c.l.b16 %v2658
      %v2672 = vunpack.c.l.b16 %v2659
      %v2673 = vpack.c.b16 %v2670, %v2669
      %v2674 = vpack.c.b16 %v2672, %v2671
      %v2678 = vsel %vm1087, %v2654, 0
      %2680 = vmatpush.bf16.msra.mxu0 0
      %2681 = vmatpush.bf16.msra.mxu0 0
      %2682 = vmatpush.bf16.msra.mxu0 0
      %2683 = vmatpush.bf16.msra.mxu0 0
      %2684 = vmatpush.bf16.msra.mxu0 0
      %2685 = vmatpush.bf16.msra.mxu0 0
      %2686 = vmatpush.bf16.msra.mxu0 %v2674
      %2687 = vmatpush.bf16.msra.mxu0 %v2673
      %2688 = vmatmul.bf16.gmra.mxu0 %v2678
      %v2689 = vpop.f32.mrf.mxu0
      %v2690 = vadd.f32 %v2663, %v2689
      %v2691 = vpop.f32.mrf.mxu0
      %v2692 = vadd.f32 %v2663, %v2691
      %2693 = vdwg.mxu0
      %v2694 = vmul.f32 %v2690, 0.5
      %v2695 = vmul.f32 %v2692, 0.5
      %v2696 = vmul.f32 %v2690, 0.044715
      %v2697 = vmul.f32 %v2692, 0.044715
      %v2698 = vmul.f32 %v2696, %v2690
      %v2699 = vmul.f32 %v2697, %v2692
      %v2700 = vmul.f32 %v2698, %v2690
      %v2701 = vmul.f32 %v2699, %v2692
      %v2702 = vadd.f32 %v2690, %v2700
      %v2703 = vadd.f32 %v2692, %v2701
      %v2704 = vmul.f32 %v2702, 0.7978846
      %v2705 = vmul.f32 %v2703, 0.7978846
      %v2706 = vtanh.pop %v2704
      %v2707 = vtanh.pop %v2705
      %v2708 = vadd.f32 %v2706, 1.0
      %v2709 = vadd.f32 %v2707, 1.0
      %v2710 = vmul.f32 %v2694, %v2708
      %v2711 = vmul.f32 %v2695, %v2709
      %v2712 = vpack.c.bf16 %v2711, %v2710
      %s2713 = scalar_lea.vmem %s863, 64
      %v2714 = vld [vmem:[%s2713] sm:$0xf]
      %v2715 = vld [vmem:[%s2713 + $0x4] sm:$0xf]
      %v2716 = vld [vmem:[%s2713 + $0x8] sm:$0xf]
      %v2717 = vld [vmem:[%s2713 + $0xc] sm:$0xf]
      %v2718 = vld [vmem:[%s2713 + $0x10] sm:$0xf]
      %v2719 = vld [vmem:[%s2713 + $0x14] sm:$0xf]
      %v2720 = vld [vmem:[%s2713 + $0x18] sm:$0xf]
      %v2721 = vld [vmem:[%s2713 + $0x1c] sm:$0xf]
      %v2722 = vld [vmem:[%s2713 + $0x20] sm:$0xf]
      %v2723 = vld [vmem:[%s2713 + $0x24] sm:$0xf]
      %v2724 = vld [vmem:[%s2713 + $0x28] sm:$0xf]
      %v2725 = vld [vmem:[%s2713 + $0x2c] sm:$0xf]
      %v2726 = vld [vmem:[%s2713 + $0x30] sm:$0xf]
      %v2727 = vld [vmem:[%s2713 + $0x34] sm:$0xf]
      %v2728 = vld [vmem:[%s2713 + $0x38] sm:$0xf]
      %v2729 = vld [vmem:[%s2713 + $0x3c] sm:$0xf]
      %s2730 = scalar_lea.vmem %s867, 1
      %v2731 = vld [vmem:[%s2730] sm:$0x1]
      %v2733 = vperm.slane %v2731, 0
      %v2751 = vunpack.c.l.b16 %v2714
      %v2752 = vunpack.c.l.b16 %v2715
      %v2753 = vunpack.c.l.b16 %v2716
      %v2754 = vunpack.c.l.b16 %v2717
      %v2755 = vunpack.c.l.b16 %v2718
      %v2756 = vunpack.c.l.b16 %v2719
      %v2757 = vunpack.c.l.b16 %v2720
      %v2758 = vunpack.c.l.b16 %v2721
      %v2759 = vunpack.c.l.b16 %v2722
      %v2760 = vunpack.c.l.b16 %v2723
      %v2761 = vunpack.c.l.b16 %v2724
      %v2762 = vunpack.c.l.b16 %v2725
      %v2763 = vunpack.c.l.b16 %v2726
      %v2764 = vunpack.c.l.b16 %v2727
      %v2765 = vunpack.c.l.b16 %v2728
      %v2766 = vunpack.c.l.b16 %v2729
      %v2767 = vpack.c.b16 %v2752, %v2751
      %v2768 = vpack.c.b16 %v2754, %v2753
      %v2769 = vpack.c.b16 %v2756, %v2755
      %v2770 = vpack.c.b16 %v2758, %v2757
      %v2771 = vpack.c.b16 %v2760, %v2759
      %v2772 = vpack.c.b16 %v2762, %v2761
      %v2773 = vpack.c.b16 %v2764, %v2763
      %v2774 = vpack.c.b16 %v2766, %v2765
      %2783 = vmatpush.bf16.msra.mxu0 %v2774
      %2784 = vmatpush.bf16.msra.mxu0 %v2773
      %2785 = vmatpush.bf16.msra.mxu0 %v2772
      %2786 = vmatpush.bf16.msra.mxu0 %v2771
      %2787 = vmatpush.bf16.msra.mxu0 %v2770
      %2788 = vmatpush.bf16.msra.mxu0 %v2769
      %2789 = vmatpush.bf16.msra.mxu0 %v2768
      %2790 = vmatpush.bf16.msra.mxu0 %v2767
      %2791 = vmatmul.bf16.gmra.mxu0 %v2712
      %v2792 = vpop.f32.mrf.mxu0
      %v2793 = vadd.f32 %v2733, %v2792
      %v2794 = vpop.f32.mrf.mxu0
      %v2795 = vadd.f32 %v2733, %v2794
      %2796 = vdwg.mxu0
      %v2797 = vadd.f32 %v2594, %v2793
      %v2798 = vadd.f32 %v2595, %v2795
      %2799 = vst.msk [vmem:[#allocation2] sm:$0xff] %vm1087, %v2797
      %2800 = vst.msk [vmem:[#allocation2 + $0x8] sm:$0xff] %vm1087, %v2798
      // Predicated region
      $region109: #{clip_forward.1} parent=99 // pred_check
        %p2801 = pneg %p887
      $region110: #{clip_forward.1} parent=99 // pred_check_branch
        %2803 = sbr.rel (%p2801) target = $region112
      $region111: #{clip_forward.1} parent=99 // pred_region
        %v2804 = vld [vmem:[#allocation2] ss:$8 sm:$0x3]
        %vm2805 = vcmask 254976
        %2806 = vst.msk [vmem:[#allocation3] sm:$0x3] %vm2805, %v2804
      $region112: #{clip_forward.1} parent=99 // pred_fallthru
        _
      // Predicated region
      $region113: #{clip_forward.1} parent=99 // pred_check
        %p2807 = pneg %p1059
      $region114: #{clip_forward.1} parent=99 // pred_check_branch
        %2809 = sbr.rel (%p2807) target = $region116
      $region115: #{clip_forward.1} parent=99 // pred_region
        %s2810 = scalar_lea.vmem [#allocation2], 7
        %v2811 = vld [vmem:[%s2810] ss:$8 sm:$0x3]
        %vm2812 = vcmask 254976
        %2813 = vst.msk [vmem:[#allocation3] sm:$0x3] %vm2812, %v2811
      $region116: #{clip_forward.1} parent=99 // pred_fallthru
        _
      %v2814 = vld [vmem:[#allocation3] sm:$0x3]
      %v2815 = vld [vmem:[%s870] sm:$0x1]
      %v2816 = vld [vmem:[%s873] sm:$0x1]
      %vm2817 = vcmask 254976
      %v2818 = vsel %vm2817, %v2814, 0.0
      %2819 = vadd.xlane.f32.xlu0 %v2818
      %v2820 = vpop.xlane.xlu0 %2819
      %v2821 = vmul.f32 %v2820, %v1100
      %v2822 = vsub.f32 %v2814, %v2821
      %v2823 = vmul.f32 %v2822, %v2822
      %v2824 = vsel %vm2817, %v2823, 0.0
      %2825 = vadd.xlane.f32.xlu0 %v2824
      %v2826 = vpop.xlane.xlu0 %2825
      %v2827 = vmul.f32 %v2826, %v1100
      %v2828 = vadd.f32 %v2827, 1e-05
      %v2829 = vrsqrt.pop %v2828
      %v2830 = vmul.f32 %v2829, %v2828
      %v2831 = vmul.f32 %v2830, %v2829
      %v2832 = vmul.f32 0.5, %v2831
      %v2833 = vsub.f32 1.5, %v2832
      %v2834 = vmul.f32 %v2829, %v2833
      %vm2835 = vweird.f32 %v2828
      %vm2836 = vweird.f32 %v2829
      %vm2837 = vmor %vm2835, %vm2836
      %v2838 = vsel %vm2837, %v2829, %v2834
      %v2839 = vmul.f32 %v2822, %v2838
      %v2841 = vperm.slane %v2815, 0
      %v2843 = vmul.f32 %v2839, %v2841
      %v2845 = vperm.slane %v2816, 0
      %v2847 = vadd.f32 %v2843, %v2845
      %v2848 = vpack.c.bf16 %v2847, %v2847
      %v2849 = vld [vmem:[%s878] sm:$0xf]
      %v2850 = vld [vmem:[%s878 + $0x4] sm:$0xf]
      %v2851 = vld [vmem:[%s878 + $0x8] sm:$0xf]
      %v2852 = vld [vmem:[%s878 + $0xc] sm:$0xf]
      %v2853 = vld [vmem:[%s881] sm:$0x1]
      %v2855 = vperm.slane %v2853, 0
      %v2861 = vunpack.c.l.b16 %v2849
      %v2862 = vunpack.c.l.b16 %v2850
      %v2863 = vunpack.c.l.b16 %v2851
      %v2864 = vunpack.c.l.b16 %v2852
      %v2865 = vpack.c.b16 %v2862, %v2861
      %v2866 = vpack.c.b16 %v2864, %v2863
      %v2870 = vsel %vm1087, %v2848, 0
      %2872 = vmatpush.bf16.msra.mxu0 0
      %2873 = vmatpush.bf16.msra.mxu0 0
      %2874 = vmatpush.bf16.msra.mxu0 0
      %2875 = vmatpush.bf16.msra.mxu0 0
      %2876 = vmatpush.bf16.msra.mxu0 0
      %2877 = vmatpush.bf16.msra.mxu0 0
      %2878 = vmatpush.bf16.msra.mxu0 %v2866
      %2879 = vmatpush.bf16.msra.mxu0 %v2865
      %2880 = vmatmul.bf16.gmra.mxu0 %v2870
      %v2881 = vpop.f32.mrf.mxu0
      %v2882 = vadd.f32 %v2855, %v2881
      %v2883 = vpop.f32.mrf.mxu0
      %2884 = vdwg.mxu0
      %v2885 = vmul.f32 %v2882, %v2882
      %v2886 = vsel %vm2817, %v2885, 0.0
      %2887 = vadd.xlane.f32.xlu0 %v2886
      %v2888 = vpop.xlane.xlu0 %2887
      %v2889 = vmax.f32 %v2888, 1e-24
      %v2890 = vrsqrt.pop %v2889
      %v2891 = vmul.f32 %v2890, %v2889
      %v2892 = vmul.f32 %v2891, %v2890
      %v2893 = vmul.f32 0.5, %v2892
      %v2894 = vsub.f32 1.5, %v2893
      %v2895 = vmul.f32 %v2890, %v2894
      %vm2896 = vweird.f32 %v2889
      %vm2897 = vweird.f32 %v2890
      %vm2898 = vmor %vm2896, %vm2897
      %v2899 = vsel %vm2898, %v2890, %v2895
      %v2900 = vmul.f32 %v2882, %v2899
      %2901 = vst.msk [vmem:[%s885] sm:$0x3] %vm2817, %v2900
      %p2902 = scmp.lt.s32.totalorder %s31, 1
      %s2903 = scalar_select %p2902, %s31, 1
      %s2904 = smul.addr %s2903, 2
      %s2905 = scalar_lea.vmem %s20, %s2904
      // Predicated region
      $region117: #{clip_forward.1} parent=99 // pred_check
        %p2906 = pneg %p549
      $region118: #{clip_forward.1} parent=99 // pred_check_branch
        %2908 = sbr.rel (%p2906) target = $region120
      $region119: #{clip_forward.1} parent=99 // pred_region
        _
      $region120: #{clip_forward.1} parent=99 // pred_fallthru
        _
    $region100: #{clip_forward.1} parent=5 // pred_fallthru
      _
    %p2909 = scmp.le.s32.totalorder 2, %s26
    // Predicated region
    $region121: #{clip_forward.1} parent=5 // pred_check
      %p2910 = pneg %p2909
    $region122: #{clip_forward.1} parent=5 // pred_check_branch
      %2912 = sbr.rel (%p2910) target = $region124
    $region123: #{clip_forward.1} parent=5 // pred_region
      %s2913 = ssub.s32 %s26, 2
      // Predicated region
      $region125: #{clip_forward.1} parent=123 // pred_check
        %p2914 = pneg %p555
      $region126: #{clip_forward.1} parent=123 // pred_check_branch
        %2916 = sbr.rel (%p2914) target = $region128
      $region127: #{clip_forward.1} parent=123 // pred_region
        %p2917 = scmp.lt.s32.totalorder %s32, 1
        %s2918 = scalar_select %p2917, %s32, 1
        %s2919 = smul.addr %s2918, 2
        %s2920 = scalar_lea.vmem %s20, %s2919
      $region128: #{clip_forward.1} parent=123 // pred_fallthru
        _
    $region124: #{clip_forward.1} parent=5 // pred_fallthru
      _
  $region6: #{clip_forward.1} parent=0 // loop_footer
    %s30 = sadd.s32 1, %s26
  $region7: #{clip_forward.1} parent=0 // loop_footer_branch
    %25 = sbr.rel target = $region3
  $region8: #{clip_forward.1} parent=0 // loop_exit
    _

</llo_original>
